<compile_context>
chip_gen: v7x
topology: tpu7x:2x2x1
jax: 0.10.0
libtpu: 0.0.40
codegen_flags: <defaults>
</compile_context>

<pallas_src>
import math
from functools import partial

import numpy as np
import jax
import jax.numpy as jnp
from jax.experimental import pallas as pl
from jax.experimental.pallas import tpu as pltpu

DILATIONS = (1, 3, 5, 7, 9)
LANE = 128


def _round_up(x, m):
    return (x + m - 1) // m * m


# ----------------------------------------------------------------------------
# Fused Pallas kernel: 5x ResidualUnit + strided DownsampleLayer (one batch el.)
# ----------------------------------------------------------------------------
def _fused_block_kernel(res_k, down_k, stride, pad_left, pad_right, T, Tout,
                        alphas_ref, x_hbm, w1_ref, b1_ref, w2_ref, b2_ref,
                        wd_ref, bd_ref, o_ref, buf, dma_sem):
    """
    alphas_ref : (11,)            SMEM   PReLU alphas (2 per unit + 1 down)
    x_hbm      : (N, T, Cp)       HBM (pl.ANY) input, DMA'd manually
    w1_ref     : (5, K*Cp, Cp)    im2col-folded dilated conv weights
    b1_ref     : (5, 1, Cp)
    w2_ref     : (5, Cp, Cp)      1x1 convs
    b2_ref     : (5, 1, Cp)
    wd_ref     : (Kd*Cp, Coutp)   downsample conv (im2col-folded)
    bd_ref     : (1, Coutp)
    o_ref      : (1, Tout, Coutp)
    buf        : (pad_left+T+pad_right, Cp) f32 VMEM scratch (zero halo)
    dma_sem    : DMA semaphore
    """
    Cp = buf.shape[1]
    n = pl.program_id(0)

    # DMA this batch element's (T, Cp) slab from HBM straight into the interior
    # of the zero-padded scratch (no separate double-buffered input tile).
    cp = pltpu.make_async_copy(x_hbm.at[n], buf.at[pl.ds(pad_left, T)], dma_sem)
    cp.start()

    # Zero only the halo rows; the interior is fully overwritten by the DMA.
    # Done every step (cheap, ~2*32 rows) so the kernel stays correct when the
    # batch grid is sharded across TensorCores (each core has its own scratch).
    buf[pl.ds(0, pad_left), :] = jnp.zeros((pad_left, Cp), jnp.float32)
    buf[pl.ds(pad_left + T, pad_right), :] = jnp.zeros((pad_right, Cp),
                                                       jnp.float32)
    cp.wait()

    wdtype = w1_ref.dtype  # bf16 (default) or f32

    # ---- 5 fused ResidualUnits; activation never leaves VMEM ---------------
    for i, d in enumerate(DILATIONS):
        pad = d * (res_k - 1) // 2                    # get_padding(res_k, d)
        # im2col: K shifted windows concatenated on the lane axis -> a single
        # MXU matmul with contraction depth K*Cp instead of K shallow ones.
        patch = jnp.concatenate(
            [buf[pl.ds(pad_left - pad + k * d, T), :].astype(wdtype)
             for k in range(res_k)], axis=-1)         # (T, K*Cp)
        h = jnp.dot(patch, w1_ref[i],
                    preferred_element_type=jnp.float32) + b1_ref[i]
        a1 = alphas_ref[2 * i]
        h = jnp.where(h >= 0, h, a1 * h)              # PReLU 1 (f32)

        h = jnp.dot(h.astype(wdtype), w2_ref[i],
                    preferred_element_type=jnp.float32) + b2_ref[i]
        a2 = alphas_ref[2 * i + 1]
        h = jnp.where(h >= 0, h, a2 * h)              # PReLU 2 (f32)

        # Residual add straight into the buffer (no separate `cur` carry).
        buf[pl.ds(pad_left, T), :] = h + buf[pl.ds(pad_left, T), :]

    # ---- strided downsample conv + PReLU (only strided outputs computed) ---
    pad_dn = (down_k - 1) // 2                        # get_padding(down_k, 1)
    patch = jnp.concatenate(
        [buf[pl.ds(pad_left - pad_dn + k, Tout, stride), :].astype(wdtype)
         for k in range(down_k)], axis=-1)            # (Tout, Kd*Cp)
    y = jnp.dot(patch, wd_ref[...],
                preferred_element_type=jnp.float32) + bd_ref[...]
    ad = alphas_ref[2 * len(DILATIONS)]
    o_ref[0] = jnp.where(y >= 0, y, ad * y)


# ----------------------------------------------------------------------------
# Wrapper
# ----------------------------------------------------------------------------
def _resident_spec(shape):
    """Full-array block, constant index map: DMA'd once, resident across the
    whole batch grid.  Single-buffered (Buffered(1)) -- double-buffering a
    grid-invariant weight only wastes VMEM (matters under v7x's 64 MiB)."""
    idx = lambda n, _nd=len(shape): (0,) * _nd
    try:
        return pl.BlockSpec(shape, idx, pipeline_mode=pl.Buffered(1))
    except TypeError:  # older jax without pipeline_mode on BlockSpec
        return pl.BlockSpec(shape, idx)


def _pack_params(params, C, Cout, Cp, Coutp, wdtype):
    """Pad channels to lane multiples and fold conv taps for im2col matmuls."""
    dC, dO = Cp - C, Coutp - Cout
    nu, K = params["w1"].shape[:2]
    Kd = params["wd"].shape[0]
    w1 = jnp.pad(params["w1"], ((0, 0), (0, 0), (0, dC), (0, dC)))
    w2 = jnp.pad(params["w2"], ((0, 0), (0, 0), (0, dC), (0, dC)))
    wd = jnp.pad(params["wd"], ((0, 0), (0, dC), (0, dO)))
    return {
        "w1": w1.reshape(nu, K * Cp, Cp).astype(wdtype),
        "b1": jnp.pad(params["b1"], ((0, 0), (0, 0), (0, dC))),
        "w2": w2.reshape(nu, Cp, Cp).astype(wdtype),
        "b2": jnp.pad(params["b2"], ((0, 0), (0, 0), (0, dC))),
        "wd": wd.reshape(Kd * Cp, Coutp).astype(wdtype),
        "bd": jnp.pad(params["bd"], ((0, 0), (0, dO))),
        "alphas": params["alphas"],
    }


@partial(jax.jit, static_argnames=("stride", "down_kernel_size",
                                   "res_kernel_size", "use_bf16"))
def res_encoder_block(x_ntc, params, *, stride, down_kernel_size,
                      res_kernel_size=7, use_bf16=True):
    """x_ntc: (N, T, C) channels-last activation. Returns (N, Tout, n_out)."""
    N, T, C = x_ntc.shape
    res_k, down_k = res_kernel_size, down_kernel_size
    Cout = params["bd"].shape[-1]

    pad_dn = (down_k - 1) // 2
    pad_res = max(d * (res_k - 1) // 2 for d in DILATIONS)
    pad_left = _round_up(max(pad_res, pad_dn), 8)     # sublane-aligned DMA dst
    pad_right = _round_up(max(pad_res, pad_dn), 8)
    Tbuf = pad_left + T + pad_right
    Tout = (T + 2 * pad_dn - down_k) // stride + 1    # PyTorch Conv1d length

    # Lane-dense channel padding (no-op when C / Cout are already 128-aligned).
    Cp, Coutp = _round_up(C, LANE), _round_up(Cout, LANE)
    wdtype = jnp.bfloat16 if use_bf16 else jnp.float32
    p = _pack_params(params, C, Cout, Cp, Coutp, wdtype)
    if Cp != C:
        x_ntc = jnp.pad(x_ntc, ((0, 0), (0, 0), (0, Cp - C)))

    kernel = partial(_fused_block_kernel, res_k, down_k, stride,
                     pad_left, pad_right, T, Tout)

    # Explicit VMEM budget: single-buffered resident weights + activation
    # scratch + double-buffered output tile + im2col intermediate + headroom.
    weight_bytes = sum(int(np.prod(a.shape)) * a.dtype.itemsize
                       for a in (p["w1"], p["b1"], p["w2"], p["b2"],
                                 p["wd"], p["bd"]))
    scratch_bytes = Tbuf * Cp * 4
    io_bytes = 2 * Tout * Coutp * 4
    patch_bytes = T * res_k * Cp * (2 if use_bf16 else 4)
    need = weight_bytes + scratch_bytes + io_bytes + patch_bytes
    vmem_limit = int(min(64 << 20, max(16 << 20, 1.4 * need + (2 << 20))))

    out = pl.pallas_call(
        kernel,
        out_shape=jax.ShapeDtypeStruct((N, Tout, Coutp), jnp.float32),
        grid=(N,),
        in_specs=[
            # PReLU alphas: scalars in SMEM.
            pl.BlockSpec(memory_space=pltpu.MemorySpace.SMEM),
            # Activation: raw HBM ref; DMA'd straight into the scratch.
            pl.BlockSpec(memory_space=pl.ANY),
            # Weights / biases: resident in VMEM, single-buffered.
            _resident_spec(p["w1"].shape),
            _resident_spec(p["b1"].shape),
            _resident_spec(p["w2"].shape),
            _resident_spec(p["b2"].shape),
            _resident_spec(p["wd"].shape),
            _resident_spec(p["bd"].shape),
        ],
        out_specs=pl.BlockSpec((1, Tout, Coutp), lambda n: (n, 0, 0)),
        scratch_shapes=[pltpu.VMEM((Tbuf, Cp), jnp.float32),
                        pltpu.SemaphoreType.DMA],
        compiler_params=pltpu.CompilerParams(
            dimension_semantics=("parallel",),
            vmem_limit_bytes=vmem_limit),
    )(p["alphas"], x_ntc, p["w1"], p["b1"], p["w2"], p["b2"], p["wd"], p["bd"])
    return out[..., :Cout]


# ----------------------------------------------------------------------------
# Deterministic parameter init (mirrors the module's shapes)
# ----------------------------------------------------------------------------
def _winit(key, shape, fan_in):
    return jax.random.normal(key, shape, jnp.float32) / math.sqrt(fan_in)


def init_params(key, n_in, n_out, down_kernel_size, res_kernel_size=7):
    C = n_out // 2
    assert n_in == C, "ResEncoderBlock forward requires n_in == n_out // 2"
    w1, b1, w2, b2 = [], [], [], []
    for _ in DILATIONS:
        key, k1, k2, k3, k4 = jax.random.split(key, 5)
        w1.append(_winit(k1, (res_kernel_size, C, C), C * res_kernel_size))
        b1.append(_winit(k2, (1, C), C * res_kernel_size))
        w2.append(_winit(k3, (1, C, C), C))
        b2.append(_winit(k4, (1, C), C))
    key, k1, k2 = jax.random.split(key, 3)
    return {
        "w1": jnp.stack(w1),                          # (5, K, Cin, Cout)
        "b1": jnp.stack(b1),                          # (5, 1, C)
        "w2": jnp.stack(w2),                          # (5, 1, Cin, Cout)
        "b2": jnp.stack(b2),                          # (5, 1, C)
        "wd": _winit(k1, (down_kernel_size, C, n_out), C * down_kernel_size),
        "bd": _winit(k2, (1, n_out), C * down_kernel_size),
        # 2 PReLU alphas per ResidualUnit + 1 for the down conv (nn.PReLU()).
        "alphas": jnp.full((2 * len(DILATIONS) + 1,), 0.25, jnp.float32),
    }


# ----------------------------------------------------------------------------
# Pure-JAX reference (NCT layout, mirrors the PyTorch module exactly)
# ----------------------------------------------------------------------------
def _ref_conv1d(x_nct, w_oik, b, stride, dilation, padding):
    y = jax.lax.conv_general_dilated(
        x_nct, w_oik, window_strides=(stride,), padding=[(padding, padding)],
        rhs_dilation=(dilation,), dimension_numbers=("NCH", "OIH", "NCH"))
    return y + b[None, :, None]


def ref_forward(x_nct, params, stride, down_k, res_k=7):
    x = x_nct
    for i, d in enumerate(DILATIONS):
        w1 = jnp.transpose(params["w1"][i], (2, 1, 0))
        w2 = jnp.transpose(params["w2"][i], (2, 1, 0))
        a1 = params["alphas"][2 * i]
        a2 = params["alphas"][2 * i + 1]
        h = _ref_conv1d(x, w1, params["b1"][i, 0], 1, d, d * (res_k - 1) // 2)
        h = jnp.where(h >= 0, h, a1 * h)
        h = _ref_conv1d(h, w2, params["b2"][i, 0], 1, 1, 0)
        h = jnp.where(h >= 0, h, a2 * h)
        x = h + x
    w = jnp.transpose(params["wd"], (2, 1, 0))
    y = _ref_conv1d(x, w, params["bd"][0], stride, 1, (down_k - 1) // 2)
    ad = params["alphas"][2 * len(DILATIONS)]
    return jnp.where(y >= 0, y, ad * y)


# ----------------------------------------------------------------------------
if __name__ == "__main__":
    N, n_in, n_out, T = 2, 4, 8, 32
    stride, down_k, res_k = 2, 4, 7

    key = jax.random.PRNGKey(0)
    kx, kp = jax.random.split(key)
    x_nct = jax.random.normal(kx, (N, n_in, T), jnp.float32)   # PyTorch (N,C,T)
    params = init_params(kp, n_in, n_out, down_k, res_k)
    x_ntc = jnp.transpose(x_nct, (0, 2, 1))                    # kernel layout

    y_ref = ref_forward(x_nct, params, stride, down_k, res_k)

    # f32-matmul mode: strict check of the fused indexing / halo / stride math.
    y32 = res_encoder_block(x_ntc, params, stride=stride,
                            down_kernel_size=down_k, res_kernel_size=res_k,
                            use_bf16=False)
    y32 = jax.block_until_ready(y32)
    y32_nct = jnp.transpose(y32, (0, 2, 1))
    assert y32_nct.shape == y_ref.shape, (y32_nct.shape, y_ref.shape)
    np.testing.assert_allclose(np.asarray(y32_nct), np.asarray(y_ref),
                               atol=1e-4, rtol=1e-4)

    # bf16-weight MXU mode (production path on v5e/v6e/v7x): looser tolerance.
    y16 = res_encoder_block(x_ntc, params, stride=stride,
                            down_kernel_size=down_k, res_kernel_size=res_k,
                            use_bf16=True)
    y16 = jax.block_until_ready(y16)
    y16_nct = jnp.transpose(y16, (0, 2, 1))
    np.testing.assert_allclose(np.asarray(y16_nct), np.asarray(y_ref),
                               atol=5e-2, rtol=5e-2)

    print("KERNEL_OK")
</pallas_src>

<mosaic_0001>
module attributes {stable_mosaic.version = 11 : i64} {
  func.func @_fused_block_kernel(%arg0: i32, %arg1: memref<11xf32, #tpu.memory_space<smem>>, %arg2: memref<2x32x128xf32, #tpu.memory_space<any>>, %arg3: memref<5x896x128xf32, #tpu.memory_space<vmem>>, %arg4: memref<5x1x128xf32, #tpu.memory_space<vmem>>, %arg5: memref<5x128x128xf32, #tpu.memory_space<vmem>>, %arg6: memref<5x1x128xf32, #tpu.memory_space<vmem>>, %arg7: memref<512x128xf32, #tpu.memory_space<vmem>>, %arg8: memref<1x128xf32, #tpu.memory_space<vmem>>, %arg9: memref<1x16x128xf32, #tpu.memory_space<vmem>>, %arg10: memref<96x128xf32, #tpu.memory_space<vmem>>, %arg11: memref<!tpu.dma_semaphore, #tpu.memory_space<semaphore_mem>>) attributes {dimension_semantics = [#tpu.dimension_semantics<parallel>], iteration_bounds = array<i64: 2>, scalar_prefetch = 0 : i64, scratch_operands = 2 : i64, tpu.core_type = #tpu.core_type<tc>, window_params = [{transform_indices = @transform_0, window_bounds = array<i64: 11>}, {}, {pipeline_mode = #tpu.pipeline_mode<synchronous>, transform_indices = @transform_2, window_bounds = array<i64: 5, 896, 128>}, {pipeline_mode = #tpu.pipeline_mode<synchronous>, transform_indices = @transform_3, window_bounds = array<i64: 5, 1, 128>}, {pipeline_mode = #tpu.pipeline_mode<synchronous>, transform_indices = @transform_4, window_bounds = array<i64: 5, 128, 128>}, {pipeline_mode = #tpu.pipeline_mode<synchronous>, transform_indices = @transform_5, window_bounds = array<i64: 5, 1, 128>}, {pipeline_mode = #tpu.pipeline_mode<synchronous>, transform_indices = @transform_6, window_bounds = array<i64: 512, 128>}, {pipeline_mode = #tpu.pipeline_mode<synchronous>, transform_indices = @transform_7, window_bounds = array<i64: 1, 128>}, {transform_indices = @transform_8, window_bounds = array<i64: 1, 16, 128>}]} {
    %c0_i32 = arith.constant 0 : i32
    %c0_i32_0 = arith.constant 0 : i32
    %0 = tpu.memref_slice %arg2[%arg0, %c0_i32, %c0_i32_0] : memref<2x32x128xf32, #tpu.memory_space<any>> -> memref<1x32x128xf32, #tpu.memory_space<any>>
    %1 = tpu.memref_squeeze %0 : memref<1x32x128xf32, #tpu.memory_space<any>> -> memref<32x128xf32, #tpu.memory_space<any>>
    %c32_i32 = arith.constant 32 : i32
    %c0_i32_1 = arith.constant 0 : i32
    %2 = tpu.memref_slice %arg10[%c32_i32, %c0_i32_1] : memref<96x128xf32, #tpu.memory_space<vmem>> -> memref<32x128xf32, #tpu.memory_space<vmem>>
    tpu.enqueue_dma source(%1 : memref<32x128xf32, #tpu.memory_space<any>>) target(%2 : memref<32x128xf32, #tpu.memory_space<vmem>>) target_semaphore(%arg11 : memref<!tpu.dma_semaphore, #tpu.memory_space<semaphore_mem>>)
    %cst = arith.constant 0.000000e+00 : f32
    %3 = vector.broadcast %cst : f32 to vector<32x128xf32>
    %c0 = arith.constant 0 : index
    %c0_2 = arith.constant 0 : index
    %4 = vector.load %arg10[%c0, %c0_2] : memref<96x128xf32, #tpu.memory_space<vmem>>, vector<32x128xf32>
    tpu.vector_store %arg10[%c0, %c0_2], %3 {strides = array<i32>} : memref<96x128xf32, #tpu.memory_space<vmem>>, vector<32x128xf32>,
    %cst_3 = arith.constant 0.000000e+00 : f32
    %5 = vector.broadcast %cst_3 : f32 to vector<32x128xf32>
    %c64 = arith.constant 64 : index
    %c0_4 = arith.constant 0 : index
    %6 = vector.load %arg10[%c64, %c0_4] : memref<96x128xf32, #tpu.memory_space<vmem>>, vector<32x128xf32>
    tpu.vector_store %arg10[%c64, %c0_4], %5 {strides = array<i32>} : memref<96x128xf32, #tpu.memory_space<vmem>>, vector<32x128xf32>,
    %c0_i32_5 = arith.constant 0 : i32
    %c0_i32_6 = arith.constant 0 : i32
    %7 = tpu.memref_slice %arg2[%arg0, %c0_i32_5, %c0_i32_6] : memref<2x32x128xf32, #tpu.memory_space<any>> -> memref<1x32x128xf32, #tpu.memory_space<any>>
    %8 = tpu.memref_squeeze %7 : memref<1x32x128xf32, #tpu.memory_space<any>> -> memref<32x128xf32, #tpu.memory_space<any>>
    %c32_i32_7 = arith.constant 32 : i32
    %c0_i32_8 = arith.constant 0 : i32
    %9 = tpu.memref_slice %arg10[%c32_i32_7, %c0_i32_8] : memref<96x128xf32, #tpu.memory_space<vmem>> -> memref<32x128xf32, #tpu.memory_space<vmem>>
    tpu.wait_dma2 semaphore(%arg11 : memref<!tpu.dma_semaphore, #tpu.memory_space<semaphore_mem>>) src(%8 : memref<32x128xf32, #tpu.memory_space<any>>) dst(%9 : memref<32x128xf32, #tpu.memory_space<vmem>>)
    %c29 = arith.constant 29 : index
    %c0_9 = arith.constant 0 : index
    %10 = vector.load %arg10[%c29, %c0_9] : memref<96x128xf32, #tpu.memory_space<vmem>>, vector<32x128xf32>
    %c30 = arith.constant 30 : index
    %c0_10 = arith.constant 0 : index
    %11 = vector.load %arg10[%c30, %c0_10] : memref<96x128xf32, #tpu.memory_space<vmem>>, vector<32x128xf32>
    %c31 = arith.constant 31 : index
    %c0_11 = arith.constant 0 : index
    %12 = vector.load %arg10[%c31, %c0_11] : memref<96x128xf32, #tpu.memory_space<vmem>>, vector<32x128xf32>
    %c32 = arith.constant 32 : index
    %c0_12 = arith.constant 0 : index
    %13 = vector.load %arg10[%c32, %c0_12] : memref<96x128xf32, #tpu.memory_space<vmem>>, vector<32x128xf32>
    %c33 = arith.constant 33 : index
    %c0_13 = arith.constant 0 : index
    %14 = vector.load %arg10[%c33, %c0_13] : memref<96x128xf32, #tpu.memory_space<vmem>>, vector<32x128xf32>
    %c34 = arith.constant 34 : index
    %c0_14 = arith.constant 0 : index
    %15 = vector.load %arg10[%c34, %c0_14] : memref<96x128xf32, #tpu.memory_space<vmem>>, vector<32x128xf32>
    %c35 = arith.constant 35 : index
    %c0_15 = arith.constant 0 : index
    %16 = vector.load %arg10[%c35, %c0_15] : memref<96x128xf32, #tpu.memory_space<vmem>>, vector<32x128xf32>
    %17 = tpu.concatenate %10, %11, %12, %13, %14, %15, %16 in 1 : vector<32x128xf32>, vector<32x128xf32>, vector<32x128xf32>, vector<32x128xf32>, vector<32x128xf32>, vector<32x128xf32>, vector<32x128xf32> -> vector<32x896xf32>
    %c0_16 = arith.constant 0 : index
    %c0_17 = arith.constant 0 : index
    %c0_18 = arith.constant 0 : index
    %18 = vector.load %arg3[%c0_16, %c0_17, %c0_18] : memref<5x896x128xf32, #tpu.memory_space<vmem>>, vector<1x896x128xf32>
    %19 = vector.shape_cast %18 : vector<1x896x128xf32> to vector<896x128xf32>
    %cst_19 = arith.constant dense<0.000000e+00> : vector<32x128xf32>
    %20 = tpu.matmul %17, %19, %cst_19 {dimension_numbers = #tpu.dot_dimension_numbers<[1], [0], [0], [1], [0, 0, 1, 1], [], []>} : vector<32x896xf32>, vector<896x128xf32>, vector<32x128xf32> -> vector<32x128xf32>
    %c0_20 = arith.constant 0 : index
    %c0_21 = arith.constant 0 : index
    %c0_22 = arith.constant 0 : index
    %21 = vector.load %arg4[%c0_20, %c0_21, %c0_22] : memref<5x1x128xf32, #tpu.memory_space<vmem>>, vector<1x1x128xf32>
    %22 = vector.shape_cast %21 : vector<1x1x128xf32> to vector<1x128xf32>
    %23 = vector.broadcast %22 : vector<1x128xf32> to vector<32x128xf32>
    %24 = arith.addf %20, %23 : vector<32x128xf32>
    %c0_23 = arith.constant 0 : index
    %25 = memref.load %arg1[%c0_23] : memref<11xf32, #tpu.memory_space<smem>>
    %cst_24 = arith.constant 0.000000e+00 : f32
    %26 = vector.broadcast %cst_24 : f32 to vector<32x128xf32>
    %27 = arith.cmpf oge, %24, %26 : vector<32x128xf32>
    %28 = vector.broadcast %25 : f32 to vector<32x128xf32>
    %29 = arith.mulf %28, %24 : vector<32x128xf32>
    %30 = arith.select %27, %24, %29 : vector<32x128xi1>, vector<32x128xf32>
    %c0_25 = arith.constant 0 : index
    %c0_26 = arith.constant 0 : index
    %c0_27 = arith.constant 0 : index
    %31 = vector.load %arg5[%c0_25, %c0_26, %c0_27] : memref<5x128x128xf32, #tpu.memory_space<vmem>>, vector<1x128x128xf32>
    %32 = vector.shape_cast %31 : vector<1x128x128xf32> to vector<128x128xf32>
    %cst_28 = arith.constant dense<0.000000e+00> : vector<32x128xf32>
    %33 = tpu.matmul %30, %32, %cst_28 {dimension_numbers = #tpu.dot_dimension_numbers<[1], [0], [0], [1], [0, 0, 1, 1], [], []>} : vector<32x128xf32>, vector<128x128xf32>, vector<32x128xf32> -> vector<32x128xf32>
    %c0_29 = arith.constant 0 : index
    %c0_30 = arith.constant 0 : index
    %c0_31 = arith.constant 0 : index
    %34 = vector.load %arg6[%c0_29, %c0_30, %c0_31] : memref<5x1x128xf32, #tpu.memory_space<vmem>>, vector<1x1x128xf32>
    %35 = vector.shape_cast %34 : vector<1x1x128xf32> to vector<1x128xf32>
    %36 = vector.broadcast %35 : vector<1x128xf32> to vector<32x128xf32>
    %37 = arith.addf %33, %36 : vector<32x128xf32>
    %c1 = arith.constant 1 : index
    %38 = memref.load %arg1[%c1] : memref<11xf32, #tpu.memory_space<smem>>
    %cst_32 = arith.constant 0.000000e+00 : f32
    %39 = vector.broadcast %cst_32 : f32 to vector<32x128xf32>
    %40 = arith.cmpf oge, %37, %39 : vector<32x128xf32>
    %41 = vector.broadcast %38 : f32 to vector<32x128xf32>
    %42 = arith.mulf %41, %37 : vector<32x128xf32>
    %43 = arith.select %40, %37, %42 : vector<32x128xi1>, vector<32x128xf32>
    %c32_33 = arith.constant 32 : index
    %c0_34 = arith.constant 0 : index
    %44 = vector.load %arg10[%c32_33, %c0_34] : memref<96x128xf32, #tpu.memory_space<vmem>>, vector<32x128xf32>
    %45 = arith.addf %43, %44 : vector<32x128xf32>
    %c32_35 = arith.constant 32 : index
    %c0_36 = arith.constant 0 : index
    %46 = vector.load %arg10[%c32_35, %c0_36] : memref<96x128xf32, #tpu.memory_space<vmem>>, vector<32x128xf32>
    tpu.vector_store %arg10[%c32_35, %c0_36], %45 {strides = array<i32>} : memref<96x128xf32, #tpu.memory_space<vmem>>, vector<32x128xf32>,
    %c23 = arith.constant 23 : index
    %c0_37 = arith.constant 0 : index
    %47 = vector.load %arg10[%c23, %c0_37] : memref<96x128xf32, #tpu.memory_space<vmem>>, vector<32x128xf32>
    %c26 = arith.constant 26 : index
    %c0_38 = arith.constant 0 : index
    %48 = vector.load %arg10[%c26, %c0_38] : memref<96x128xf32, #tpu.memory_space<vmem>>, vector<32x128xf32>
    %c29_39 = arith.constant 29 : index
    %c0_40 = arith.constant 0 : index
    %49 = vector.load %arg10[%c29_39, %c0_40] : memref<96x128xf32, #tpu.memory_space<vmem>>, vector<32x128xf32>
    %c32_41 = arith.constant 32 : index
    %c0_42 = arith.constant 0 : index
    %50 = vector.load %arg10[%c32_41, %c0_42] : memref<96x128xf32, #tpu.memory_space<vmem>>, vector<32x128xf32>
    %c35_43 = arith.constant 35 : index
    %c0_44 = arith.constant 0 : index
    %51 = vector.load %arg10[%c35_43, %c0_44] : memref<96x128xf32, #tpu.memory_space<vmem>>, vector<32x128xf32>
    %c38 = arith.constant 38 : index
    %c0_45 = arith.constant 0 : index
    %52 = vector.load %arg10[%c38, %c0_45] : memref<96x128xf32, #tpu.memory_space<vmem>>, vector<32x128xf32>
    %c41 = arith.constant 41 : index
    %c0_46 = arith.constant 0 : index
    %53 = vector.load %arg10[%c41, %c0_46] : memref<96x128xf32, #tpu.memory_space<vmem>>, vector<32x128xf32>
    %54 = tpu.concatenate %47, %48, %49, %50, %51, %52, %53 in 1 : vector<32x128xf32>, vector<32x128xf32>, vector<32x128xf32>, vector<32x128xf32>, vector<32x128xf32>, vector<32x128xf32>, vector<32x128xf32> -> vector<32x896xf32>
    %c1_47 = arith.constant 1 : index
    %c0_48 = arith.constant 0 : index
    %c0_49 = arith.constant 0 : index
    %55 = vector.load %arg3[%c1_47, %c0_48, %c0_49] : memref<5x896x128xf32, #tpu.memory_space<vmem>>, vector<1x896x128xf32>
    %56 = vector.shape_cast %55 : vector<1x896x128xf32> to vector<896x128xf32>
    %cst_50 = arith.constant dense<0.000000e+00> : vector<32x128xf32>
    %57 = tpu.matmul %54, %56, %cst_50 {dimension_numbers = #tpu.dot_dimension_numbers<[1], [0], [0], [1], [0, 0, 1, 1], [], []>} : vector<32x896xf32>, vector<896x128xf32>, vector<32x128xf32> -> vector<32x128xf32>
    %c1_51 = arith.constant 1 : index
    %c0_52 = arith.constant 0 : index
    %c0_53 = arith.constant 0 : index
    %58 = vector.load %arg4[%c1_51, %c0_52, %c0_53] : memref<5x1x128xf32, #tpu.memory_space<vmem>>, vector<1x1x128xf32>
    %59 = vector.shape_cast %58 : vector<1x1x128xf32> to vector<1x128xf32>
    %60 = vector.broadcast %59 : vector<1x128xf32> to vector<32x128xf32>
    %61 = arith.addf %57, %60 : vector<32x128xf32>
    %c2 = arith.constant 2 : index
    %62 = memref.load %arg1[%c2] : memref<11xf32, #tpu.memory_space<smem>>
    %cst_54 = arith.constant 0.000000e+00 : f32
    %63 = vector.broadcast %cst_54 : f32 to vector<32x128xf32>
    %64 = arith.cmpf oge, %61, %63 : vector<32x128xf32>
    %65 = vector.broadcast %62 : f32 to vector<32x128xf32>
    %66 = arith.mulf %65, %61 : vector<32x128xf32>
    %67 = arith.select %64, %61, %66 : vector<32x128xi1>, vector<32x128xf32>
    %c1_55 = arith.constant 1 : index
    %c0_56 = arith.constant 0 : index
    %c0_57 = arith.constant 0 : index
    %68 = vector.load %arg5[%c1_55, %c0_56, %c0_57] : memref<5x128x128xf32, #tpu.memory_space<vmem>>, vector<1x128x128xf32>
    %69 = vector.shape_cast %68 : vector<1x128x128xf32> to vector<128x128xf32>
    %cst_58 = arith.constant dense<0.000000e+00> : vector<32x128xf32>
    %70 = tpu.matmul %67, %69, %cst_58 {dimension_numbers = #tpu.dot_dimension_numbers<[1], [0], [0], [1], [0, 0, 1, 1], [], []>} : vector<32x128xf32>, vector<128x128xf32>, vector<32x128xf32> -> vector<32x128xf32>
    %c1_59 = arith.constant 1 : index
    %c0_60 = arith.constant 0 : index
    %c0_61 = arith.constant 0 : index
    %71 = vector.load %arg6[%c1_59, %c0_60, %c0_61] : memref<5x1x128xf32, #tpu.memory_space<vmem>>, vector<1x1x128xf32>
    %72 = vector.shape_cast %71 : vector<1x1x128xf32> to vector<1x128xf32>
    %73 = vector.broadcast %72 : vector<1x128xf32> to vector<32x128xf32>
    %74 = arith.addf %70, %73 : vector<32x128xf32>
    %c3 = arith.constant 3 : index
    %75 = memref.load %arg1[%c3] : memref<11xf32, #tpu.memory_space<smem>>
    %cst_62 = arith.constant 0.000000e+00 : f32
    %76 = vector.broadcast %cst_62 : f32 to vector<32x128xf32>
    %77 = arith.cmpf oge, %74, %76 : vector<32x128xf32>
    %78 = vector.broadcast %75 : f32 to vector<32x128xf32>
    %79 = arith.mulf %78, %74 : vector<32x128xf32>
    %80 = arith.select %77, %74, %79 : vector<32x128xi1>, vector<32x128xf32>
    %c32_63 = arith.constant 32 : index
    %c0_64 = arith.constant 0 : index
    %81 = vector.load %arg10[%c32_63, %c0_64] : memref<96x128xf32, #tpu.memory_space<vmem>>, vector<32x128xf32>
    %82 = arith.addf %80, %81 : vector<32x128xf32>
    %c32_65 = arith.constant 32 : index
    %c0_66 = arith.constant 0 : index
    %83 = vector.load %arg10[%c32_65, %c0_66] : memref<96x128xf32, #tpu.memory_space<vmem>>, vector<32x128xf32>
    tpu.vector_store %arg10[%c32_65, %c0_66], %82 {strides = array<i32>} : memref<96x128xf32, #tpu.memory_space<vmem>>, vector<32x128xf32>,
    %c17 = arith.constant 17 : index
    %c0_67 = arith.constant 0 : index
    %84 = vector.load %arg10[%c17, %c0_67] : memref<96x128xf32, #tpu.memory_space<vmem>>, vector<32x128xf32>
    %c22 = arith.constant 22 : index
    %c0_68 = arith.constant 0 : index
    %85 = vector.load %arg10[%c22, %c0_68] : memref<96x128xf32, #tpu.memory_space<vmem>>, vector<32x128xf32>
    %c27 = arith.constant 27 : index
    %c0_69 = arith.constant 0 : index
    %86 = vector.load %arg10[%c27, %c0_69] : memref<96x128xf32, #tpu.memory_space<vmem>>, vector<32x128xf32>
    %c32_70 = arith.constant 32 : index
    %c0_71 = arith.constant 0 : index
    %87 = vector.load %arg10[%c32_70, %c0_71] : memref<96x128xf32, #tpu.memory_space<vmem>>, vector<32x128xf32>
    %c37 = arith.constant 37 : index
    %c0_72 = arith.constant 0 : index
    %88 = vector.load %arg10[%c37, %c0_72] : memref<96x128xf32, #tpu.memory_space<vmem>>, vector<32x128xf32>
    %c42 = arith.constant 42 : index
    %c0_73 = arith.constant 0 : index
    %89 = vector.load %arg10[%c42, %c0_73] : memref<96x128xf32, #tpu.memory_space<vmem>>, vector<32x128xf32>
    %c47 = arith.constant 47 : index
    %c0_74 = arith.constant 0 : index
    %90 = vector.load %arg10[%c47, %c0_74] : memref<96x128xf32, #tpu.memory_space<vmem>>, vector<32x128xf32>
    %91 = tpu.concatenate %84, %85, %86, %87, %88, %89, %90 in 1 : vector<32x128xf32>, vector<32x128xf32>, vector<32x128xf32>, vector<32x128xf32>, vector<32x128xf32>, vector<32x128xf32>, vector<32x128xf32> -> vector<32x896xf32>
    %c2_75 = arith.constant 2 : index
    %c0_76 = arith.constant 0 : index
    %c0_77 = arith.constant 0 : index
    %92 = vector.load %arg3[%c2_75, %c0_76, %c0_77] : memref<5x896x128xf32, #tpu.memory_space<vmem>>, vector<1x896x128xf32>
    %93 = vector.shape_cast %92 : vector<1x896x128xf32> to vector<896x128xf32>
    %cst_78 = arith.constant dense<0.000000e+00> : vector<32x128xf32>
    %94 = tpu.matmul %91, %93, %cst_78 {dimension_numbers = #tpu.dot_dimension_numbers<[1], [0], [0], [1], [0, 0, 1, 1], [], []>} : vector<32x896xf32>, vector<896x128xf32>, vector<32x128xf32> -> vector<32x128xf32>
    %c2_79 = arith.constant 2 : index
    %c0_80 = arith.constant 0 : index
    %c0_81 = arith.constant 0 : index
    %95 = vector.load %arg4[%c2_79, %c0_80, %c0_81] : memref<5x1x128xf32, #tpu.memory_space<vmem>>, vector<1x1x128xf32>
    %96 = vector.shape_cast %95 : vector<1x1x128xf32> to vector<1x128xf32>
    %97 = vector.broadcast %96 : vector<1x128xf32> to vector<32x128xf32>
    %98 = arith.addf %94, %97 : vector<32x128xf32>
    %c4 = arith.constant 4 : index
    %99 = memref.load %arg1[%c4] : memref<11xf32, #tpu.memory_space<smem>>
    %cst_82 = arith.constant 0.000000e+00 : f32
    %100 = vector.broadcast %cst_82 : f32 to vector<32x128xf32>
    %101 = arith.cmpf oge, %98, %100 : vector<32x128xf32>
    %102 = vector.broadcast %99 : f32 to vector<32x128xf32>
    %103 = arith.mulf %102, %98 : vector<32x128xf32>
    %104 = arith.select %101, %98, %103 : vector<32x128xi1>, vector<32x128xf32>
    %c2_83 = arith.constant 2 : index
    %c0_84 = arith.constant 0 : index
    %c0_85 = arith.constant 0 : index
    %105 = vector.load %arg5[%c2_83, %c0_84, %c0_85] : memref<5x128x128xf32, #tpu.memory_space<vmem>>, vector<1x128x128xf32>
    %106 = vector.shape_cast %105 : vector<1x128x128xf32> to vector<128x128xf32>
    %cst_86 = arith.constant dense<0.000000e+00> : vector<32x128xf32>
    %107 = tpu.matmul %104, %106, %cst_86 {dimension_numbers = #tpu.dot_dimension_numbers<[1], [0], [0], [1], [0, 0, 1, 1], [], []>} : vector<32x128xf32>, vector<128x128xf32>, vector<32x128xf32> -> vector<32x128xf32>
    %c2_87 = arith.constant 2 : index
    %c0_88 = arith.constant 0 : index
    %c0_89 = arith.constant 0 : index
    %108 = vector.load %arg6[%c2_87, %c0_88, %c0_89] : memref<5x1x128xf32, #tpu.memory_space<vmem>>, vector<1x1x128xf32>
    %109 = vector.shape_cast %108 : vector<1x1x128xf32> to vector<1x128xf32>
    %110 = vector.broadcast %109 : vector<1x128xf32> to vector<32x128xf32>
    %111 = arith.addf %107, %110 : vector<32x128xf32>
    %c5 = arith.constant 5 : index
    %112 = memref.load %arg1[%c5] : memref<11xf32, #tpu.memory_space<smem>>
    %cst_90 = arith.constant 0.000000e+00 : f32
    %113 = vector.broadcast %cst_90 : f32 to vector<32x128xf32>
    %114 = arith.cmpf oge, %111, %113 : vector<32x128xf32>
    %115 = vector.broadcast %112 : f32 to vector<32x128xf32>
    %116 = arith.mulf %115, %111 : vector<32x128xf32>
    %117 = arith.select %114, %111, %116 : vector<32x128xi1>, vector<32x128xf32>
    %c32_91 = arith.constant 32 : index
    %c0_92 = arith.constant 0 : index
    %118 = vector.load %arg10[%c32_91, %c0_92] : memref<96x128xf32, #tpu.memory_space<vmem>>, vector<32x128xf32>
    %119 = arith.addf %117, %118 : vector<32x128xf32>
    %c32_93 = arith.constant 32 : index
    %c0_94 = arith.constant 0 : index
    %120 = vector.load %arg10[%c32_93, %c0_94] : memref<96x128xf32, #tpu.memory_space<vmem>>, vector<32x128xf32>
    tpu.vector_store %arg10[%c32_93, %c0_94], %119 {strides = array<i32>} : memref<96x128xf32, #tpu.memory_space<vmem>>, vector<32x128xf32>,
    %c11 = arith.constant 11 : index
    %c0_95 = arith.constant 0 : index
    %121 = vector.load %arg10[%c11, %c0_95] : memref<96x128xf32, #tpu.memory_space<vmem>>, vector<32x128xf32>
    %c18 = arith.constant 18 : index
    %c0_96 = arith.constant 0 : index
    %122 = vector.load %arg10[%c18, %c0_96] : memref<96x128xf32, #tpu.memory_space<vmem>>, vector<32x128xf32>
    %c25 = arith.constant 25 : index
    %c0_97 = arith.constant 0 : index
    %123 = vector.load %arg10[%c25, %c0_97] : memref<96x128xf32, #tpu.memory_space<vmem>>, vector<32x128xf32>
    %c32_98 = arith.constant 32 : index
    %c0_99 = arith.constant 0 : index
    %124 = vector.load %arg10[%c32_98, %c0_99] : memref<96x128xf32, #tpu.memory_space<vmem>>, vector<32x128xf32>
    %c39 = arith.constant 39 : index
    %c0_100 = arith.constant 0 : index
    %125 = vector.load %arg10[%c39, %c0_100] : memref<96x128xf32, #tpu.memory_space<vmem>>, vector<32x128xf32>
    %c46 = arith.constant 46 : index
    %c0_101 = arith.constant 0 : index
    %126 = vector.load %arg10[%c46, %c0_101] : memref<96x128xf32, #tpu.memory_space<vmem>>, vector<32x128xf32>
    %c53 = arith.constant 53 : index
    %c0_102 = arith.constant 0 : index
    %127 = vector.load %arg10[%c53, %c0_102] : memref<96x128xf32, #tpu.memory_space<vmem>>, vector<32x128xf32>
    %128 = tpu.concatenate %121, %122, %123, %124, %125, %126, %127 in 1 : vector<32x128xf32>, vector<32x128xf32>, vector<32x128xf32>, vector<32x128xf32>, vector<32x128xf32>, vector<32x128xf32>, vector<32x128xf32> -> vector<32x896xf32>
    %c3_103 = arith.constant 3 : index
    %c0_104 = arith.constant 0 : index
    %c0_105 = arith.constant 0 : index
    %129 = vector.load %arg3[%c3_103, %c0_104, %c0_105] : memref<5x896x128xf32, #tpu.memory_space<vmem>>, vector<1x896x128xf32>
    %130 = vector.shape_cast %129 : vector<1x896x128xf32> to vector<896x128xf32>
    %cst_106 = arith.constant dense<0.000000e+00> : vector<32x128xf32>
    %131 = tpu.matmul %128, %130, %cst_106 {dimension_numbers = #tpu.dot_dimension_numbers<[1], [0], [0], [1], [0, 0, 1, 1], [], []>} : vector<32x896xf32>, vector<896x128xf32>, vector<32x128xf32> -> vector<32x128xf32>
    %c3_107 = arith.constant 3 : index
    %c0_108 = arith.constant 0 : index
    %c0_109 = arith.constant 0 : index
    %132 = vector.load %arg4[%c3_107, %c0_108, %c0_109] : memref<5x1x128xf32, #tpu.memory_space<vmem>>, vector<1x1x128xf32>
    %133 = vector.shape_cast %132 : vector<1x1x128xf32> to vector<1x128xf32>
    %134 = vector.broadcast %133 : vector<1x128xf32> to vector<32x128xf32>
    %135 = arith.addf %131, %134 : vector<32x128xf32>
    %c6 = arith.constant 6 : index
    %136 = memref.load %arg1[%c6] : memref<11xf32, #tpu.memory_space<smem>>
    %cst_110 = arith.constant 0.000000e+00 : f32
    %137 = vector.broadcast %cst_110 : f32 to vector<32x128xf32>
    %138 = arith.cmpf oge, %135, %137 : vector<32x128xf32>
    %139 = vector.broadcast %136 : f32 to vector<32x128xf32>
    %140 = arith.mulf %139, %135 : vector<32x128xf32>
    %141 = arith.select %138, %135, %140 : vector<32x128xi1>, vector<32x128xf32>
    %c3_111 = arith.constant 3 : index
    %c0_112 = arith.constant 0 : index
    %c0_113 = arith.constant 0 : index
    %142 = vector.load %arg5[%c3_111, %c0_112, %c0_113] : memref<5x128x128xf32, #tpu.memory_space<vmem>>, vector<1x128x128xf32>
    %143 = vector.shape_cast %142 : vector<1x128x128xf32> to vector<128x128xf32>
    %cst_114 = arith.constant dense<0.000000e+00> : vector<32x128xf32>
    %144 = tpu.matmul %141, %143, %cst_114 {dimension_numbers = #tpu.dot_dimension_numbers<[1], [0], [0], [1], [0, 0, 1, 1], [], []>} : vector<32x128xf32>, vector<128x128xf32>, vector<32x128xf32> -> vector<32x128xf32>
    %c3_115 = arith.constant 3 : index
    %c0_116 = arith.constant 0 : index
    %c0_117 = arith.constant 0 : index
    %145 = vector.load %arg6[%c3_115, %c0_116, %c0_117] : memref<5x1x128xf32, #tpu.memory_space<vmem>>, vector<1x1x128xf32>
    %146 = vector.shape_cast %145 : vector<1x1x128xf32> to vector<1x128xf32>
    %147 = vector.broadcast %146 : vector<1x128xf32> to vector<32x128xf32>
    %148 = arith.addf %144, %147 : vector<32x128xf32>
    %c7 = arith.constant 7 : index
    %149 = memref.load %arg1[%c7] : memref<11xf32, #tpu.memory_space<smem>>
    %cst_118 = arith.constant 0.000000e+00 : f32
    %150 = vector.broadcast %cst_118 : f32 to vector<32x128xf32>
    %151 = arith.cmpf oge, %148, %150 : vector<32x128xf32>
    %152 = vector.broadcast %149 : f32 to vector<32x128xf32>
    %153 = arith.mulf %152, %148 : vector<32x128xf32>
    %154 = arith.select %151, %148, %153 : vector<32x128xi1>, vector<32x128xf32>
    %c32_119 = arith.constant 32 : index
    %c0_120 = arith.constant 0 : index
    %155 = vector.load %arg10[%c32_119, %c0_120] : memref<96x128xf32, #tpu.memory_space<vmem>>, vector<32x128xf32>
    %156 = arith.addf %154, %155 : vector<32x128xf32>
    %c32_121 = arith.constant 32 : index
    %c0_122 = arith.constant 0 : index
    %157 = vector.load %arg10[%c32_121, %c0_122] : memref<96x128xf32, #tpu.memory_space<vmem>>, vector<32x128xf32>
    tpu.vector_store %arg10[%c32_121, %c0_122], %156 {strides = array<i32>} : memref<96x128xf32, #tpu.memory_space<vmem>>, vector<32x128xf32>,
    %c5_123 = arith.constant 5 : index
    %c0_124 = arith.constant 0 : index
    %158 = vector.load %arg10[%c5_123, %c0_124] : memref<96x128xf32, #tpu.memory_space<vmem>>, vector<32x128xf32>
    %c14 = arith.constant 14 : index
    %c0_125 = arith.constant 0 : index
    %159 = vector.load %arg10[%c14, %c0_125] : memref<96x128xf32, #tpu.memory_space<vmem>>, vector<32x128xf32>
    %c23_126 = arith.constant 23 : index
    %c0_127 = arith.constant 0 : index
    %160 = vector.load %arg10[%c23_126, %c0_127] : memref<96x128xf32, #tpu.memory_space<vmem>>, vector<32x128xf32>
    %c32_128 = arith.constant 32 : index
    %c0_129 = arith.constant 0 : index
    %161 = vector.load %arg10[%c32_128, %c0_129] : memref<96x128xf32, #tpu.memory_space<vmem>>, vector<32x128xf32>
    %c41_130 = arith.constant 41 : index
    %c0_131 = arith.constant 0 : index
    %162 = vector.load %arg10[%c41_130, %c0_131] : memref<96x128xf32, #tpu.memory_space<vmem>>, vector<32x128xf32>
    %c50 = arith.constant 50 : index
    %c0_132 = arith.constant 0 : index
    %163 = vector.load %arg10[%c50, %c0_132] : memref<96x128xf32, #tpu.memory_space<vmem>>, vector<32x128xf32>
    %c59 = arith.constant 59 : index
    %c0_133 = arith.constant 0 : index
    %164 = vector.load %arg10[%c59, %c0_133] : memref<96x128xf32, #tpu.memory_space<vmem>>, vector<32x128xf32>
    %165 = tpu.concatenate %158, %159, %160, %161, %162, %163, %164 in 1 : vector<32x128xf32>, vector<32x128xf32>, vector<32x128xf32>, vector<32x128xf32>, vector<32x128xf32>, vector<32x128xf32>, vector<32x128xf32> -> vector<32x896xf32>
    %c4_134 = arith.constant 4 : index
    %c0_135 = arith.constant 0 : index
    %c0_136 = arith.constant 0 : index
    %166 = vector.load %arg3[%c4_134, %c0_135, %c0_136] : memref<5x896x128xf32, #tpu.memory_space<vmem>>, vector<1x896x128xf32>
    %167 = vector.shape_cast %166 : vector<1x896x128xf32> to vector<896x128xf32>
    %cst_137 = arith.constant dense<0.000000e+00> : vector<32x128xf32>
    %168 = tpu.matmul %165, %167, %cst_137 {dimension_numbers = #tpu.dot_dimension_numbers<[1], [0], [0], [1], [0, 0, 1, 1], [], []>} : vector<32x896xf32>, vector<896x128xf32>, vector<32x128xf32> -> vector<32x128xf32>
    %c4_138 = arith.constant 4 : index
    %c0_139 = arith.constant 0 : index
    %c0_140 = arith.constant 0 : index
    %169 = vector.load %arg4[%c4_138, %c0_139, %c0_140] : memref<5x1x128xf32, #tpu.memory_space<vmem>>, vector<1x1x128xf32>
    %170 = vector.shape_cast %169 : vector<1x1x128xf32> to vector<1x128xf32>
    %171 = vector.broadcast %170 : vector<1x128xf32> to vector<32x128xf32>
    %172 = arith.addf %168, %171 : vector<32x128xf32>
    %c8 = arith.constant 8 : index
    %173 = memref.load %arg1[%c8] : memref<11xf32, #tpu.memory_space<smem>>
    %cst_141 = arith.constant 0.000000e+00 : f32
    %174 = vector.broadcast %cst_141 : f32 to vector<32x128xf32>
    %175 = arith.cmpf oge, %172, %174 : vector<32x128xf32>
    %176 = vector.broadcast %173 : f32 to vector<32x128xf32>
    %177 = arith.mulf %176, %172 : vector<32x128xf32>
    %178 = arith.select %175, %172, %177 : vector<32x128xi1>, vector<32x128xf32>
    %c4_142 = arith.constant 4 : index
    %c0_143 = arith.constant 0 : index
    %c0_144 = arith.constant 0 : index
    %179 = vector.load %arg5[%c4_142, %c0_143, %c0_144] : memref<5x128x128xf32, #tpu.memory_space<vmem>>, vector<1x128x128xf32>
    %180 = vector.shape_cast %179 : vector<1x128x128xf32> to vector<128x128xf32>
    %cst_145 = arith.constant dense<0.000000e+00> : vector<32x128xf32>
    %181 = tpu.matmul %178, %180, %cst_145 {dimension_numbers = #tpu.dot_dimension_numbers<[1], [0], [0], [1], [0, 0, 1, 1], [], []>} : vector<32x128xf32>, vector<128x128xf32>, vector<32x128xf32> -> vector<32x128xf32>
    %c4_146 = arith.constant 4 : index
    %c0_147 = arith.constant 0 : index
    %c0_148 = arith.constant 0 : index
    %182 = vector.load %arg6[%c4_146, %c0_147, %c0_148] : memref<5x1x128xf32, #tpu.memory_space<vmem>>, vector<1x1x128xf32>
    %183 = vector.shape_cast %182 : vector<1x1x128xf32> to vector<1x128xf32>
    %184 = vector.broadcast %183 : vector<1x128xf32> to vector<32x128xf32>
    %185 = arith.addf %181, %184 : vector<32x128xf32>
    %c9 = arith.constant 9 : index
    %186 = memref.load %arg1[%c9] : memref<11xf32, #tpu.memory_space<smem>>
    %cst_149 = arith.constant 0.000000e+00 : f32
    %187 = vector.broadcast %cst_149 : f32 to vector<32x128xf32>
    %188 = arith.cmpf oge, %185, %187 : vector<32x128xf32>
    %189 = vector.broadcast %186 : f32 to vector<32x128xf32>
    %190 = arith.mulf %189, %185 : vector<32x128xf32>
    %191 = arith.select %188, %185, %190 : vector<32x128xi1>, vector<32x128xf32>
    %c32_150 = arith.constant 32 : index
    %c0_151 = arith.constant 0 : index
    %192 = vector.load %arg10[%c32_150, %c0_151] : memref<96x128xf32, #tpu.memory_space<vmem>>, vector<32x128xf32>
    %193 = arith.addf %191, %192 : vector<32x128xf32>
    %c32_152 = arith.constant 32 : index
    %c0_153 = arith.constant 0 : index
    %194 = vector.load %arg10[%c32_152, %c0_153] : memref<96x128xf32, #tpu.memory_space<vmem>>, vector<32x128xf32>
    tpu.vector_store %arg10[%c32_152, %c0_153], %193 {strides = array<i32>} : memref<96x128xf32, #tpu.memory_space<vmem>>, vector<32x128xf32>,
    %c31_154 = arith.constant 31 : index
    %c0_155 = arith.constant 0 : index
    %195 = tpu.strided_load %arg10[%c31_154, %c0_155] {strides = array<i32: 2, 1>} : memref<96x128xf32, #tpu.memory_space<vmem>>, vector<16x128xf32>
    %c32_156 = arith.constant 32 : index
    %c0_157 = arith.constant 0 : index
    %196 = tpu.strided_load %arg10[%c32_156, %c0_157] {strides = array<i32: 2, 1>} : memref<96x128xf32, #tpu.memory_space<vmem>>, vector<16x128xf32>
    %c33_158 = arith.constant 33 : index
    %c0_159 = arith.constant 0 : index
    %197 = tpu.strided_load %arg10[%c33_158, %c0_159] {strides = array<i32: 2, 1>} : memref<96x128xf32, #tpu.memory_space<vmem>>, vector<16x128xf32>
    %c34_160 = arith.constant 34 : index
    %c0_161 = arith.constant 0 : index
    %198 = tpu.strided_load %arg10[%c34_160, %c0_161] {strides = array<i32: 2, 1>} : memref<96x128xf32, #tpu.memory_space<vmem>>, vector<16x128xf32>
    %199 = tpu.concatenate %195, %196, %197, %198 in 1 : vector<16x128xf32>, vector<16x128xf32>, vector<16x128xf32>, vector<16x128xf32> -> vector<16x512xf32>
    %c0_162 = arith.constant 0 : index
    %c0_163 = arith.constant 0 : index
    %200 = vector.load %arg7[%c0_162, %c0_163] : memref<512x128xf32, #tpu.memory_space<vmem>>, vector<512x128xf32>
    %cst_164 = arith.constant dense<0.000000e+00> : vector<16x128xf32>
    %201 = tpu.matmul %199, %200, %cst_164 {dimension_numbers = #tpu.dot_dimension_numbers<[1], [0], [0], [1], [0, 0, 1, 1], [], []>} : vector<16x512xf32>, vector<512x128xf32>, vector<16x128xf32> -> vector<16x128xf32>
    %c0_165 = arith.constant 0 : index
    %c0_166 = arith.constant 0 : index
    %202 = vector.load %arg8[%c0_165, %c0_166] : memref<1x128xf32, #tpu.memory_space<vmem>>, vector<1x128xf32>
    %203 = vector.broadcast %202 : vector<1x128xf32> to vector<16x128xf32>
    %204 = arith.addf %201, %203 : vector<16x128xf32>
    %c10 = arith.constant 10 : index
    %205 = memref.load %arg1[%c10] : memref<11xf32, #tpu.memory_space<smem>>
    %cst_167 = arith.constant 0.000000e+00 : f32
    %206 = vector.broadcast %cst_167 : f32 to vector<16x128xf32>
    %207 = arith.cmpf oge, %204, %206 : vector<16x128xf32>
    %208 = vector.broadcast %205 : f32 to vector<16x128xf32>
    %209 = arith.mulf %208, %204 : vector<16x128xf32>
    %210 = arith.select %207, %204, %209 : vector<16x128xi1>, vector<16x128xf32>
    %c0_168 = arith.constant 0 : index
    %c0_169 = arith.constant 0 : index
    %c0_170 = arith.constant 0 : index
    %211 = vector.load %arg9[%c0_168, %c0_169, %c0_170] : memref<1x16x128xf32, #tpu.memory_space<vmem>>, vector<1x16x128xf32>
    %212 = vector.shape_cast %211 : vector<1x16x128xf32> to vector<16x128xf32>
    %213 = vector.shape_cast %210 : vector<16x128xf32> to vector<1x16x128xf32>
    tpu.vector_store %arg9[%c0_168, %c0_169, %c0_170], %213 {strides = array<i32>} : memref<1x16x128xf32, #tpu.memory_space<vmem>>, vector<1x16x128xf32>,
    return
  }
  func.func @transform_0(%arg0: i32) -> i32 {
    %c0_i32 = arith.constant 0 : i32
    %c0_i32_0 = arith.constant 0 : i32
    return %c0_i32 : i32
  }
  func.func @transform_2(%arg0: i32) -> (i32, i32, i32) {
    %c0_i32 = arith.constant 0 : i32
    %c0_i32_0 = arith.constant 0 : i32
    %c0_i32_1 = arith.constant 0 : i32
    %c0_i32_2 = arith.constant 0 : i32
    return %c0_i32, %c0_i32_0, %c0_i32_1 : i32, i32, i32
  }
  func.func @transform_3(%arg0: i32) -> (i32, i32, i32) {
    %c0_i32 = arith.constant 0 : i32
    %c0_i32_0 = arith.constant 0 : i32
    %c0_i32_1 = arith.constant 0 : i32
    %c0_i32_2 = arith.constant 0 : i32
    return %c0_i32, %c0_i32_0, %c0_i32_1 : i32, i32, i32
  }
  func.func @transform_4(%arg0: i32) -> (i32, i32, i32) {
    %c0_i32 = arith.constant 0 : i32
    %c0_i32_0 = arith.constant 0 : i32
    %c0_i32_1 = arith.constant 0 : i32
    %c0_i32_2 = arith.constant 0 : i32
    return %c0_i32, %c0_i32_0, %c0_i32_1 : i32, i32, i32
  }
  func.func @transform_5(%arg0: i32) -> (i32, i32, i32) {
    %c0_i32 = arith.constant 0 : i32
    %c0_i32_0 = arith.constant 0 : i32
    %c0_i32_1 = arith.constant 0 : i32
    %c0_i32_2 = arith.constant 0 : i32
    return %c0_i32, %c0_i32_0, %c0_i32_1 : i32, i32, i32
  }
  func.func @transform_6(%arg0: i32) -> (i32, i32) {
    %c0_i32 = arith.constant 0 : i32
    %c0_i32_0 = arith.constant 0 : i32
    %c0_i32_1 = arith.constant 0 : i32
    return %c0_i32, %c0_i32_0 : i32, i32
  }
  func.func @transform_7(%arg0: i32) -> (i32, i32) {
    %c0_i32 = arith.constant 0 : i32
    %c0_i32_0 = arith.constant 0 : i32
    %c0_i32_1 = arith.constant 0 : i32
    return %c0_i32, %c0_i32_0 : i32, i32
  }
  func.func @transform_8(%arg0: i32) -> (i32, i32, i32) {
    %c0_i32 = arith.constant 0 : i32
    %c0_i32_0 = arith.constant 0 : i32
    %c0_i32_1 = arith.constant 0 : i32
    return %arg0, %c0_i32, %c0_i32_0 : i32, i32, i32
  }
}

</mosaic_0001>

<llo_original>
// kernel: res_encoder_block.1
$region0: #{res_encoder_block.1}
  #allocation0 [shape = 'u32[]', space=smem, size = 0x4, offset = 0x4, fixed_abs, tag = 'smem constant byte address 0x4 - core index']
  #allocation1 [shape = 'u32[144,128]{1,0:T(1,128)}', space=vmem, size = 0x12000, scoped, tag = 'internal scratch']
  #allocation2 [shape = 'f32[96,128]{1,0:T(8,128)}', space=vmem, size = 0xc000, scoped, tag = 'scratch operand']
  #allocation3 [shape = 's32[1]{0}', space=sflag, size = 0x4, scoped, tag = 'scratch operand']
  #allocation6 [shape = 's32[]', space=sflag, size = 0x4, offset = 0, fixed_abs, tag = 'sflag constant byte address 0x0 - dummy sync flag']
  %s0 = inlined_call_operand.vmem [shape: f32[11], index: 0, kind: input, shape index: {}]
  %s1 = inlined_call_operand.vmem [shape: f32[2,32,128], index: 1, kind: input, shape index: {}]
  %s2 = inlined_call_operand.vmem [shape: f32[5,896,128], index: 2, kind: input, shape index: {}]
  %s3 = inlined_call_operand.vmem [shape: f32[5,1,128], index: 3, kind: input, shape index: {}]
  %s4 = inlined_call_operand.vmem [shape: f32[5,128,128], index: 4, kind: input, shape index: {}]
  %s5 = inlined_call_operand.vmem [shape: f32[5,1,128], index: 5, kind: input, shape index: {}]
  %s6 = inlined_call_operand.vmem [shape: f32[512,128], index: 6, kind: input, shape index: {}]
  %s7 = inlined_call_operand.vmem [shape: f32[1,128], index: 7, kind: input, shape index: {}]
  %s8 = inlined_call_operand.vmem [shape: f32[2,16,128], index: 8, kind: output, shape index: {}]
  %s9 = sld [smem:[#allocation0]]
  $region99: #{res_encoder_block.1} parent=0
    _
  %s11 = ssub.s32 1, %s9
  %s12 = scalar_select 0, %s11, %s9
  $region1: #{res_encoder_block.1} parent=0
    #allocation4 [shape = 'u8[512]{0}', space=smem, size = 0x200, scoped, tag = 'input window, operand 0, single buffered']
    #allocation5 [shape = 's32[2]{0}', space=sflag, size = 0x8, scoped, tag = 'scoped memory for res_encoder_block.1']
    %13 = vsyncpa [#allocation5], 0
    loop: start=0, step=1, limit=4
    $region2: #{res_encoder_block.1} parent=1 // loop_pre_header
      _
    $region3: #{res_encoder_block.1} parent=1 // loop_header
      %s15 = sphi 0, %s19
      %p16 = scmp.ge.s32.totalorder %s15, 4
      %s23 = sphi 0, %s23
      %s25 = sphi 0, %s23
      %s26 = sphi 0, %s25
      %s40 = sphi 0, %s26
      %s44 = sphi 0, %s44
      %s46 = sphi 0, %s44
      %s47 = sphi 0, %s46
      %s61 = sphi 0, %s47
      %s65 = sphi 0, %s65
      %s67 = sphi 0, %s65
      %s68 = sphi 0, %s67
      %s82 = sphi 0, %s68
      %s86 = sphi 0, %s86
      %s88 = sphi 0, %s86
      %s89 = sphi 0, %s88
      %s103 = sphi 0, %s89
      %s107 = sphi 0, %s107
      %s109 = sphi 0, %s107
      %s110 = sphi 0, %s109
      %s124 = sphi 0, %s110
      %s128 = sphi 0, %s128
      %s130 = sphi 0, %s128
      %s131 = sphi 0, %s130
      %s145 = sphi 0, %s131
      %s149 = sphi 0, %s149
      %s151 = sphi 0, %s149
      %s152 = sphi 0, %s151
      %s166 = sphi 0, %s152
      %s172 = sphi 0, %s174
      %s175 = sphi 0, %s172
      %s176 = sphi 0, %s175
      %s192 = sphi 0, %s176
    $region4: #{res_encoder_block.1} parent=1 // loop_header_branch
      %18 = sbr.rel (%p16) target = $region8
    $region5: #{res_encoder_block.1} parent=1 // loop_body
      %s20 = ssub.s32 %s15, 1
      %s21 = ssub.s32 %s15, 2
      %s22 = sadd.s32 %s15, 1
      %s24 = sadd.s32 %s23, 1
      %p27 = scmp.eq.s32.totalorder %s15, 1
      %p28 = scmp.ne.s32.totalorder %s23, %s25
      %p29 = scmp.eq.s32.totalorder %s15, 0
      %p30 = por %p28, %p29
      %p31 = scmp.ne.s32.totalorder %s23, %s25
      %p32 = scmp.eq.s32.totalorder %s20, 1
      %p33 = por %p31, %p32
      %p34 = scmp.ne.s32.totalorder %s25, %s26
      %p35 = scmp.eq.s32.totalorder %s20, 0
      %p36 = por %p34, %p35
      %p37 = scmp.ne.s32.totalorder %s25, %s26
      %p38 = scmp.eq.s32.totalorder %s21, 1
      %p39 = por %p37, %p38
      %p41 = scmp.ne.s32.totalorder %s26, %s40
      %p42 = scmp.eq.s32.totalorder %s21, 0
      %p43 = por %p41, %p42
      %s45 = sadd.s32 %s44, 1
      %p48 = scmp.eq.s32.totalorder %s15, 1
      %p49 = scmp.ne.s32.totalorder %s44, %s46
      %p50 = scmp.eq.s32.totalorder %s15, 0
      %p51 = por %p49, %p50
      %p52 = scmp.ne.s32.totalorder %s44, %s46
      %p53 = scmp.eq.s32.totalorder %s20, 1
      %p54 = por %p52, %p53
      %p55 = scmp.ne.s32.totalorder %s46, %s47
      %p56 = scmp.eq.s32.totalorder %s20, 0
      %p57 = por %p55, %p56
      %p58 = scmp.ne.s32.totalorder %s46, %s47
      %p59 = scmp.eq.s32.totalorder %s21, 1
      %p60 = por %p58, %p59
      %p62 = scmp.ne.s32.totalorder %s47, %s61
      %p63 = scmp.eq.s32.totalorder %s21, 0
      %p64 = por %p62, %p63
      %s66 = sadd.s32 %s65, 1
      %p69 = scmp.eq.s32.totalorder %s15, 1
      %p70 = scmp.ne.s32.totalorder %s65, %s67
      %p71 = scmp.eq.s32.totalorder %s15, 0
      %p72 = por %p70, %p71
      %p73 = scmp.ne.s32.totalorder %s65, %s67
      %p74 = scmp.eq.s32.totalorder %s20, 1
      %p75 = por %p73, %p74
      %p76 = scmp.ne.s32.totalorder %s67, %s68
      %p77 = scmp.eq.s32.totalorder %s20, 0
      %p78 = por %p76, %p77
      %p79 = scmp.ne.s32.totalorder %s67, %s68
      %p80 = scmp.eq.s32.totalorder %s21, 1
      %p81 = por %p79, %p80
      %p83 = scmp.ne.s32.totalorder %s68, %s82
      %p84 = scmp.eq.s32.totalorder %s21, 0
      %p85 = por %p83, %p84
      %s87 = sadd.s32 %s86, 1
      %p90 = scmp.eq.s32.totalorder %s15, 1
      %p91 = scmp.ne.s32.totalorder %s86, %s88
      %p92 = scmp.eq.s32.totalorder %s15, 0
      %p93 = por %p91, %p92
      %p94 = scmp.ne.s32.totalorder %s86, %s88
      %p95 = scmp.eq.s32.totalorder %s20, 1
      %p96 = por %p94, %p95
      %p97 = scmp.ne.s32.totalorder %s88, %s89
      %p98 = scmp.eq.s32.totalorder %s20, 0
      %p99 = por %p97, %p98
      %p100 = scmp.ne.s32.totalorder %s88, %s89
      %p101 = scmp.eq.s32.totalorder %s21, 1
      %p102 = por %p100, %p101
      %p104 = scmp.ne.s32.totalorder %s89, %s103
      %p105 = scmp.eq.s32.totalorder %s21, 0
      %p106 = por %p104, %p105
      %s108 = sadd.s32 %s107, 1
      %p111 = scmp.eq.s32.totalorder %s15, 1
      %p112 = scmp.ne.s32.totalorder %s107, %s109
      %p113 = scmp.eq.s32.totalorder %s15, 0
      %p114 = por %p112, %p113
      %p115 = scmp.ne.s32.totalorder %s107, %s109
      %p116 = scmp.eq.s32.totalorder %s20, 1
      %p117 = por %p115, %p116
      %p118 = scmp.ne.s32.totalorder %s109, %s110
      %p119 = scmp.eq.s32.totalorder %s20, 0
      %p120 = por %p118, %p119
      %p121 = scmp.ne.s32.totalorder %s109, %s110
      %p122 = scmp.eq.s32.totalorder %s21, 1
      %p123 = por %p121, %p122
      %p125 = scmp.ne.s32.totalorder %s110, %s124
      %p126 = scmp.eq.s32.totalorder %s21, 0
      %p127 = por %p125, %p126
      %s129 = sadd.s32 %s128, 1
      %p132 = scmp.eq.s32.totalorder %s15, 1
      %p133 = scmp.ne.s32.totalorder %s128, %s130
      %p134 = scmp.eq.s32.totalorder %s15, 0
      %p135 = por %p133, %p134
      %p136 = scmp.ne.s32.totalorder %s128, %s130
      %p137 = scmp.eq.s32.totalorder %s20, 1
      %p138 = por %p136, %p137
      %p139 = scmp.ne.s32.totalorder %s130, %s131
      %p140 = scmp.eq.s32.totalorder %s20, 0
      %p141 = por %p139, %p140
      %p142 = scmp.ne.s32.totalorder %s130, %s131
      %p143 = scmp.eq.s32.totalorder %s21, 1
      %p144 = por %p142, %p143
      %p146 = scmp.ne.s32.totalorder %s131, %s145
      %p147 = scmp.eq.s32.totalorder %s21, 0
      %p148 = por %p146, %p147
      %s150 = sadd.s32 %s149, 1
      %p153 = scmp.eq.s32.totalorder %s15, 1
      %p154 = scmp.ne.s32.totalorder %s149, %s151
      %p155 = scmp.eq.s32.totalorder %s15, 0
      %p156 = por %p154, %p155
      %p157 = scmp.ne.s32.totalorder %s149, %s151
      %p158 = scmp.eq.s32.totalorder %s20, 1
      %p159 = por %p157, %p158
      %p160 = scmp.ne.s32.totalorder %s151, %s152
      %p161 = scmp.eq.s32.totalorder %s20, 0
      %p162 = por %p160, %p161
      %p163 = scmp.ne.s32.totalorder %s151, %s152
      %p164 = scmp.eq.s32.totalorder %s21, 1
      %p165 = por %p163, %p164
      %p167 = scmp.ne.s32.totalorder %s152, %s166
      %p168 = scmp.eq.s32.totalorder %s21, 0
      %p169 = por %p167, %p168
      %s170 = ssub.s32 %s15, %s22
      %p171 = scmp.eq.s32.totalorder %s170, 0
      %s173 = sadd.s32 %s172, 1
      %s174 = scalar_select %p171, %s172, %s173
      %p177 = pneg %p171
      %p178 = scmp.eq.s32.totalorder %s15, 1
      %p179 = por %p177, %p178
      %p180 = scmp.ne.s32.totalorder %s172, %s175
      %p181 = scmp.eq.s32.totalorder %s15, 0
      %p182 = por %p180, %p181
      %p183 = scmp.ne.s32.totalorder %s172, %s175
      %p184 = scmp.eq.s32.totalorder %s20, 1
      %p185 = por %p183, %p184
      %p186 = scmp.ne.s32.totalorder %s175, %s176
      %p187 = scmp.eq.s32.totalorder %s20, 0
      %p188 = por %p186, %p187
      %p189 = scmp.ne.s32.totalorder %s175, %s176
      %p190 = scmp.eq.s32.totalorder %s21, 1
      %p191 = por %p189, %p190
      %p193 = scmp.ne.s32.totalorder %s176, %s192
      %p194 = scmp.eq.s32.totalorder %s21, 0
      %p195 = por %p193, %p194
      %p196 = scmp.le.s32.totalorder 1, %s15
      %p197 = scmp.lt.s32.totalorder %s15, 3
      %p198 = pnand %p196, %p197
      %p199 = pneg %p198
      // Predicated region
      $region9: #{res_encoder_block.1} parent=5 // pred_check
        _
      $region10: #{res_encoder_block.1} parent=5 // pred_check_branch
        %201 = sbr.rel (%p198) target = $region12
      $region11: #{res_encoder_block.1} parent=5 // pred_region
        %s202 = ssub.s32 %s15, 1
        // Predicated region
        $region13: #{res_encoder_block.1} parent=11 // pred_check
          %p203 = pneg %p36
        $region14: #{res_encoder_block.1} parent=11 // pred_check_branch
          %205 = sbr.rel (%p203) target = $region16
        $region15: #{res_encoder_block.1} parent=11 // pred_region
          %s207 = ssub.s32 16, 16
          %208 = vsyncadd [#allocation5], %s207
          %s210 = sshll.u32 %s0, 4
          %s211 = int_to_ptr.vmem [resolvable:$true] %s210
          %213 = dma.vmem_to_smem %s211, 16, [#allocation4], [#allocation5]
        $region16: #{res_encoder_block.1} parent=11 // pred_fallthru
          _
        // Predicated region
        $region17: #{res_encoder_block.1} parent=11 // pred_check
          %p214 = pneg %p57
        $region18: #{res_encoder_block.1} parent=11 // pred_check_branch
          %216 = sbr.rel (%p214) target = $region20
        $region19: #{res_encoder_block.1} parent=11 // pred_region
          _
        $region20: #{res_encoder_block.1} parent=11 // pred_fallthru
          _
        // Predicated region
        $region21: #{res_encoder_block.1} parent=11 // pred_check
          %p217 = pneg %p78
        $region22: #{res_encoder_block.1} parent=11 // pred_check_branch
          %219 = sbr.rel (%p217) target = $region24
        $region23: #{res_encoder_block.1} parent=11 // pred_region
          _
        $region24: #{res_encoder_block.1} parent=11 // pred_fallthru
          _
        // Predicated region
        $region25: #{res_encoder_block.1} parent=11 // pred_check
          %p220 = pneg %p99
        $region26: #{res_encoder_block.1} parent=11 // pred_check_branch
          %222 = sbr.rel (%p220) target = $region28
        $region27: #{res_encoder_block.1} parent=11 // pred_region
          _
        $region28: #{res_encoder_block.1} parent=11 // pred_fallthru
          _
        // Predicated region
        $region29: #{res_encoder_block.1} parent=11 // pred_check
          %p223 = pneg %p120
        $region30: #{res_encoder_block.1} parent=11 // pred_check_branch
          %225 = sbr.rel (%p223) target = $region32
        $region31: #{res_encoder_block.1} parent=11 // pred_region
          _
        $region32: #{res_encoder_block.1} parent=11 // pred_fallthru
          _
        // Predicated region
        $region33: #{res_encoder_block.1} parent=11 // pred_check
          %p226 = pneg %p141
        $region34: #{res_encoder_block.1} parent=11 // pred_check_branch
          %228 = sbr.rel (%p226) target = $region36
        $region35: #{res_encoder_block.1} parent=11 // pred_region
          _
        $region36: #{res_encoder_block.1} parent=11 // pred_fallthru
          _
        // Predicated region
        $region37: #{res_encoder_block.1} parent=11 // pred_check
          %p229 = pneg %p162
        $region38: #{res_encoder_block.1} parent=11 // pred_check_branch
          %231 = sbr.rel (%p229) target = $region40
        $region39: #{res_encoder_block.1} parent=11 // pred_region
          _
        $region40: #{res_encoder_block.1} parent=11 // pred_fallthru
          _
      $region12: #{res_encoder_block.1} parent=5 // pred_fallthru
        _
      %p232 = scmp.lt.s32.totalorder %s15, 2
      // Predicated region
      $region41: #{res_encoder_block.1} parent=5 // pred_check
        %p233 = pneg %p232
      $region42: #{res_encoder_block.1} parent=5 // pred_check_branch
        %235 = sbr.rel (%p233) target = $region44
      $region43: #{res_encoder_block.1} parent=5 // pred_region
        _
      $region44: #{res_encoder_block.1} parent=5 // pred_fallthru
        _
      %p236 = scmp.le.s32.totalorder 1, %s15
      %p237 = scmp.lt.s32.totalorder %s15, 3
      %p238 = pnand %p236, %p237
      %p239 = pneg %p238
      // Predicated region
      $region45: #{res_encoder_block.1} parent=5 // pred_check
        _
      $region46: #{res_encoder_block.1} parent=5 // pred_check_branch
        %241 = sbr.rel (%p238) target = $region48
      $region47: #{res_encoder_block.1} parent=5 // pred_region
        %s242 = ssub.s32 %s15, 1
        // Predicated region
        $region49: #{res_encoder_block.1} parent=47 // pred_check
          %p243 = pneg %p36
        $region50: #{res_encoder_block.1} parent=47 // pred_check_branch
          %245 = sbr.rel (%p243) target = $region52
        $region51: #{res_encoder_block.1} parent=47 // pred_region
          %246 = dma.done [#allocation5], 16
        $region52: #{res_encoder_block.1} parent=47 // pred_fallthru
          _
        %247 = sfence
        %p248 = pneg %p36
        %p249 = pneg %p33
        %p250 = pneg %p57
        %p251 = pneg %p54
        %p252 = pneg %p78
        %p253 = pneg %p75
        %p254 = pneg %p99
        %p255 = pneg %p96
        %p256 = pneg %p120
        %p257 = pneg %p117
        %p258 = pneg %p141
        %p259 = pneg %p138
        %p260 = pneg %p162
        %p261 = pneg %p159
        %p262 = pneg %p188
        %p263 = pneg %p185
        %p264 = scmp.lt.s32.totalorder %s20, 1
        %s265 = scalar_select %p264, %s20, 1
        %s266 = smul.addr %s265, 2
        %s267 = smul.addr %s266, 8
        %s268 = scalar_lea.vmem %s8, %s267
        %p269 = scmp.lt.s32.totalorder %s20, 1
        %s270 = scalar_select %p269, %s20, 1
        %s271 = smul.addr %s270, 2
        %s272 = smul.addr %s271, 8
        %s273 = scalar_lea.vmem %s8, %s272
        %s274 = smul.u32 %s20, 32
        %s275 = scalar_lea.vmem %s1, %s274
        %s276 = scalar_lea.vmem [#allocation2], 32
        %p278 = scmp.lt.u32.totalorder 32, 8
        %p279 = pneg %p278
        // Predicated region
        $region53: #{res_encoder_block.1} parent=47 // pred_check
          _
        $region54: #{res_encoder_block.1} parent=47 // pred_check_branch
          %281 = sbr.rel (%p278) target = $region56
        $region55: #{res_encoder_block.1} parent=47 // pred_region
          %s296 = sand.u32 32, 7
          %p297 = scmp.eq.s32.totalorder %s296, 0
          // Predicated region
          $region68: #{res_encoder_block.1} parent=55 // pred_check
            %p298 = pneg %p297
          $region69: #{res_encoder_block.1} parent=55 // pred_check_branch
            %300 = sbr.rel (%p298) target = $region71
          $region70: #{res_encoder_block.1} parent=55 // pred_region
            loop: start=0, step=1, limit=1
            $region72: #{res_encoder_block.1} parent=70 // loop_pre_header
              _
            $region73: #{res_encoder_block.1} parent=70 // loop_header
              %s302 = sphi 0, %s306
              %p303 = scmp.ge.s32.totalorder %s302, 1
              %s307 = sphi %s275, %s275
              %s308 = sphi %s276, %s276
            $region74: #{res_encoder_block.1} parent=70 // loop_header_branch
              %305 = sbr.rel (%p303) target = $region78
            $region75: #{res_encoder_block.1} parent=70 // loop_body
              %v309 = vld [vmem:[%s307] sm:$0xff]
              %310 = vst [vmem:[%s308] sm:$0xff] %v309
              %v311 = vld [vmem:[%s307 + $0x8] sm:$0xff]
              %312 = vst [vmem:[%s308 + $0x8] sm:$0xff] %v311
              %v313 = vld [vmem:[%s307 + $0x10] sm:$0xff]
              %314 = vst [vmem:[%s308 + $0x10] sm:$0xff] %v313
              %v315 = vld [vmem:[%s307 + $0x18] sm:$0xff]
              %316 = vst [vmem:[%s308 + $0x18] sm:$0xff] %v315
            $region76: #{res_encoder_block.1} parent=70 // loop_footer
              %s306 = sadd.s32 1, %s302
            $region77: #{res_encoder_block.1} parent=70 // loop_footer_branch
              %301 = sbr.rel target = $region73
            $region78: #{res_encoder_block.1} parent=70 // loop_exit
              _
          $region71: #{res_encoder_block.1} parent=55 // pred_fallthru
            _
          %p317 = pneg %p297
          // Predicated region
          $region79: #{res_encoder_block.1} parent=55 // pred_check
            _
          $region80: #{res_encoder_block.1} parent=55 // pred_check_branch
            %319 = sbr.rel (%p297) target = $region82
          $region81: #{res_encoder_block.1} parent=55 // pred_region
            %s320 = sand.u32 32, 7
          $region82: #{res_encoder_block.1} parent=55 // pred_fallthru
            _
        $region56: #{res_encoder_block.1} parent=47 // pred_fallthru
          _
        // Predicated region
        $region57: #{res_encoder_block.1} parent=47 // pred_check
          %p282 = pneg %p278
        $region58: #{res_encoder_block.1} parent=47 // pred_check_branch
          %284 = sbr.rel (%p282) target = $region60
        $region59: #{res_encoder_block.1} parent=47 // pred_region
          %s285 = sshllo.u32 0, 32
          loop: start=0, step=1, limit=1
          $region61: #{res_encoder_block.1} parent=59 // loop_pre_header
            _
          $region62: #{res_encoder_block.1} parent=59 // loop_header
            %s287 = sphi 0, %s291
            %p288 = scmp.ge.s32.totalorder %s287, 1
            %s292 = sphi %s275, %s275
            %s293 = sphi %s276, %s276
          $region63: #{res_encoder_block.1} parent=59 // loop_header_branch
            %290 = sbr.rel (%p288) target = $region67
          $region64: #{res_encoder_block.1} parent=59 // loop_body
            %v294 = vld [vmem:[%s292] sm:%s285]
            %295 = vst [vmem:[%s293] sm:%s285] %v294
          $region65: #{res_encoder_block.1} parent=59 // loop_footer
            %s291 = sadd.s32 1, %s287
          $region66: #{res_encoder_block.1} parent=59 // loop_footer_branch
            %286 = sbr.rel target = $region62
          $region67: #{res_encoder_block.1} parent=59 // loop_exit
            _
        $region60: #{res_encoder_block.1} parent=47 // pred_fallthru
          _
        // Predicated region
        $region83: #{res_encoder_block.1} parent=47 // pred_check
          _
        $region84: #{res_encoder_block.1} parent=47 // pred_check_branch
          %323 = sbr.rel (0) target = $region86
        $region85: #{res_encoder_block.1} parent=47 // pred_region
          %324 = vsyncadd [#allocation3], 512
        $region86: #{res_encoder_block.1} parent=47 // pred_fallthru
          _
        %325 = vst [vmem:[#allocation2] sm:$0xff] 0.0
        %326 = vst [vmem:[#allocation2 + $0x8] sm:$0xff] 0.0
        %327 = vst [vmem:[#allocation2 + $0x10] sm:$0xff] 0.0
        %328 = vst [vmem:[#allocation2 + $0x18] sm:$0xff] 0.0
        %329 = vst [vmem:[#allocation2 + $0x40] sm:$0xff] 0.0
        %330 = vst [vmem:[#allocation2 + $0x48] sm:$0xff] 0.0
        %331 = vst [vmem:[#allocation2 + $0x50] sm:$0xff] 0.0
        %332 = vst [vmem:[#allocation2 + $0x58] sm:$0xff] 0.0
        %s333 = smul.u32 32, 1
        %s334 = sshll.u32 %s333, 4
        %335 = dma.done [#allocation3], %s334
        %v336 = vld [vmem:[#allocation2 + $0x1d] sm:$0xff]
        %v337 = vld [vmem:[#allocation2 + $0x25] sm:$0xff]
        %v338 = vld [vmem:[#allocation2 + $0x2d] sm:$0xff]
        %v339 = vld [vmem:[#allocation2 + $0x35] sm:$0xff]
        %v340 = vld [vmem:[#allocation2 + $0x1e] sm:$0xff]
        %v341 = vld [vmem:[#allocation2 + $0x26] sm:$0xff]
        %v342 = vld [vmem:[#allocation2 + $0x2e] sm:$0xff]
        %v343 = vld [vmem:[#allocation2 + $0x36] sm:$0xff]
        %v344 = vld [vmem:[#allocation2 + $0x1f] sm:$0xff]
        %v345 = vld [vmem:[#allocation2 + $0x27] sm:$0xff]
        %v346 = vld [vmem:[#allocation2 + $0x2f] sm:$0xff]
        %v347 = vld [vmem:[#allocation2 + $0x37] sm:$0xff]
        %v348 = vld [vmem:[#allocation2 + $0x20] sm:$0xff]
        %v349 = vld [vmem:[#allocation2 + $0x28] sm:$0xff]
        %v350 = vld [vmem:[#allocation2 + $0x30] sm:$0xff]
        %v351 = vld [vmem:[#allocation2 + $0x38] sm:$0xff]
        %v352 = vld [vmem:[#allocation2 + $0x21] sm:$0xff]
        %v353 = vld [vmem:[#allocation2 + $0x29] sm:$0xff]
        %v354 = vld [vmem:[#allocation2 + $0x31] sm:$0xff]
        %v355 = vld [vmem:[#allocation2 + $0x39] sm:$0xff]
        %v356 = vld [vmem:[#allocation2 + $0x22] sm:$0xff]
        %v357 = vld [vmem:[#allocation2 + $0x2a] sm:$0xff]
        %v358 = vld [vmem:[#allocation2 + $0x32] sm:$0xff]
        %v359 = vld [vmem:[#allocation2 + $0x3a] sm:$0xff]
        %v360 = vld [vmem:[#allocation2 + $0x23] sm:$0xff]
        %v361 = vld [vmem:[#allocation2 + $0x2b] sm:$0xff]
        %v362 = vld [vmem:[#allocation2 + $0x33] sm:$0xff]
        %v363 = vld [vmem:[#allocation2 + $0x3b] sm:$0xff]
        %v364 = vld [vmem:[%s2] sm:$0xff]
        %v365 = vld [vmem:[%s2 + $0x8] sm:$0xff]
        %v366 = vld [vmem:[%s2 + $0x10] sm:$0xff]
        %v367 = vld [vmem:[%s2 + $0x18] sm:$0xff]
        %v368 = vld [vmem:[%s2 + $0x20] sm:$0xff]
        %v369 = vld [vmem:[%s2 + $0x28] sm:$0xff]
        %v370 = vld [vmem:[%s2 + $0x30] sm:$0xff]
        %v371 = vld [vmem:[%s2 + $0x38] sm:$0xff]
        %v372 = vld [vmem:[%s2 + $0x40] sm:$0xff]
        %v373 = vld [vmem:[%s2 + $0x48] sm:$0xff]
        %v374 = vld [vmem:[%s2 + $0x50] sm:$0xff]
        %v375 = vld [vmem:[%s2 + $0x58] sm:$0xff]
        %v376 = vld [vmem:[%s2 + $0x60] sm:$0xff]
        %v377 = vld [vmem:[%s2 + $0x68] sm:$0xff]
        %v378 = vld [vmem:[%s2 + $0x70] sm:$0xff]
        %v379 = vld [vmem:[%s2 + $0x78] sm:$0xff]
        %v380 = vld [vmem:[%s2 + $0x80] sm:$0xff]
        %v381 = vld [vmem:[%s2 + $0x88] sm:$0xff]
        %v382 = vld [vmem:[%s2 + $0x90] sm:$0xff]
        %v383 = vld [vmem:[%s2 + $0x98] sm:$0xff]
        %v384 = vld [vmem:[%s2 + $0xa0] sm:$0xff]
        %v385 = vld [vmem:[%s2 + $0xa8] sm:$0xff]
        %v386 = vld [vmem:[%s2 + $0xb0] sm:$0xff]
        %v387 = vld [vmem:[%s2 + $0xb8] sm:$0xff]
        %v388 = vld [vmem:[%s2 + $0xc0] sm:$0xff]
        %v389 = vld [vmem:[%s2 + $0xc8] sm:$0xff]
        %v390 = vld [vmem:[%s2 + $0xd0] sm:$0xff]
        %v391 = vld [vmem:[%s2 + $0xd8] sm:$0xff]
        %v392 = vld [vmem:[%s2 + $0xe0] sm:$0xff]
        %v393 = vld [vmem:[%s2 + $0xe8] sm:$0xff]
        %v394 = vld [vmem:[%s2 + $0xf0] sm:$0xff]
        %v395 = vld [vmem:[%s2 + $0xf8] sm:$0xff]
        %v396 = vld [vmem:[%s2 + $0x100] sm:$0xff]
        %v397 = vld [vmem:[%s2 + $0x108] sm:$0xff]
        %v398 = vld [vmem:[%s2 + $0x110] sm:$0xff]
        %v399 = vld [vmem:[%s2 + $0x118] sm:$0xff]
        %v400 = vld [vmem:[%s2 + $0x120] sm:$0xff]
        %v401 = vld [vmem:[%s2 + $0x128] sm:$0xff]
        %v402 = vld [vmem:[%s2 + $0x130] sm:$0xff]
        %v403 = vld [vmem:[%s2 + $0x138] sm:$0xff]
        %v404 = vld [vmem:[%s2 + $0x140] sm:$0xff]
        %v405 = vld [vmem:[%s2 + $0x148] sm:$0xff]
        %v406 = vld [vmem:[%s2 + $0x150] sm:$0xff]
        %v407 = vld [vmem:[%s2 + $0x158] sm:$0xff]
        %v408 = vld [vmem:[%s2 + $0x160] sm:$0xff]
        %v409 = vld [vmem:[%s2 + $0x168] sm:$0xff]
        %v410 = vld [vmem:[%s2 + $0x170] sm:$0xff]
        %v411 = vld [vmem:[%s2 + $0x178] sm:$0xff]
        %v412 = vld [vmem:[%s2 + $0x180] sm:$0xff]
        %v413 = vld [vmem:[%s2 + $0x188] sm:$0xff]
        %v414 = vld [vmem:[%s2 + $0x190] sm:$0xff]
        %v415 = vld [vmem:[%s2 + $0x198] sm:$0xff]
        %v416 = vld [vmem:[%s2 + $0x1a0] sm:$0xff]
        %v417 = vld [vmem:[%s2 + $0x1a8] sm:$0xff]
        %v418 = vld [vmem:[%s2 + $0x1b0] sm:$0xff]
        %v419 = vld [vmem:[%s2 + $0x1b8] sm:$0xff]
        %v420 = vld [vmem:[%s2 + $0x1c0] sm:$0xff]
        %v421 = vld [vmem:[%s2 + $0x1c8] sm:$0xff]
        %v422 = vld [vmem:[%s2 + $0x1d0] sm:$0xff]
        %v423 = vld [vmem:[%s2 + $0x1d8] sm:$0xff]
        %v424 = vld [vmem:[%s2 + $0x1e0] sm:$0xff]
        %v425 = vld [vmem:[%s2 + $0x1e8] sm:$0xff]
        %v426 = vld [vmem:[%s2 + $0x1f0] sm:$0xff]
        %v427 = vld [vmem:[%s2 + $0x1f8] sm:$0xff]
        %v428 = vld [vmem:[%s2 + $0x200] sm:$0xff]
        %v429 = vld [vmem:[%s2 + $0x208] sm:$0xff]
        %v430 = vld [vmem:[%s2 + $0x210] sm:$0xff]
        %v431 = vld [vmem:[%s2 + $0x218] sm:$0xff]
        %v432 = vld [vmem:[%s2 + $0x220] sm:$0xff]
        %v433 = vld [vmem:[%s2 + $0x228] sm:$0xff]
        %v434 = vld [vmem:[%s2 + $0x230] sm:$0xff]
        %v435 = vld [vmem:[%s2 + $0x238] sm:$0xff]
        %v436 = vld [vmem:[%s2 + $0x240] sm:$0xff]
        %v437 = vld [vmem:[%s2 + $0x248] sm:$0xff]
        %v438 = vld [vmem:[%s2 + $0x250] sm:$0xff]
        %v439 = vld [vmem:[%s2 + $0x258] sm:$0xff]
        %v440 = vld [vmem:[%s2 + $0x260] sm:$0xff]
        %v441 = vld [vmem:[%s2 + $0x268] sm:$0xff]
        %v442 = vld [vmem:[%s2 + $0x270] sm:$0xff]
        %v443 = vld [vmem:[%s2 + $0x278] sm:$0xff]
        %v444 = vld [vmem:[%s2 + $0x280] sm:$0xff]
        %v445 = vld [vmem:[%s2 + $0x288] sm:$0xff]
        %v446 = vld [vmem:[%s2 + $0x290] sm:$0xff]
        %v447 = vld [vmem:[%s2 + $0x298] sm:$0xff]
        %v448 = vld [vmem:[%s2 + $0x2a0] sm:$0xff]
        %v449 = vld [vmem:[%s2 + $0x2a8] sm:$0xff]
        %v450 = vld [vmem:[%s2 + $0x2b0] sm:$0xff]
        %v451 = vld [vmem:[%s2 + $0x2b8] sm:$0xff]
        %v452 = vld [vmem:[%s2 + $0x2c0] sm:$0xff]
        %v453 = vld [vmem:[%s2 + $0x2c8] sm:$0xff]
        %v454 = vld [vmem:[%s2 + $0x2d0] sm:$0xff]
        %v455 = vld [vmem:[%s2 + $0x2d8] sm:$0xff]
        %v456 = vld [vmem:[%s2 + $0x2e0] sm:$0xff]
        %v457 = vld [vmem:[%s2 + $0x2e8] sm:$0xff]
        %v458 = vld [vmem:[%s2 + $0x2f0] sm:$0xff]
        %v459 = vld [vmem:[%s2 + $0x2f8] sm:$0xff]
        %v460 = vld [vmem:[%s2 + $0x300] sm:$0xff]
        %v461 = vld [vmem:[%s2 + $0x308] sm:$0xff]
        %v462 = vld [vmem:[%s2 + $0x310] sm:$0xff]
        %v463 = vld [vmem:[%s2 + $0x318] sm:$0xff]
        %v464 = vld [vmem:[%s2 + $0x320] sm:$0xff]
        %v465 = vld [vmem:[%s2 + $0x328] sm:$0xff]
        %v466 = vld [vmem:[%s2 + $0x330] sm:$0xff]
        %v467 = vld [vmem:[%s2 + $0x338] sm:$0xff]
        %v468 = vld [vmem:[%s2 + $0x340] sm:$0xff]
        %v469 = vld [vmem:[%s2 + $0x348] sm:$0xff]
        %v470 = vld [vmem:[%s2 + $0x350] sm:$0xff]
        %v471 = vld [vmem:[%s2 + $0x358] sm:$0xff]
        %v472 = vld [vmem:[%s2 + $0x360] sm:$0xff]
        %v473 = vld [vmem:[%s2 + $0x368] sm:$0xff]
        %v474 = vld [vmem:[%s2 + $0x370] sm:$0xff]
        %v475 = vld [vmem:[%s2 + $0x378] sm:$0xff]
        %v476 = vld [vmem:[%s3] sm:$0x1]
        %v478 = vlaneseq
        %v479 = vshrl.u32 %v478, 7
        %v480 = vsub.s32 0, %v479
        %v481 = vrot.slane %v476, %v480
        %483 = vmatprep.subr.mxu0 0.0
        %484 = vmatpush1.msra.mxu0 %v364
        %485 = vmatprep.subr.mxu0 0.0
        %486 = vmatpush1.msra.mxu0 %v365
        %487 = vmatprep.subr.mxu0 0.0
        %488 = vmatpush1.msra.mxu0 %v366
        %489 = vmatprep.subr.mxu0 0.0
        %490 = vmatpush1.msra.mxu0 %v367
        %491 = vmatprep.subr.mxu0 0.0
        %492 = vmatpush1.msra.mxu0 %v368
        %493 = vmatprep.subr.mxu0 0.0
        %494 = vmatpush1.msra.mxu0 %v369
        %495 = vmatprep.subr.mxu0 0.0
        %496 = vmatpush1.msra.mxu0 %v370
        %497 = vmatprep.subr.mxu0 0.0
        %498 = vmatpush1.msra.mxu0 %v371
        %499 = vmatprep.subr.mxu0 0.0
        %500 = vmatpush1.msra.mxu0 %v372
        %501 = vmatprep.subr.mxu0 0.0
        %502 = vmatpush1.msra.mxu0 %v373
        %503 = vmatprep.subr.mxu0 0.0
        %504 = vmatpush1.msra.mxu0 %v374
        %505 = vmatprep.subr.mxu0 0.0
        %506 = vmatpush1.msra.mxu0 %v375
        %507 = vmatprep.subr.mxu0 0.0
        %508 = vmatpush1.msra.mxu0 %v376
        %509 = vmatprep.subr.mxu0 0.0
        %510 = vmatpush1.msra.mxu0 %v377
        %511 = vmatprep.subr.mxu0 0.0
        %512 = vmatpush1.msra.mxu0 %v378
        %513 = vmatprep.subr.mxu0 0.0
        %514 = vmatpush1.msra.mxu0 %v379
        %515 = vmatprep.subr.mxu0 0.0
        %516 = vmatpush1.msra.mxu0 %v380
        %517 = vmatprep.subr.mxu0 0.0
        %518 = vmatpush1.msra.mxu0 %v381
        %519 = vmatprep.subr.mxu0 0.0
        %520 = vmatpush1.msra.mxu0 %v382
        %521 = vmatprep.subr.mxu0 0.0
        %522 = vmatpush1.msra.mxu0 %v383
        %523 = vmatprep.subr.mxu0 0.0
        %524 = vmatpush1.msra.mxu0 %v384
        %525 = vmatprep.subr.mxu0 0.0
        %526 = vmatpush1.msra.mxu0 %v385
        %527 = vmatprep.subr.mxu0 0.0
        %528 = vmatpush1.msra.mxu0 %v386
        %529 = vmatprep.subr.mxu0 0.0
        %530 = vmatpush1.msra.mxu0 %v387
        %531 = vmatprep.subr.mxu0 0.0
        %532 = vmatpush1.msra.mxu0 %v388
        %533 = vmatprep.subr.mxu0 0.0
        %534 = vmatpush1.msra.mxu0 %v389
        %535 = vmatprep.subr.mxu0 0.0
        %536 = vmatpush1.msra.mxu0 %v390
        %537 = vmatprep.subr.mxu0 0.0
        %538 = vmatpush1.msra.mxu0 %v391
        %539 = vmatprep.subr.mxu0 0.0
        %540 = vmatpush1.msra.mxu0 %v392
        %541 = vmatprep.subr.mxu0 0.0
        %542 = vmatpush1.msra.mxu0 %v393
        %543 = vmatprep.subr.mxu0 0.0
        %544 = vmatpush1.msra.mxu0 %v394
        %545 = vmatprep.subr.mxu0 0.0
        %546 = vmatpush1.msra.mxu0 %v395
        %547 = vmatprep.mubr.f32.mxu0 %v340
        %548 = vmatmul.mubr.f32.gmra.mrb[0].mxu0 %v336
        %v549 = vpop.f32.mrb[0].mxu0
        %v550 = vadd.f32 %v481, %v549
        %v551 = vpop.f32.mrb[0].mxu0
        %552 = vmatprep.mubr.f32.mxu0 %v341
        %553 = vmatmul.mubr.f32.gmra.mrb[0].mxu0 %v337
        %v554 = vpop.f32.mrb[0].mxu0
        %v555 = vadd.f32 %v481, %v554
        %v556 = vpop.f32.mrb[0].mxu0
        %557 = vmatprep.mubr.f32.mxu0 %v342
        %558 = vmatmul.mubr.f32.gmra.mrb[0].mxu0 %v338
        %v559 = vpop.f32.mrb[0].mxu0
        %v560 = vadd.f32 %v481, %v559
        %v561 = vpop.f32.mrb[0].mxu0
        %562 = vmatprep.mubr.f32.mxu0 %v343
        %563 = vmatmul.mubr.f32.gmra.mrb[0].mxu0 %v339
        %v564 = vpop.f32.mrb[0].mxu0
        %v565 = vadd.f32 %v481, %v564
        %v566 = vpop.f32.mrb[0].mxu0
        %567 = vdwg.mxu0
        %568 = vmatprep.subr.mxu0 0.0
        %569 = vmatpush1.msra.mxu0 %v396
        %570 = vmatprep.subr.mxu0 0.0
        %571 = vmatpush1.msra.mxu0 %v397
        %572 = vmatprep.subr.mxu0 0.0
        %573 = vmatpush1.msra.mxu0 %v398
        %574 = vmatprep.subr.mxu0 0.0
        %575 = vmatpush1.msra.mxu0 %v399
        %576 = vmatprep.subr.mxu0 0.0
        %577 = vmatpush1.msra.mxu0 %v400
        %578 = vmatprep.subr.mxu0 0.0
        %579 = vmatpush1.msra.mxu0 %v401
        %580 = vmatprep.subr.mxu0 0.0
        %581 = vmatpush1.msra.mxu0 %v402
        %582 = vmatprep.subr.mxu0 0.0
        %583 = vmatpush1.msra.mxu0 %v403
        %584 = vmatprep.subr.mxu0 0.0
        %585 = vmatpush1.msra.mxu0 %v404
        %586 = vmatprep.subr.mxu0 0.0
        %587 = vmatpush1.msra.mxu0 %v405
        %588 = vmatprep.subr.mxu0 0.0
        %589 = vmatpush1.msra.mxu0 %v406
        %590 = vmatprep.subr.mxu0 0.0
        %591 = vmatpush1.msra.mxu0 %v407
        %592 = vmatprep.subr.mxu0 0.0
        %593 = vmatpush1.msra.mxu0 %v408
        %594 = vmatprep.subr.mxu0 0.0
        %595 = vmatpush1.msra.mxu0 %v409
        %596 = vmatprep.subr.mxu0 0.0
        %597 = vmatpush1.msra.mxu0 %v410
        %598 = vmatprep.subr.mxu0 0.0
        %599 = vmatpush1.msra.mxu0 %v411
        %600 = vmatprep.subr.mxu0 0.0
        %601 = vmatpush1.msra.mxu0 %v412
        %602 = vmatprep.subr.mxu0 0.0
        %603 = vmatpush1.msra.mxu0 %v413
        %604 = vmatprep.subr.mxu0 0.0
        %605 = vmatpush1.msra.mxu0 %v414
        %606 = vmatprep.subr.mxu0 0.0
        %607 = vmatpush1.msra.mxu0 %v415
        %608 = vmatprep.subr.mxu0 0.0
        %609 = vmatpush1.msra.mxu0 %v416
        %610 = vmatprep.subr.mxu0 0.0
        %611 = vmatpush1.msra.mxu0 %v417
        %612 = vmatprep.subr.mxu0 0.0
        %613 = vmatpush1.msra.mxu0 %v418
        %614 = vmatprep.subr.mxu0 0.0
        %615 = vmatpush1.msra.mxu0 %v419
        %616 = vmatprep.subr.mxu0 0.0
        %617 = vmatpush1.msra.mxu0 %v420
        %618 = vmatprep.subr.mxu0 0.0
        %619 = vmatpush1.msra.mxu0 %v421
        %620 = vmatprep.subr.mxu0 0.0
        %621 = vmatpush1.msra.mxu0 %v422
        %622 = vmatprep.subr.mxu0 0.0
        %623 = vmatpush1.msra.mxu0 %v423
        %624 = vmatprep.subr.mxu0 0.0
        %625 = vmatpush1.msra.mxu0 %v424
        %626 = vmatprep.subr.mxu0 0.0
        %627 = vmatpush1.msra.mxu0 %v425
        %628 = vmatprep.subr.mxu0 0.0
        %629 = vmatpush1.msra.mxu0 %v426
        %630 = vmatprep.subr.mxu0 0.0
        %631 = vmatpush1.msra.mxu0 %v427
        %632 = vmatprep.mubr.f32.mxu0 %v348
        %633 = vmatmul.mubr.f32.gmra.mrb[0].mxu0 %v344
        %v634 = vpop.f32.mrb[0].mxu0
        %v635 = vadd.f32 %v550, %v634
        %v636 = vpop.f32.mrb[0].mxu0
        %637 = vmatprep.mubr.f32.mxu0 %v349
        %638 = vmatmul.mubr.f32.gmra.mrb[0].mxu0 %v345
        %v639 = vpop.f32.mrb[0].mxu0
        %v640 = vadd.f32 %v555, %v639
        %v641 = vpop.f32.mrb[0].mxu0
        %642 = vmatprep.mubr.f32.mxu0 %v350
        %643 = vmatmul.mubr.f32.gmra.mrb[0].mxu0 %v346
        %v644 = vpop.f32.mrb[0].mxu0
        %v645 = vadd.f32 %v560, %v644
        %v646 = vpop.f32.mrb[0].mxu0
        %647 = vmatprep.mubr.f32.mxu0 %v351
        %648 = vmatmul.mubr.f32.gmra.mrb[0].mxu0 %v347
        %v649 = vpop.f32.mrb[0].mxu0
        %v650 = vadd.f32 %v565, %v649
        %v651 = vpop.f32.mrb[0].mxu0
        %652 = vdwg.mxu0
        %653 = vmatprep.subr.mxu0 0.0
        %654 = vmatpush1.msra.mxu0 %v428
        %655 = vmatprep.subr.mxu0 0.0
        %656 = vmatpush1.msra.mxu0 %v429
        %657 = vmatprep.subr.mxu0 0.0
        %658 = vmatpush1.msra.mxu0 %v430
        %659 = vmatprep.subr.mxu0 0.0
        %660 = vmatpush1.msra.mxu0 %v431
        %661 = vmatprep.subr.mxu0 0.0
        %662 = vmatpush1.msra.mxu0 %v432
        %663 = vmatprep.subr.mxu0 0.0
        %664 = vmatpush1.msra.mxu0 %v433
        %665 = vmatprep.subr.mxu0 0.0
        %666 = vmatpush1.msra.mxu0 %v434
        %667 = vmatprep.subr.mxu0 0.0
        %668 = vmatpush1.msra.mxu0 %v435
        %669 = vmatprep.subr.mxu0 0.0
        %670 = vmatpush1.msra.mxu0 %v436
        %671 = vmatprep.subr.mxu0 0.0
        %672 = vmatpush1.msra.mxu0 %v437
        %673 = vmatprep.subr.mxu0 0.0
        %674 = vmatpush1.msra.mxu0 %v438
        %675 = vmatprep.subr.mxu0 0.0
        %676 = vmatpush1.msra.mxu0 %v439
        %677 = vmatprep.subr.mxu0 0.0
        %678 = vmatpush1.msra.mxu0 %v440
        %679 = vmatprep.subr.mxu0 0.0
        %680 = vmatpush1.msra.mxu0 %v441
        %681 = vmatprep.subr.mxu0 0.0
        %682 = vmatpush1.msra.mxu0 %v442
        %683 = vmatprep.subr.mxu0 0.0
        %684 = vmatpush1.msra.mxu0 %v443
        %685 = vmatprep.subr.mxu0 0.0
        %686 = vmatpush1.msra.mxu0 %v444
        %687 = vmatprep.subr.mxu0 0.0
        %688 = vmatpush1.msra.mxu0 %v445
        %689 = vmatprep.subr.mxu0 0.0
        %690 = vmatpush1.msra.mxu0 %v446
        %691 = vmatprep.subr.mxu0 0.0
        %692 = vmatpush1.msra.mxu0 %v447
        %693 = vmatprep.subr.mxu0 0.0
        %694 = vmatpush1.msra.mxu0 %v448
        %695 = vmatprep.subr.mxu0 0.0
        %696 = vmatpush1.msra.mxu0 %v449
        %697 = vmatprep.subr.mxu0 0.0
        %698 = vmatpush1.msra.mxu0 %v450
        %699 = vmatprep.subr.mxu0 0.0
        %700 = vmatpush1.msra.mxu0 %v451
        %701 = vmatprep.subr.mxu0 0.0
        %702 = vmatpush1.msra.mxu0 %v452
        %703 = vmatprep.subr.mxu0 0.0
        %704 = vmatpush1.msra.mxu0 %v453
        %705 = vmatprep.subr.mxu0 0.0
        %706 = vmatpush1.msra.mxu0 %v454
        %707 = vmatprep.subr.mxu0 0.0
        %708 = vmatpush1.msra.mxu0 %v455
        %709 = vmatprep.subr.mxu0 0.0
        %710 = vmatpush1.msra.mxu0 %v456
        %711 = vmatprep.subr.mxu0 0.0
        %712 = vmatpush1.msra.mxu0 %v457
        %713 = vmatprep.subr.mxu0 0.0
        %714 = vmatpush1.msra.mxu0 %v458
        %715 = vmatprep.subr.mxu0 0.0
        %716 = vmatpush1.msra.mxu0 %v459
        %717 = vmatprep.mubr.f32.mxu0 %v356
        %718 = vmatmul.mubr.f32.gmra.mrb[0].mxu0 %v352
        %v719 = vpop.f32.mrb[0].mxu0
        %v720 = vadd.f32 %v635, %v719
        %v721 = vpop.f32.mrb[0].mxu0
        %722 = vmatprep.mubr.f32.mxu0 %v357
        %723 = vmatmul.mubr.f32.gmra.mrb[0].mxu0 %v353
        %v724 = vpop.f32.mrb[0].mxu0
        %v725 = vadd.f32 %v640, %v724
        %v726 = vpop.f32.mrb[0].mxu0
        %727 = vmatprep.mubr.f32.mxu0 %v358
        %728 = vmatmul.mubr.f32.gmra.mrb[0].mxu0 %v354
        %v729 = vpop.f32.mrb[0].mxu0
        %v730 = vadd.f32 %v645, %v729
        %v731 = vpop.f32.mrb[0].mxu0
        %732 = vmatprep.mubr.f32.mxu0 %v359
        %733 = vmatmul.mubr.f32.gmra.mrb[0].mxu0 %v355
        %v734 = vpop.f32.mrb[0].mxu0
        %v735 = vadd.f32 %v650, %v734
        %v736 = vpop.f32.mrb[0].mxu0
        %737 = vdwg.mxu0
        %738 = vmatprep.subr.mxu0 0.0
        %739 = vmatpush1.msra.mxu0 %v460
        %740 = vmatprep.subr.mxu0 0.0
        %741 = vmatpush1.msra.mxu0 %v461
        %742 = vmatprep.subr.mxu0 0.0
        %743 = vmatpush1.msra.mxu0 %v462
        %744 = vmatprep.subr.mxu0 0.0
        %745 = vmatpush1.msra.mxu0 %v463
        %746 = vmatprep.subr.mxu0 0.0
        %747 = vmatpush1.msra.mxu0 %v464
        %748 = vmatprep.subr.mxu0 0.0
        %749 = vmatpush1.msra.mxu0 %v465
        %750 = vmatprep.subr.mxu0 0.0
        %751 = vmatpush1.msra.mxu0 %v466
        %752 = vmatprep.subr.mxu0 0.0
        %753 = vmatpush1.msra.mxu0 %v467
        %754 = vmatprep.subr.mxu0 0.0
        %755 = vmatpush1.msra.mxu0 %v468
        %756 = vmatprep.subr.mxu0 0.0
        %757 = vmatpush1.msra.mxu0 %v469
        %758 = vmatprep.subr.mxu0 0.0
        %759 = vmatpush1.msra.mxu0 %v470
        %760 = vmatprep.subr.mxu0 0.0
        %761 = vmatpush1.msra.mxu0 %v471
        %762 = vmatprep.subr.mxu0 0.0
        %763 = vmatpush1.msra.mxu0 %v472
        %764 = vmatprep.subr.mxu0 0.0
        %765 = vmatpush1.msra.mxu0 %v473
        %766 = vmatprep.subr.mxu0 0.0
        %767 = vmatpush1.msra.mxu0 %v474
        %768 = vmatprep.subr.mxu0 0.0
        %769 = vmatpush1.msra.mxu0 %v475
        %770 = vmatprep.subr.mxu0 0.0
        %771 = vmatpush1.msra.mxu0 0.0
        %772 = vmatprep.subr.mxu0 0.0
        %773 = vmatpush1.msra.mxu0 0.0
        %774 = vmatprep.subr.mxu0 0.0
        %775 = vmatpush1.msra.mxu0 0.0
        %776 = vmatprep.subr.mxu0 0.0
        %777 = vmatpush1.msra.mxu0 0.0
        %778 = vmatprep.subr.mxu0 0.0
        %779 = vmatpush1.msra.mxu0 0.0
        %780 = vmatprep.subr.mxu0 0.0
        %781 = vmatpush1.msra.mxu0 0.0
        %782 = vmatprep.subr.mxu0 0.0
        %783 = vmatpush1.msra.mxu0 0.0
        %784 = vmatprep.subr.mxu0 0.0
        %785 = vmatpush1.msra.mxu0 0.0
        %786 = vmatprep.subr.mxu0 0.0
        %787 = vmatpush1.msra.mxu0 0.0
        %788 = vmatprep.subr.mxu0 0.0
        %789 = vmatpush1.msra.mxu0 0.0
        %790 = vmatprep.subr.mxu0 0.0
        %791 = vmatpush1.msra.mxu0 0.0
        %792 = vmatprep.subr.mxu0 0.0
        %793 = vmatpush1.msra.mxu0 0.0
        %794 = vmatprep.subr.mxu0 0.0
        %795 = vmatpush1.msra.mxu0 0.0
        %796 = vmatprep.subr.mxu0 0.0
        %797 = vmatpush1.msra.mxu0 0.0
        %798 = vmatprep.subr.mxu0 0.0
        %799 = vmatpush1.msra.mxu0 0.0
        %800 = vmatprep.subr.mxu0 0.0
        %801 = vmatpush1.msra.mxu0 0.0
        %802 = vmatprep.mubr.f32.mxu0 0.0
        %803 = vmatmul.mubr.f32.gmra.mrb[0].mxu0 %v360
        %v804 = vpop.f32.mrb[0].mxu0
        %v805 = vadd.f32 %v720, %v804
        %v806 = vpop.f32.mrb[0].mxu0
        %807 = vmatprep.mubr.f32.mxu0 0.0
        %808 = vmatmul.mubr.f32.gmra.mrb[0].mxu0 %v361
        %v809 = vpop.f32.mrb[0].mxu0
        %v810 = vadd.f32 %v725, %v809
        %v811 = vpop.f32.mrb[0].mxu0
        %812 = vmatprep.mubr.f32.mxu0 0.0
        %813 = vmatmul.mubr.f32.gmra.mrb[0].mxu0 %v362
        %v814 = vpop.f32.mrb[0].mxu0
        %v815 = vadd.f32 %v730, %v814
        %v816 = vpop.f32.mrb[0].mxu0
        %817 = vmatprep.mubr.f32.mxu0 0.0
        %818 = vmatmul.mubr.f32.gmra.mrb[0].mxu0 %v363
        %v819 = vpop.f32.mrb[0].mxu0
        %v820 = vadd.f32 %v735, %v819
        %v821 = vpop.f32.mrb[0].mxu0
        %822 = vdwg.mxu0
        %s823 = sld [smem:[#allocation4]]
        %vm824 = vcmp.ge.f32.partialorder %v805, 0.0
        %vm825 = vcmp.ge.f32.partialorder %v810, 0.0
        %vm826 = vcmp.ge.f32.partialorder %v815, 0.0
        %vm827 = vcmp.ge.f32.partialorder %v820, 0.0
        %v828 = vstv %s823
        %v829 = vmul.f32 %v828, %v805
        %v830 = vmul.f32 %v828, %v810
        %v831 = vmul.f32 %v828, %v815
        %v832 = vmul.f32 %v828, %v820
        %v833 = vsel %vm824, %v805, %v829
        %v834 = vsel %vm825, %v810, %v830
        %v835 = vsel %vm826, %v815, %v831
        %v836 = vsel %vm827, %v820, %v832
        %v837 = vld [vmem:[%s4] sm:$0xff]
        %v838 = vld [vmem:[%s4 + $0x8] sm:$0xff]
        %v839 = vld [vmem:[%s4 + $0x10] sm:$0xff]
        %v840 = vld [vmem:[%s4 + $0x18] sm:$0xff]
        %v841 = vld [vmem:[%s4 + $0x20] sm:$0xff]
        %v842 = vld [vmem:[%s4 + $0x28] sm:$0xff]
        %v843 = vld [vmem:[%s4 + $0x30] sm:$0xff]
        %v844 = vld [vmem:[%s4 + $0x38] sm:$0xff]
        %v845 = vld [vmem:[%s4 + $0x40] sm:$0xff]
        %v846 = vld [vmem:[%s4 + $0x48] sm:$0xff]
        %v847 = vld [vmem:[%s4 + $0x50] sm:$0xff]
        %v848 = vld [vmem:[%s4 + $0x58] sm:$0xff]
        %v849 = vld [vmem:[%s4 + $0x60] sm:$0xff]
        %v850 = vld [vmem:[%s4 + $0x68] sm:$0xff]
        %v851 = vld [vmem:[%s4 + $0x70] sm:$0xff]
        %v852 = vld [vmem:[%s4 + $0x78] sm:$0xff]
        %v853 = vld [vmem:[%s5] sm:$0x1]
        %v855 = vlaneseq
        %v856 = vshrl.u32 %v855, 7
        %v857 = vsub.s32 0, %v856
        %v858 = vrot.slane %v853, %v857
        %860 = vmatprep.subr.mxu0 0.0
        %861 = vmatpush1.msra.mxu0 %v837
        %862 = vmatprep.subr.mxu0 0.0
        %863 = vmatpush1.msra.mxu0 %v838
        %864 = vmatprep.subr.mxu0 0.0
        %865 = vmatpush1.msra.mxu0 %v839
        %866 = vmatprep.subr.mxu0 0.0
        %867 = vmatpush1.msra.mxu0 %v840
        %868 = vmatprep.subr.mxu0 0.0
        %869 = vmatpush1.msra.mxu0 %v841
        %870 = vmatprep.subr.mxu0 0.0
        %871 = vmatpush1.msra.mxu0 %v842
        %872 = vmatprep.subr.mxu0 0.0
        %873 = vmatpush1.msra.mxu0 %v843
        %874 = vmatprep.subr.mxu0 0.0
        %875 = vmatpush1.msra.mxu0 %v844
        %876 = vmatprep.subr.mxu0 0.0
        %877 = vmatpush1.msra.mxu0 %v845
        %878 = vmatprep.subr.mxu0 0.0
        %879 = vmatpush1.msra.mxu0 %v846
        %880 = vmatprep.subr.mxu0 0.0
        %881 = vmatpush1.msra.mxu0 %v847
        %882 = vmatprep.subr.mxu0 0.0
        %883 = vmatpush1.msra.mxu0 %v848
        %884 = vmatprep.subr.mxu0 0.0
        %885 = vmatpush1.msra.mxu0 %v849
        %886 = vmatprep.subr.mxu0 0.0
        %887 = vmatpush1.msra.mxu0 %v850
        %888 = vmatprep.subr.mxu0 0.0
        %889 = vmatpush1.msra.mxu0 %v851
        %890 = vmatprep.subr.mxu0 0.0
        %891 = vmatpush1.msra.mxu0 %v852
        %892 = vmatprep.subr.mxu0 0.0
        %893 = vmatpush1.msra.mxu0 0.0
        %894 = vmatprep.subr.mxu0 0.0
        %895 = vmatpush1.msra.mxu0 0.0
        %896 = vmatprep.subr.mxu0 0.0
        %897 = vmatpush1.msra.mxu0 0.0
        %898 = vmatprep.subr.mxu0 0.0
        %899 = vmatpush1.msra.mxu0 0.0
        %900 = vmatprep.subr.mxu0 0.0
        %901 = vmatpush1.msra.mxu0 0.0
        %902 = vmatprep.subr.mxu0 0.0
        %903 = vmatpush1.msra.mxu0 0.0
        %904 = vmatprep.subr.mxu0 0.0
        %905 = vmatpush1.msra.mxu0 0.0
        %906 = vmatprep.subr.mxu0 0.0
        %907 = vmatpush1.msra.mxu0 0.0
        %908 = vmatprep.subr.mxu0 0.0
        %909 = vmatpush1.msra.mxu0 0.0
        %910 = vmatprep.subr.mxu0 0.0
        %911 = vmatpush1.msra.mxu0 0.0
        %912 = vmatprep.subr.mxu0 0.0
        %913 = vmatpush1.msra.mxu0 0.0
        %914 = vmatprep.subr.mxu0 0.0
        %915 = vmatpush1.msra.mxu0 0.0
        %916 = vmatprep.subr.mxu0 0.0
        %917 = vmatpush1.msra.mxu0 0.0
        %918 = vmatprep.subr.mxu0 0.0
        %919 = vmatpush1.msra.mxu0 0.0
        %920 = vmatprep.subr.mxu0 0.0
        %921 = vmatpush1.msra.mxu0 0.0
        %922 = vmatprep.subr.mxu0 0.0
        %923 = vmatpush1.msra.mxu0 0.0
        %924 = vmatprep.mubr.f32.mxu0 0.0
        %925 = vmatmul.mubr.f32.gmra.mrb[0].mxu0 %v833
        %v926 = vpop.f32.mrb[0].mxu0
        %v927 = vadd.f32 %v858, %v926
        %v928 = vpop.f32.mrb[0].mxu0
        %929 = vmatprep.mubr.f32.mxu0 0.0
        %930 = vmatmul.mubr.f32.gmra.mrb[0].mxu0 %v834
        %v931 = vpop.f32.mrb[0].mxu0
        %v932 = vadd.f32 %v858, %v931
        %v933 = vpop.f32.mrb[0].mxu0
        %934 = vmatprep.mubr.f32.mxu0 0.0
        %935 = vmatmul.mubr.f32.gmra.mrb[0].mxu0 %v835
        %v936 = vpop.f32.mrb[0].mxu0
        %v937 = vadd.f32 %v858, %v936
        %v938 = vpop.f32.mrb[0].mxu0
        %939 = vmatprep.mubr.f32.mxu0 0.0
        %940 = vmatmul.mubr.f32.gmra.mrb[0].mxu0 %v836
        %v941 = vpop.f32.mrb[0].mxu0
        %v942 = vadd.f32 %v858, %v941
        %v943 = vpop.f32.mrb[0].mxu0
        %944 = vdwg.mxu0
        %s945 = sld [smem:[#allocation4 + $0x1]]
        %vm946 = vcmp.ge.f32.partialorder %v927, 0.0
        %vm947 = vcmp.ge.f32.partialorder %v932, 0.0
        %vm948 = vcmp.ge.f32.partialorder %v937, 0.0
        %vm949 = vcmp.ge.f32.partialorder %v942, 0.0
        %v950 = vstv %s945
        %v951 = vmul.f32 %v950, %v927
        %v952 = vmul.f32 %v950, %v932
        %v953 = vmul.f32 %v950, %v937
        %v954 = vmul.f32 %v950, %v942
        %v955 = vsel %vm946, %v927, %v951
        %v956 = vsel %vm947, %v932, %v952
        %v957 = vsel %vm948, %v937, %v953
        %v958 = vsel %vm949, %v942, %v954
        %v959 = vadd.f32 %v955, %v348
        %v960 = vadd.f32 %v956, %v349
        %v961 = vadd.f32 %v957, %v350
        %v962 = vadd.f32 %v958, %v351
        %963 = vst [vmem:[#allocation2 + $0x20] sm:$0xff] %v959
        %964 = vst [vmem:[#allocation2 + $0x28] sm:$0xff] %v960
        %965 = vst [vmem:[#allocation2 + $0x30] sm:$0xff] %v961
        %966 = vst [vmem:[#allocation2 + $0x38] sm:$0xff] %v962
        %v967 = vld [vmem:[#allocation2 + $0x17] sm:$0xff]
        %v968 = vld [vmem:[#allocation2 + $0x1f] sm:$0xff]
        %v969 = vld [vmem:[#allocation2 + $0x27] sm:$0xff]
        %v970 = vld [vmem:[#allocation2 + $0x2f] sm:$0xff]
        %v971 = vld [vmem:[#allocation2 + $0x1a] sm:$0xff]
        %v972 = vld [vmem:[#allocation2 + $0x22] sm:$0xff]
        %v973 = vld [vmem:[#allocation2 + $0x2a] sm:$0xff]
        %v974 = vld [vmem:[#allocation2 + $0x32] sm:$0xff]
        %v975 = vld [vmem:[#allocation2 + $0x1d] sm:$0xff]
        %v976 = vld [vmem:[#allocation2 + $0x25] sm:$0xff]
        %v977 = vld [vmem:[#allocation2 + $0x2d] sm:$0xff]
        %v978 = vld [vmem:[#allocation2 + $0x35] sm:$0xff]
        %v979 = vld [vmem:[#allocation2 + $0x20] sm:$0xff]
        %v980 = vld [vmem:[#allocation2 + $0x28] sm:$0xff]
        %v981 = vld [vmem:[#allocation2 + $0x30] sm:$0xff]
        %v982 = vld [vmem:[#allocation2 + $0x38] sm:$0xff]
        %v983 = vld [vmem:[#allocation2 + $0x23] sm:$0xff]
        %v984 = vld [vmem:[#allocation2 + $0x2b] sm:$0xff]
        %v985 = vld [vmem:[#allocation2 + $0x33] sm:$0xff]
        %v986 = vld [vmem:[#allocation2 + $0x3b] sm:$0xff]
        %v987 = vld [vmem:[#allocation2 + $0x26] sm:$0xff]
        %v988 = vld [vmem:[#allocation2 + $0x2e] sm:$0xff]
        %v989 = vld [vmem:[#allocation2 + $0x36] sm:$0xff]
        %v990 = vld [vmem:[#allocation2 + $0x3e] sm:$0xff]
        %v991 = vld [vmem:[#allocation2 + $0x29] sm:$0xff]
        %v992 = vld [vmem:[#allocation2 + $0x31] sm:$0xff]
        %v993 = vld [vmem:[#allocation2 + $0x39] sm:$0xff]
        %v994 = vld [vmem:[#allocation2 + $0x41] sm:$0xff]
        %s995 = scalar_lea.vmem %s2, 896
        %v996 = vld [vmem:[%s995] sm:$0xff]
        %v997 = vld [vmem:[%s995 + $0x8] sm:$0xff]
        %v998 = vld [vmem:[%s995 + $0x10] sm:$0xff]
        %v999 = vld [vmem:[%s995 + $0x18] sm:$0xff]
        %v1000 = vld [vmem:[%s995 + $0x20] sm:$0xff]
        %v1001 = vld [vmem:[%s995 + $0x28] sm:$0xff]
        %v1002 = vld [vmem:[%s995 + $0x30] sm:$0xff]
        %v1003 = vld [vmem:[%s995 + $0x38] sm:$0xff]
        %v1004 = vld [vmem:[%s995 + $0x40] sm:$0xff]
        %v1005 = vld [vmem:[%s995 + $0x48] sm:$0xff]
        %v1006 = vld [vmem:[%s995 + $0x50] sm:$0xff]
        %v1007 = vld [vmem:[%s995 + $0x58] sm:$0xff]
        %v1008 = vld [vmem:[%s995 + $0x60] sm:$0xff]
        %v1009 = vld [vmem:[%s995 + $0x68] sm:$0xff]
        %v1010 = vld [vmem:[%s995 + $0x70] sm:$0xff]
        %v1011 = vld [vmem:[%s995 + $0x78] sm:$0xff]
        %v1012 = vld [vmem:[%s995 + $0x80] sm:$0xff]
        %v1013 = vld [vmem:[%s995 + $0x88] sm:$0xff]
        %v1014 = vld [vmem:[%s995 + $0x90] sm:$0xff]
        %v1015 = vld [vmem:[%s995 + $0x98] sm:$0xff]
        %v1016 = vld [vmem:[%s995 + $0xa0] sm:$0xff]
        %v1017 = vld [vmem:[%s995 + $0xa8] sm:$0xff]
        %v1018 = vld [vmem:[%s995 + $0xb0] sm:$0xff]
        %v1019 = vld [vmem:[%s995 + $0xb8] sm:$0xff]
        %v1020 = vld [vmem:[%s995 + $0xc0] sm:$0xff]
        %v1021 = vld [vmem:[%s995 + $0xc8] sm:$0xff]
        %v1022 = vld [vmem:[%s995 + $0xd0] sm:$0xff]
        %v1023 = vld [vmem:[%s995 + $0xd8] sm:$0xff]
        %v1024 = vld [vmem:[%s995 + $0xe0] sm:$0xff]
        %v1025 = vld [vmem:[%s995 + $0xe8] sm:$0xff]
        %v1026 = vld [vmem:[%s995 + $0xf0] sm:$0xff]
        %v1027 = vld [vmem:[%s995 + $0xf8] sm:$0xff]
        %v1028 = vld [vmem:[%s995 + $0x100] sm:$0xff]
        %v1029 = vld [vmem:[%s995 + $0x108] sm:$0xff]
        %v1030 = vld [vmem:[%s995 + $0x110] sm:$0xff]
        %v1031 = vld [vmem:[%s995 + $0x118] sm:$0xff]
        %v1032 = vld [vmem:[%s995 + $0x120] sm:$0xff]
        %v1033 = vld [vmem:[%s995 + $0x128] sm:$0xff]
        %v1034 = vld [vmem:[%s995 + $0x130] sm:$0xff]
        %v1035 = vld [vmem:[%s995 + $0x138] sm:$0xff]
        %v1036 = vld [vmem:[%s995 + $0x140] sm:$0xff]
        %v1037 = vld [vmem:[%s995 + $0x148] sm:$0xff]
        %v1038 = vld [vmem:[%s995 + $0x150] sm:$0xff]
        %v1039 = vld [vmem:[%s995 + $0x158] sm:$0xff]
        %v1040 = vld [vmem:[%s995 + $0x160] sm:$0xff]
        %v1041 = vld [vmem:[%s995 + $0x168] sm:$0xff]
        %v1042 = vld [vmem:[%s995 + $0x170] sm:$0xff]
        %v1043 = vld [vmem:[%s995 + $0x178] sm:$0xff]
        %v1044 = vld [vmem:[%s995 + $0x180] sm:$0xff]
        %v1045 = vld [vmem:[%s995 + $0x188] sm:$0xff]
        %v1046 = vld [vmem:[%s995 + $0x190] sm:$0xff]
        %v1047 = vld [vmem:[%s995 + $0x198] sm:$0xff]
        %v1048 = vld [vmem:[%s995 + $0x1a0] sm:$0xff]
        %v1049 = vld [vmem:[%s995 + $0x1a8] sm:$0xff]
        %v1050 = vld [vmem:[%s995 + $0x1b0] sm:$0xff]
        %v1051 = vld [vmem:[%s995 + $0x1b8] sm:$0xff]
        %v1052 = vld [vmem:[%s995 + $0x1c0] sm:$0xff]
        %v1053 = vld [vmem:[%s995 + $0x1c8] sm:$0xff]
        %v1054 = vld [vmem:[%s995 + $0x1d0] sm:$0xff]
        %v1055 = vld [vmem:[%s995 + $0x1d8] sm:$0xff]
        %v1056 = vld [vmem:[%s995 + $0x1e0] sm:$0xff]
        %v1057 = vld [vmem:[%s995 + $0x1e8] sm:$0xff]
        %v1058 = vld [vmem:[%s995 + $0x1f0] sm:$0xff]
        %v1059 = vld [vmem:[%s995 + $0x1f8] sm:$0xff]
        %v1060 = vld [vmem:[%s995 + $0x200] sm:$0xff]
        %v1061 = vld [vmem:[%s995 + $0x208] sm:$0xff]
        %v1062 = vld [vmem:[%s995 + $0x210] sm:$0xff]
        %v1063 = vld [vmem:[%s995 + $0x218] sm:$0xff]
        %v1064 = vld [vmem:[%s995 + $0x220] sm:$0xff]
        %v1065 = vld [vmem:[%s995 + $0x228] sm:$0xff]
        %v1066 = vld [vmem:[%s995 + $0x230] sm:$0xff]
        %v1067 = vld [vmem:[%s995 + $0x238] sm:$0xff]
        %v1068 = vld [vmem:[%s995 + $0x240] sm:$0xff]
        %v1069 = vld [vmem:[%s995 + $0x248] sm:$0xff]
        %v1070 = vld [vmem:[%s995 + $0x250] sm:$0xff]
        %v1071 = vld [vmem:[%s995 + $0x258] sm:$0xff]
        %v1072 = vld [vmem:[%s995 + $0x260] sm:$0xff]
        %v1073 = vld [vmem:[%s995 + $0x268] sm:$0xff]
        %v1074 = vld [vmem:[%s995 + $0x270] sm:$0xff]
        %v1075 = vld [vmem:[%s995 + $0x278] sm:$0xff]
        %v1076 = vld [vmem:[%s995 + $0x280] sm:$0xff]
        %v1077 = vld [vmem:[%s995 + $0x288] sm:$0xff]
        %v1078 = vld [vmem:[%s995 + $0x290] sm:$0xff]
        %v1079 = vld [vmem:[%s995 + $0x298] sm:$0xff]
        %v1080 = vld [vmem:[%s995 + $0x2a0] sm:$0xff]
        %v1081 = vld [vmem:[%s995 + $0x2a8] sm:$0xff]
        %v1082 = vld [vmem:[%s995 + $0x2b0] sm:$0xff]
        %v1083 = vld [vmem:[%s995 + $0x2b8] sm:$0xff]
        %v1084 = vld [vmem:[%s995 + $0x2c0] sm:$0xff]
        %v1085 = vld [vmem:[%s995 + $0x2c8] sm:$0xff]
        %v1086 = vld [vmem:[%s995 + $0x2d0] sm:$0xff]
        %v1087 = vld [vmem:[%s995 + $0x2d8] sm:$0xff]
        %v1088 = vld [vmem:[%s995 + $0x2e0] sm:$0xff]
        %v1089 = vld [vmem:[%s995 + $0x2e8] sm:$0xff]
        %v1090 = vld [vmem:[%s995 + $0x2f0] sm:$0xff]
        %v1091 = vld [vmem:[%s995 + $0x2f8] sm:$0xff]
        %v1092 = vld [vmem:[%s995 + $0x300] sm:$0xff]
        %v1093 = vld [vmem:[%s995 + $0x308] sm:$0xff]
        %v1094 = vld [vmem:[%s995 + $0x310] sm:$0xff]
        %v1095 = vld [vmem:[%s995 + $0x318] sm:$0xff]
        %v1096 = vld [vmem:[%s995 + $0x320] sm:$0xff]
        %v1097 = vld [vmem:[%s995 + $0x328] sm:$0xff]
        %v1098 = vld [vmem:[%s995 + $0x330] sm:$0xff]
        %v1099 = vld [vmem:[%s995 + $0x338] sm:$0xff]
        %v1100 = vld [vmem:[%s995 + $0x340] sm:$0xff]
        %v1101 = vld [vmem:[%s995 + $0x348] sm:$0xff]
        %v1102 = vld [vmem:[%s995 + $0x350] sm:$0xff]
        %v1103 = vld [vmem:[%s995 + $0x358] sm:$0xff]
        %v1104 = vld [vmem:[%s995 + $0x360] sm:$0xff]
        %v1105 = vld [vmem:[%s995 + $0x368] sm:$0xff]
        %v1106 = vld [vmem:[%s995 + $0x370] sm:$0xff]
        %v1107 = vld [vmem:[%s995 + $0x378] sm:$0xff]
        %s1108 = scalar_lea.vmem %s3, 1
        %v1109 = vld [vmem:[%s1108] sm:$0x1]
        %v1111 = vlaneseq
        %v1112 = vshrl.u32 %v1111, 7
        %v1113 = vsub.s32 0, %v1112
        %v1114 = vrot.slane %v1109, %v1113
        %1116 = vmatprep.subr.mxu0 0.0
        %1117 = vmatpush1.msra.mxu0 %v996
        %1118 = vmatprep.subr.mxu0 0.0
        %1119 = vmatpush1.msra.mxu0 %v997
        %1120 = vmatprep.subr.mxu0 0.0
        %1121 = vmatpush1.msra.mxu0 %v998
        %1122 = vmatprep.subr.mxu0 0.0
        %1123 = vmatpush1.msra.mxu0 %v999
        %1124 = vmatprep.subr.mxu0 0.0
        %1125 = vmatpush1.msra.mxu0 %v1000
        %1126 = vmatprep.subr.mxu0 0.0
        %1127 = vmatpush1.msra.mxu0 %v1001
        %1128 = vmatprep.subr.mxu0 0.0
        %1129 = vmatpush1.msra.mxu0 %v1002
        %1130 = vmatprep.subr.mxu0 0.0
        %1131 = vmatpush1.msra.mxu0 %v1003
        %1132 = vmatprep.subr.mxu0 0.0
        %1133 = vmatpush1.msra.mxu0 %v1004
        %1134 = vmatprep.subr.mxu0 0.0
        %1135 = vmatpush1.msra.mxu0 %v1005
        %1136 = vmatprep.subr.mxu0 0.0
        %1137 = vmatpush1.msra.mxu0 %v1006
        %1138 = vmatprep.subr.mxu0 0.0
        %1139 = vmatpush1.msra.mxu0 %v1007
        %1140 = vmatprep.subr.mxu0 0.0
        %1141 = vmatpush1.msra.mxu0 %v1008
        %1142 = vmatprep.subr.mxu0 0.0
        %1143 = vmatpush1.msra.mxu0 %v1009
        %1144 = vmatprep.subr.mxu0 0.0
        %1145 = vmatpush1.msra.mxu0 %v1010
        %1146 = vmatprep.subr.mxu0 0.0
        %1147 = vmatpush1.msra.mxu0 %v1011
        %1148 = vmatprep.subr.mxu0 0.0
        %1149 = vmatpush1.msra.mxu0 %v1012
        %1150 = vmatprep.subr.mxu0 0.0
        %1151 = vmatpush1.msra.mxu0 %v1013
        %1152 = vmatprep.subr.mxu0 0.0
        %1153 = vmatpush1.msra.mxu0 %v1014
        %1154 = vmatprep.subr.mxu0 0.0
        %1155 = vmatpush1.msra.mxu0 %v1015
        %1156 = vmatprep.subr.mxu0 0.0
        %1157 = vmatpush1.msra.mxu0 %v1016
        %1158 = vmatprep.subr.mxu0 0.0
        %1159 = vmatpush1.msra.mxu0 %v1017
        %1160 = vmatprep.subr.mxu0 0.0
        %1161 = vmatpush1.msra.mxu0 %v1018
        %1162 = vmatprep.subr.mxu0 0.0
        %1163 = vmatpush1.msra.mxu0 %v1019
        %1164 = vmatprep.subr.mxu0 0.0
        %1165 = vmatpush1.msra.mxu0 %v1020
        %1166 = vmatprep.subr.mxu0 0.0
        %1167 = vmatpush1.msra.mxu0 %v1021
        %1168 = vmatprep.subr.mxu0 0.0
        %1169 = vmatpush1.msra.mxu0 %v1022
        %1170 = vmatprep.subr.mxu0 0.0
        %1171 = vmatpush1.msra.mxu0 %v1023
        %1172 = vmatprep.subr.mxu0 0.0
        %1173 = vmatpush1.msra.mxu0 %v1024
        %1174 = vmatprep.subr.mxu0 0.0
        %1175 = vmatpush1.msra.mxu0 %v1025
        %1176 = vmatprep.subr.mxu0 0.0
        %1177 = vmatpush1.msra.mxu0 %v1026
        %1178 = vmatprep.subr.mxu0 0.0
        %1179 = vmatpush1.msra.mxu0 %v1027
        %1180 = vmatprep.mubr.f32.mxu0 %v971
        %1181 = vmatmul.mubr.f32.gmra.mrb[0].mxu0 %v967
        %v1182 = vpop.f32.mrb[0].mxu0
        %v1183 = vadd.f32 %v1114, %v1182
        %v1184 = vpop.f32.mrb[0].mxu0
        %1185 = vmatprep.mubr.f32.mxu0 %v972
        %1186 = vmatmul.mubr.f32.gmra.mrb[0].mxu0 %v968
        %v1187 = vpop.f32.mrb[0].mxu0
        %v1188 = vadd.f32 %v1114, %v1187
        %v1189 = vpop.f32.mrb[0].mxu0
        %1190 = vmatprep.mubr.f32.mxu0 %v973
        %1191 = vmatmul.mubr.f32.gmra.mrb[0].mxu0 %v969
        %v1192 = vpop.f32.mrb[0].mxu0
        %v1193 = vadd.f32 %v1114, %v1192
        %v1194 = vpop.f32.mrb[0].mxu0
        %1195 = vmatprep.mubr.f32.mxu0 %v974
        %1196 = vmatmul.mubr.f32.gmra.mrb[0].mxu0 %v970
        %v1197 = vpop.f32.mrb[0].mxu0
        %v1198 = vadd.f32 %v1114, %v1197
        %v1199 = vpop.f32.mrb[0].mxu0
        %1200 = vdwg.mxu0
        %1201 = vmatprep.subr.mxu0 0.0
        %1202 = vmatpush1.msra.mxu0 %v1028
        %1203 = vmatprep.subr.mxu0 0.0
        %1204 = vmatpush1.msra.mxu0 %v1029
        %1205 = vmatprep.subr.mxu0 0.0
        %1206 = vmatpush1.msra.mxu0 %v1030
        %1207 = vmatprep.subr.mxu0 0.0
        %1208 = vmatpush1.msra.mxu0 %v1031
        %1209 = vmatprep.subr.mxu0 0.0
        %1210 = vmatpush1.msra.mxu0 %v1032
        %1211 = vmatprep.subr.mxu0 0.0
        %1212 = vmatpush1.msra.mxu0 %v1033
        %1213 = vmatprep.subr.mxu0 0.0
        %1214 = vmatpush1.msra.mxu0 %v1034
        %1215 = vmatprep.subr.mxu0 0.0
        %1216 = vmatpush1.msra.mxu0 %v1035
        %1217 = vmatprep.subr.mxu0 0.0
        %1218 = vmatpush1.msra.mxu0 %v1036
        %1219 = vmatprep.subr.mxu0 0.0
        %1220 = vmatpush1.msra.mxu0 %v1037
        %1221 = vmatprep.subr.mxu0 0.0
        %1222 = vmatpush1.msra.mxu0 %v1038
        %1223 = vmatprep.subr.mxu0 0.0
        %1224 = vmatpush1.msra.mxu0 %v1039
        %1225 = vmatprep.subr.mxu0 0.0
        %1226 = vmatpush1.msra.mxu0 %v1040
        %1227 = vmatprep.subr.mxu0 0.0
        %1228 = vmatpush1.msra.mxu0 %v1041
        %1229 = vmatprep.subr.mxu0 0.0
        %1230 = vmatpush1.msra.mxu0 %v1042
        %1231 = vmatprep.subr.mxu0 0.0
        %1232 = vmatpush1.msra.mxu0 %v1043
        %1233 = vmatprep.subr.mxu0 0.0
        %1234 = vmatpush1.msra.mxu0 %v1044
        %1235 = vmatprep.subr.mxu0 0.0
        %1236 = vmatpush1.msra.mxu0 %v1045
        %1237 = vmatprep.subr.mxu0 0.0
        %1238 = vmatpush1.msra.mxu0 %v1046
        %1239 = vmatprep.subr.mxu0 0.0
        %1240 = vmatpush1.msra.mxu0 %v1047
        %1241 = vmatprep.subr.mxu0 0.0
        %1242 = vmatpush1.msra.mxu0 %v1048
        %1243 = vmatprep.subr.mxu0 0.0
        %1244 = vmatpush1.msra.mxu0 %v1049
        %1245 = vmatprep.subr.mxu0 0.0
        %1246 = vmatpush1.msra.mxu0 %v1050
        %1247 = vmatprep.subr.mxu0 0.0
        %1248 = vmatpush1.msra.mxu0 %v1051
        %1249 = vmatprep.subr.mxu0 0.0
        %1250 = vmatpush1.msra.mxu0 %v1052
        %1251 = vmatprep.subr.mxu0 0.0
        %1252 = vmatpush1.msra.mxu0 %v1053
        %1253 = vmatprep.subr.mxu0 0.0
        %1254 = vmatpush1.msra.mxu0 %v1054
        %1255 = vmatprep.subr.mxu0 0.0
        %1256 = vmatpush1.msra.mxu0 %v1055
        %1257 = vmatprep.subr.mxu0 0.0
        %1258 = vmatpush1.msra.mxu0 %v1056
        %1259 = vmatprep.subr.mxu0 0.0
        %1260 = vmatpush1.msra.mxu0 %v1057
        %1261 = vmatprep.subr.mxu0 0.0
        %1262 = vmatpush1.msra.mxu0 %v1058
        %1263 = vmatprep.subr.mxu0 0.0
        %1264 = vmatpush1.msra.mxu0 %v1059
        %1265 = vmatprep.mubr.f32.mxu0 %v979
        %1266 = vmatmul.mubr.f32.gmra.mrb[0].mxu0 %v975
        %v1267 = vpop.f32.mrb[0].mxu0
        %v1268 = vadd.f32 %v1183, %v1267
        %v1269 = vpop.f32.mrb[0].mxu0
        %1270 = vmatprep.mubr.f32.mxu0 %v980
        %1271 = vmatmul.mubr.f32.gmra.mrb[0].mxu0 %v976
        %v1272 = vpop.f32.mrb[0].mxu0
        %v1273 = vadd.f32 %v1188, %v1272
        %v1274 = vpop.f32.mrb[0].mxu0
        %1275 = vmatprep.mubr.f32.mxu0 %v981
        %1276 = vmatmul.mubr.f32.gmra.mrb[0].mxu0 %v977
        %v1277 = vpop.f32.mrb[0].mxu0
        %v1278 = vadd.f32 %v1193, %v1277
        %v1279 = vpop.f32.mrb[0].mxu0
        %1280 = vmatprep.mubr.f32.mxu0 %v982
        %1281 = vmatmul.mubr.f32.gmra.mrb[0].mxu0 %v978
        %v1282 = vpop.f32.mrb[0].mxu0
        %v1283 = vadd.f32 %v1198, %v1282
        %v1284 = vpop.f32.mrb[0].mxu0
        %1285 = vdwg.mxu0
        %1286 = vmatprep.subr.mxu0 0.0
        %1287 = vmatpush1.msra.mxu0 %v1060
        %1288 = vmatprep.subr.mxu0 0.0
        %1289 = vmatpush1.msra.mxu0 %v1061
        %1290 = vmatprep.subr.mxu0 0.0
        %1291 = vmatpush1.msra.mxu0 %v1062
        %1292 = vmatprep.subr.mxu0 0.0
        %1293 = vmatpush1.msra.mxu0 %v1063
        %1294 = vmatprep.subr.mxu0 0.0
        %1295 = vmatpush1.msra.mxu0 %v1064
        %1296 = vmatprep.subr.mxu0 0.0
        %1297 = vmatpush1.msra.mxu0 %v1065
        %1298 = vmatprep.subr.mxu0 0.0
        %1299 = vmatpush1.msra.mxu0 %v1066
        %1300 = vmatprep.subr.mxu0 0.0
        %1301 = vmatpush1.msra.mxu0 %v1067
        %1302 = vmatprep.subr.mxu0 0.0
        %1303 = vmatpush1.msra.mxu0 %v1068
        %1304 = vmatprep.subr.mxu0 0.0
        %1305 = vmatpush1.msra.mxu0 %v1069
        %1306 = vmatprep.subr.mxu0 0.0
        %1307 = vmatpush1.msra.mxu0 %v1070
        %1308 = vmatprep.subr.mxu0 0.0
        %1309 = vmatpush1.msra.mxu0 %v1071
        %1310 = vmatprep.subr.mxu0 0.0
        %1311 = vmatpush1.msra.mxu0 %v1072
        %1312 = vmatprep.subr.mxu0 0.0
        %1313 = vmatpush1.msra.mxu0 %v1073
        %1314 = vmatprep.subr.mxu0 0.0
        %1315 = vmatpush1.msra.mxu0 %v1074
        %1316 = vmatprep.subr.mxu0 0.0
        %1317 = vmatpush1.msra.mxu0 %v1075
        %1318 = vmatprep.subr.mxu0 0.0
        %1319 = vmatpush1.msra.mxu0 %v1076
        %1320 = vmatprep.subr.mxu0 0.0
        %1321 = vmatpush1.msra.mxu0 %v1077
        %1322 = vmatprep.subr.mxu0 0.0
        %1323 = vmatpush1.msra.mxu0 %v1078
        %1324 = vmatprep.subr.mxu0 0.0
        %1325 = vmatpush1.msra.mxu0 %v1079
        %1326 = vmatprep.subr.mxu0 0.0
        %1327 = vmatpush1.msra.mxu0 %v1080
        %1328 = vmatprep.subr.mxu0 0.0
        %1329 = vmatpush1.msra.mxu0 %v1081
        %1330 = vmatprep.subr.mxu0 0.0
        %1331 = vmatpush1.msra.mxu0 %v1082
        %1332 = vmatprep.subr.mxu0 0.0
        %1333 = vmatpush1.msra.mxu0 %v1083
        %1334 = vmatprep.subr.mxu0 0.0
        %1335 = vmatpush1.msra.mxu0 %v1084
        %1336 = vmatprep.subr.mxu0 0.0
        %1337 = vmatpush1.msra.mxu0 %v1085
        %1338 = vmatprep.subr.mxu0 0.0
        %1339 = vmatpush1.msra.mxu0 %v1086
        %1340 = vmatprep.subr.mxu0 0.0
        %1341 = vmatpush1.msra.mxu0 %v1087
        %1342 = vmatprep.subr.mxu0 0.0
        %1343 = vmatpush1.msra.mxu0 %v1088
        %1344 = vmatprep.subr.mxu0 0.0
        %1345 = vmatpush1.msra.mxu0 %v1089
        %1346 = vmatprep.subr.mxu0 0.0
        %1347 = vmatpush1.msra.mxu0 %v1090
        %1348 = vmatprep.subr.mxu0 0.0
        %1349 = vmatpush1.msra.mxu0 %v1091
        %1350 = vmatprep.mubr.f32.mxu0 %v987
        %1351 = vmatmul.mubr.f32.gmra.mrb[0].mxu0 %v983
        %v1352 = vpop.f32.mrb[0].mxu0
        %v1353 = vadd.f32 %v1268, %v1352
        %v1354 = vpop.f32.mrb[0].mxu0
        %1355 = vmatprep.mubr.f32.mxu0 %v988
        %1356 = vmatmul.mubr.f32.gmra.mrb[0].mxu0 %v984
        %v1357 = vpop.f32.mrb[0].mxu0
        %v1358 = vadd.f32 %v1273, %v1357
        %v1359 = vpop.f32.mrb[0].mxu0
        %1360 = vmatprep.mubr.f32.mxu0 %v989
        %1361 = vmatmul.mubr.f32.gmra.mrb[0].mxu0 %v985
        %v1362 = vpop.f32.mrb[0].mxu0
        %v1363 = vadd.f32 %v1278, %v1362
        %v1364 = vpop.f32.mrb[0].mxu0
        %1365 = vmatprep.mubr.f32.mxu0 %v990
        %1366 = vmatmul.mubr.f32.gmra.mrb[0].mxu0 %v986
        %v1367 = vpop.f32.mrb[0].mxu0
        %v1368 = vadd.f32 %v1283, %v1367
        %v1369 = vpop.f32.mrb[0].mxu0
        %1370 = vdwg.mxu0
        %1371 = vmatprep.subr.mxu0 0.0
        %1372 = vmatpush1.msra.mxu0 %v1092
        %1373 = vmatprep.subr.mxu0 0.0
        %1374 = vmatpush1.msra.mxu0 %v1093
        %1375 = vmatprep.subr.mxu0 0.0
        %1376 = vmatpush1.msra.mxu0 %v1094
        %1377 = vmatprep.subr.mxu0 0.0
        %1378 = vmatpush1.msra.mxu0 %v1095
        %1379 = vmatprep.subr.mxu0 0.0
        %1380 = vmatpush1.msra.mxu0 %v1096
        %1381 = vmatprep.subr.mxu0 0.0
        %1382 = vmatpush1.msra.mxu0 %v1097
        %1383 = vmatprep.subr.mxu0 0.0
        %1384 = vmatpush1.msra.mxu0 %v1098
        %1385 = vmatprep.subr.mxu0 0.0
        %1386 = vmatpush1.msra.mxu0 %v1099
        %1387 = vmatprep.subr.mxu0 0.0
        %1388 = vmatpush1.msra.mxu0 %v1100
        %1389 = vmatprep.subr.mxu0 0.0
        %1390 = vmatpush1.msra.mxu0 %v1101
        %1391 = vmatprep.subr.mxu0 0.0
        %1392 = vmatpush1.msra.mxu0 %v1102
        %1393 = vmatprep.subr.mxu0 0.0
        %1394 = vmatpush1.msra.mxu0 %v1103
        %1395 = vmatprep.subr.mxu0 0.0
        %1396 = vmatpush1.msra.mxu0 %v1104
        %1397 = vmatprep.subr.mxu0 0.0
        %1398 = vmatpush1.msra.mxu0 %v1105
        %1399 = vmatprep.subr.mxu0 0.0
        %1400 = vmatpush1.msra.mxu0 %v1106
        %1401 = vmatprep.subr.mxu0 0.0
        %1402 = vmatpush1.msra.mxu0 %v1107
        %1403 = vmatprep.subr.mxu0 0.0
        %1404 = vmatpush1.msra.mxu0 0.0
        %1405 = vmatprep.subr.mxu0 0.0
        %1406 = vmatpush1.msra.mxu0 0.0
        %1407 = vmatprep.subr.mxu0 0.0
        %1408 = vmatpush1.msra.mxu0 0.0
        %1409 = vmatprep.subr.mxu0 0.0
        %1410 = vmatpush1.msra.mxu0 0.0
        %1411 = vmatprep.subr.mxu0 0.0
        %1412 = vmatpush1.msra.mxu0 0.0
        %1413 = vmatprep.subr.mxu0 0.0
        %1414 = vmatpush1.msra.mxu0 0.0
        %1415 = vmatprep.subr.mxu0 0.0
        %1416 = vmatpush1.msra.mxu0 0.0
        %1417 = vmatprep.subr.mxu0 0.0
        %1418 = vmatpush1.msra.mxu0 0.0
        %1419 = vmatprep.subr.mxu0 0.0
        %1420 = vmatpush1.msra.mxu0 0.0
        %1421 = vmatprep.subr.mxu0 0.0
        %1422 = vmatpush1.msra.mxu0 0.0
        %1423 = vmatprep.subr.mxu0 0.0
        %1424 = vmatpush1.msra.mxu0 0.0
        %1425 = vmatprep.subr.mxu0 0.0
        %1426 = vmatpush1.msra.mxu0 0.0
        %1427 = vmatprep.subr.mxu0 0.0
        %1428 = vmatpush1.msra.mxu0 0.0
        %1429 = vmatprep.subr.mxu0 0.0
        %1430 = vmatpush1.msra.mxu0 0.0
        %1431 = vmatprep.subr.mxu0 0.0
        %1432 = vmatpush1.msra.mxu0 0.0
        %1433 = vmatprep.subr.mxu0 0.0
        %1434 = vmatpush1.msra.mxu0 0.0
        %1435 = vmatprep.mubr.f32.mxu0 0.0
        %1436 = vmatmul.mubr.f32.gmra.mrb[0].mxu0 %v991
        %v1437 = vpop.f32.mrb[0].mxu0
        %v1438 = vadd.f32 %v1353, %v1437
        %v1439 = vpop.f32.mrb[0].mxu0
        %1440 = vmatprep.mubr.f32.mxu0 0.0
        %1441 = vmatmul.mubr.f32.gmra.mrb[0].mxu0 %v992
        %v1442 = vpop.f32.mrb[0].mxu0
        %v1443 = vadd.f32 %v1358, %v1442
        %v1444 = vpop.f32.mrb[0].mxu0
        %1445 = vmatprep.mubr.f32.mxu0 0.0
        %1446 = vmatmul.mubr.f32.gmra.mrb[0].mxu0 %v993
        %v1447 = vpop.f32.mrb[0].mxu0
        %v1448 = vadd.f32 %v1363, %v1447
        %v1449 = vpop.f32.mrb[0].mxu0
        %1450 = vmatprep.mubr.f32.mxu0 0.0
        %1451 = vmatmul.mubr.f32.gmra.mrb[0].mxu0 %v994
        %v1452 = vpop.f32.mrb[0].mxu0
        %v1453 = vadd.f32 %v1368, %v1452
        %v1454 = vpop.f32.mrb[0].mxu0
        %1455 = vdwg.mxu0
        %s1456 = sld [smem:[#allocation4 + $0x2]]
        %vm1457 = vcmp.ge.f32.partialorder %v1438, 0.0
        %vm1458 = vcmp.ge.f32.partialorder %v1443, 0.0
        %vm1459 = vcmp.ge.f32.partialorder %v1448, 0.0
        %vm1460 = vcmp.ge.f32.partialorder %v1453, 0.0
        %v1461 = vstv %s1456
        %v1462 = vmul.f32 %v1461, %v1438
        %v1463 = vmul.f32 %v1461, %v1443
        %v1464 = vmul.f32 %v1461, %v1448
        %v1465 = vmul.f32 %v1461, %v1453
        %v1466 = vsel %vm1457, %v1438, %v1462
        %v1467 = vsel %vm1458, %v1443, %v1463
        %v1468 = vsel %vm1459, %v1448, %v1464
        %v1469 = vsel %vm1460, %v1453, %v1465
        %s1470 = scalar_lea.vmem %s4, 128
        %v1471 = vld [vmem:[%s1470] sm:$0xff]
        %v1472 = vld [vmem:[%s1470 + $0x8] sm:$0xff]
        %v1473 = vld [vmem:[%s1470 + $0x10] sm:$0xff]
        %v1474 = vld [vmem:[%s1470 + $0x18] sm:$0xff]
        %v1475 = vld [vmem:[%s1470 + $0x20] sm:$0xff]
        %v1476 = vld [vmem:[%s1470 + $0x28] sm:$0xff]
        %v1477 = vld [vmem:[%s1470 + $0x30] sm:$0xff]
        %v1478 = vld [vmem:[%s1470 + $0x38] sm:$0xff]
        %v1479 = vld [vmem:[%s1470 + $0x40] sm:$0xff]
        %v1480 = vld [vmem:[%s1470 + $0x48] sm:$0xff]
        %v1481 = vld [vmem:[%s1470 + $0x50] sm:$0xff]
        %v1482 = vld [vmem:[%s1470 + $0x58] sm:$0xff]
        %v1483 = vld [vmem:[%s1470 + $0x60] sm:$0xff]
        %v1484 = vld [vmem:[%s1470 + $0x68] sm:$0xff]
        %v1485 = vld [vmem:[%s1470 + $0x70] sm:$0xff]
        %v1486 = vld [vmem:[%s1470 + $0x78] sm:$0xff]
        %s1487 = scalar_lea.vmem %s5, 1
        %v1488 = vld [vmem:[%s1487] sm:$0x1]
        %v1490 = vlaneseq
        %v1491 = vshrl.u32 %v1490, 7
        %v1492 = vsub.s32 0, %v1491
        %v1493 = vrot.slane %v1488, %v1492
        %1495 = vmatprep.subr.mxu0 0.0
        %1496 = vmatpush1.msra.mxu0 %v1471
        %1497 = vmatprep.subr.mxu0 0.0
        %1498 = vmatpush1.msra.mxu0 %v1472
        %1499 = vmatprep.subr.mxu0 0.0
        %1500 = vmatpush1.msra.mxu0 %v1473
        %1501 = vmatprep.subr.mxu0 0.0
        %1502 = vmatpush1.msra.mxu0 %v1474
        %1503 = vmatprep.subr.mxu0 0.0
        %1504 = vmatpush1.msra.mxu0 %v1475
        %1505 = vmatprep.subr.mxu0 0.0
        %1506 = vmatpush1.msra.mxu0 %v1476
        %1507 = vmatprep.subr.mxu0 0.0
        %1508 = vmatpush1.msra.mxu0 %v1477
        %1509 = vmatprep.subr.mxu0 0.0
        %1510 = vmatpush1.msra.mxu0 %v1478
        %1511 = vmatprep.subr.mxu0 0.0
        %1512 = vmatpush1.msra.mxu0 %v1479
        %1513 = vmatprep.subr.mxu0 0.0
        %1514 = vmatpush1.msra.mxu0 %v1480
        %1515 = vmatprep.subr.mxu0 0.0
        %1516 = vmatpush1.msra.mxu0 %v1481
        %1517 = vmatprep.subr.mxu0 0.0
        %1518 = vmatpush1.msra.mxu0 %v1482
        %1519 = vmatprep.subr.mxu0 0.0
        %1520 = vmatpush1.msra.mxu0 %v1483
        %1521 = vmatprep.subr.mxu0 0.0
        %1522 = vmatpush1.msra.mxu0 %v1484
        %1523 = vmatprep.subr.mxu0 0.0
        %1524 = vmatpush1.msra.mxu0 %v1485
        %1525 = vmatprep.subr.mxu0 0.0
        %1526 = vmatpush1.msra.mxu0 %v1486
        %1527 = vmatprep.subr.mxu0 0.0
        %1528 = vmatpush1.msra.mxu0 0.0
        %1529 = vmatprep.subr.mxu0 0.0
        %1530 = vmatpush1.msra.mxu0 0.0
        %1531 = vmatprep.subr.mxu0 0.0
        %1532 = vmatpush1.msra.mxu0 0.0
        %1533 = vmatprep.subr.mxu0 0.0
        %1534 = vmatpush1.msra.mxu0 0.0
        %1535 = vmatprep.subr.mxu0 0.0
        %1536 = vmatpush1.msra.mxu0 0.0
        %1537 = vmatprep.subr.mxu0 0.0
        %1538 = vmatpush1.msra.mxu0 0.0
        %1539 = vmatprep.subr.mxu0 0.0
        %1540 = vmatpush1.msra.mxu0 0.0
        %1541 = vmatprep.subr.mxu0 0.0
        %1542 = vmatpush1.msra.mxu0 0.0
        %1543 = vmatprep.subr.mxu0 0.0
        %1544 = vmatpush1.msra.mxu0 0.0
        %1545 = vmatprep.subr.mxu0 0.0
        %1546 = vmatpush1.msra.mxu0 0.0
        %1547 = vmatprep.subr.mxu0 0.0
        %1548 = vmatpush1.msra.mxu0 0.0
        %1549 = vmatprep.subr.mxu0 0.0
        %1550 = vmatpush1.msra.mxu0 0.0
        %1551 = vmatprep.subr.mxu0 0.0
        %1552 = vmatpush1.msra.mxu0 0.0
        %1553 = vmatprep.subr.mxu0 0.0
        %1554 = vmatpush1.msra.mxu0 0.0
        %1555 = vmatprep.subr.mxu0 0.0
        %1556 = vmatpush1.msra.mxu0 0.0
        %1557 = vmatprep.subr.mxu0 0.0
        %1558 = vmatpush1.msra.mxu0 0.0
        %1559 = vmatprep.mubr.f32.mxu0 0.0
        %1560 = vmatmul.mubr.f32.gmra.mrb[0].mxu0 %v1466
        %v1561 = vpop.f32.mrb[0].mxu0
        %v1562 = vadd.f32 %v1493, %v1561
        %v1563 = vpop.f32.mrb[0].mxu0
        %1564 = vmatprep.mubr.f32.mxu0 0.0
        %1565 = vmatmul.mubr.f32.gmra.mrb[0].mxu0 %v1467
        %v1566 = vpop.f32.mrb[0].mxu0
        %v1567 = vadd.f32 %v1493, %v1566
        %v1568 = vpop.f32.mrb[0].mxu0
        %1569 = vmatprep.mubr.f32.mxu0 0.0
        %1570 = vmatmul.mubr.f32.gmra.mrb[0].mxu0 %v1468
        %v1571 = vpop.f32.mrb[0].mxu0
        %v1572 = vadd.f32 %v1493, %v1571
        %v1573 = vpop.f32.mrb[0].mxu0
        %1574 = vmatprep.mubr.f32.mxu0 0.0
        %1575 = vmatmul.mubr.f32.gmra.mrb[0].mxu0 %v1469
        %v1576 = vpop.f32.mrb[0].mxu0
        %v1577 = vadd.f32 %v1493, %v1576
        %v1578 = vpop.f32.mrb[0].mxu0
        %1579 = vdwg.mxu0
        %s1580 = sld [smem:[#allocation4 + $0x3]]
        %vm1581 = vcmp.ge.f32.partialorder %v1562, 0.0
        %vm1582 = vcmp.ge.f32.partialorder %v1567, 0.0
        %vm1583 = vcmp.ge.f32.partialorder %v1572, 0.0
        %vm1584 = vcmp.ge.f32.partialorder %v1577, 0.0
        %v1585 = vstv %s1580
        %v1586 = vmul.f32 %v1585, %v1562
        %v1587 = vmul.f32 %v1585, %v1567
        %v1588 = vmul.f32 %v1585, %v1572
        %v1589 = vmul.f32 %v1585, %v1577
        %v1590 = vsel %vm1581, %v1562, %v1586
        %v1591 = vsel %vm1582, %v1567, %v1587
        %v1592 = vsel %vm1583, %v1572, %v1588
        %v1593 = vsel %vm1584, %v1577, %v1589
        %v1594 = vadd.f32 %v1590, %v979
        %v1595 = vadd.f32 %v1591, %v980
        %v1596 = vadd.f32 %v1592, %v981
        %v1597 = vadd.f32 %v1593, %v982
        %1598 = vst [vmem:[#allocation2 + $0x20] sm:$0xff] %v1594
        %1599 = vst [vmem:[#allocation2 + $0x28] sm:$0xff] %v1595
        %1600 = vst [vmem:[#allocation2 + $0x30] sm:$0xff] %v1596
        %1601 = vst [vmem:[#allocation2 + $0x38] sm:$0xff] %v1597
        %v1602 = vld [vmem:[#allocation2 + $0x11] sm:$0xff]
        %v1603 = vld [vmem:[#allocation2 + $0x19] sm:$0xff]
        %v1604 = vld [vmem:[#allocation2 + $0x21] sm:$0xff]
        %v1605 = vld [vmem:[#allocation2 + $0x29] sm:$0xff]
        %v1606 = vld [vmem:[#allocation2 + $0x16] sm:$0xff]
        %v1607 = vld [vmem:[#allocation2 + $0x1e] sm:$0xff]
        %v1608 = vld [vmem:[#allocation2 + $0x26] sm:$0xff]
        %v1609 = vld [vmem:[#allocation2 + $0x2e] sm:$0xff]
        %v1610 = vld [vmem:[#allocation2 + $0x1b] sm:$0xff]
        %v1611 = vld [vmem:[#allocation2 + $0x23] sm:$0xff]
        %v1612 = vld [vmem:[#allocation2 + $0x2b] sm:$0xff]
        %v1613 = vld [vmem:[#allocation2 + $0x33] sm:$0xff]
        %v1614 = vld [vmem:[#allocation2 + $0x20] sm:$0xff]
        %v1615 = vld [vmem:[#allocation2 + $0x28] sm:$0xff]
        %v1616 = vld [vmem:[#allocation2 + $0x30] sm:$0xff]
        %v1617 = vld [vmem:[#allocation2 + $0x38] sm:$0xff]
        %v1618 = vld [vmem:[#allocation2 + $0x25] sm:$0xff]
        %v1619 = vld [vmem:[#allocation2 + $0x2d] sm:$0xff]
        %v1620 = vld [vmem:[#allocation2 + $0x35] sm:$0xff]
        %v1621 = vld [vmem:[#allocation2 + $0x3d] sm:$0xff]
        %v1622 = vld [vmem:[#allocation2 + $0x2a] sm:$0xff]
        %v1623 = vld [vmem:[#allocation2 + $0x32] sm:$0xff]
        %v1624 = vld [vmem:[#allocation2 + $0x3a] sm:$0xff]
        %v1625 = vld [vmem:[#allocation2 + $0x42] sm:$0xff]
        %v1626 = vld [vmem:[#allocation2 + $0x2f] sm:$0xff]
        %v1627 = vld [vmem:[#allocation2 + $0x37] sm:$0xff]
        %v1628 = vld [vmem:[#allocation2 + $0x3f] sm:$0xff]
        %v1629 = vld [vmem:[#allocation2 + $0x47] sm:$0xff]
        %s1630 = scalar_lea.vmem %s2, 1792
        %v1631 = vld [vmem:[%s1630] sm:$0xff]
        %v1632 = vld [vmem:[%s1630 + $0x8] sm:$0xff]
        %v1633 = vld [vmem:[%s1630 + $0x10] sm:$0xff]
        %v1634 = vld [vmem:[%s1630 + $0x18] sm:$0xff]
        %v1635 = vld [vmem:[%s1630 + $0x20] sm:$0xff]
        %v1636 = vld [vmem:[%s1630 + $0x28] sm:$0xff]
        %v1637 = vld [vmem:[%s1630 + $0x30] sm:$0xff]
        %v1638 = vld [vmem:[%s1630 + $0x38] sm:$0xff]
        %v1639 = vld [vmem:[%s1630 + $0x40] sm:$0xff]
        %v1640 = vld [vmem:[%s1630 + $0x48] sm:$0xff]
        %v1641 = vld [vmem:[%s1630 + $0x50] sm:$0xff]
        %v1642 = vld [vmem:[%s1630 + $0x58] sm:$0xff]
        %v1643 = vld [vmem:[%s1630 + $0x60] sm:$0xff]
        %v1644 = vld [vmem:[%s1630 + $0x68] sm:$0xff]
        %v1645 = vld [vmem:[%s1630 + $0x70] sm:$0xff]
        %v1646 = vld [vmem:[%s1630 + $0x78] sm:$0xff]
        %v1647 = vld [vmem:[%s1630 + $0x80] sm:$0xff]
        %v1648 = vld [vmem:[%s1630 + $0x88] sm:$0xff]
        %v1649 = vld [vmem:[%s1630 + $0x90] sm:$0xff]
        %v1650 = vld [vmem:[%s1630 + $0x98] sm:$0xff]
        %v1651 = vld [vmem:[%s1630 + $0xa0] sm:$0xff]
        %v1652 = vld [vmem:[%s1630 + $0xa8] sm:$0xff]
        %v1653 = vld [vmem:[%s1630 + $0xb0] sm:$0xff]
        %v1654 = vld [vmem:[%s1630 + $0xb8] sm:$0xff]
        %v1655 = vld [vmem:[%s1630 + $0xc0] sm:$0xff]
        %v1656 = vld [vmem:[%s1630 + $0xc8] sm:$0xff]
        %v1657 = vld [vmem:[%s1630 + $0xd0] sm:$0xff]
        %v1658 = vld [vmem:[%s1630 + $0xd8] sm:$0xff]
        %v1659 = vld [vmem:[%s1630 + $0xe0] sm:$0xff]
        %v1660 = vld [vmem:[%s1630 + $0xe8] sm:$0xff]
        %v1661 = vld [vmem:[%s1630 + $0xf0] sm:$0xff]
        %v1662 = vld [vmem:[%s1630 + $0xf8] sm:$0xff]
        %v1663 = vld [vmem:[%s1630 + $0x100] sm:$0xff]
        %v1664 = vld [vmem:[%s1630 + $0x108] sm:$0xff]
        %v1665 = vld [vmem:[%s1630 + $0x110] sm:$0xff]
        %v1666 = vld [vmem:[%s1630 + $0x118] sm:$0xff]
        %v1667 = vld [vmem:[%s1630 + $0x120] sm:$0xff]
        %v1668 = vld [vmem:[%s1630 + $0x128] sm:$0xff]
        %v1669 = vld [vmem:[%s1630 + $0x130] sm:$0xff]
        %v1670 = vld [vmem:[%s1630 + $0x138] sm:$0xff]
        %v1671 = vld [vmem:[%s1630 + $0x140] sm:$0xff]
        %v1672 = vld [vmem:[%s1630 + $0x148] sm:$0xff]
        %v1673 = vld [vmem:[%s1630 + $0x150] sm:$0xff]
        %v1674 = vld [vmem:[%s1630 + $0x158] sm:$0xff]
        %v1675 = vld [vmem:[%s1630 + $0x160] sm:$0xff]
        %v1676 = vld [vmem:[%s1630 + $0x168] sm:$0xff]
        %v1677 = vld [vmem:[%s1630 + $0x170] sm:$0xff]
        %v1678 = vld [vmem:[%s1630 + $0x178] sm:$0xff]
        %v1679 = vld [vmem:[%s1630 + $0x180] sm:$0xff]
        %v1680 = vld [vmem:[%s1630 + $0x188] sm:$0xff]
        %v1681 = vld [vmem:[%s1630 + $0x190] sm:$0xff]
        %v1682 = vld [vmem:[%s1630 + $0x198] sm:$0xff]
        %v1683 = vld [vmem:[%s1630 + $0x1a0] sm:$0xff]
        %v1684 = vld [vmem:[%s1630 + $0x1a8] sm:$0xff]
        %v1685 = vld [vmem:[%s1630 + $0x1b0] sm:$0xff]
        %v1686 = vld [vmem:[%s1630 + $0x1b8] sm:$0xff]
        %v1687 = vld [vmem:[%s1630 + $0x1c0] sm:$0xff]
        %v1688 = vld [vmem:[%s1630 + $0x1c8] sm:$0xff]
        %v1689 = vld [vmem:[%s1630 + $0x1d0] sm:$0xff]
        %v1690 = vld [vmem:[%s1630 + $0x1d8] sm:$0xff]
        %v1691 = vld [vmem:[%s1630 + $0x1e0] sm:$0xff]
        %v1692 = vld [vmem:[%s1630 + $0x1e8] sm:$0xff]
        %v1693 = vld [vmem:[%s1630 + $0x1f0] sm:$0xff]
        %v1694 = vld [vmem:[%s1630 + $0x1f8] sm:$0xff]
        %v1695 = vld [vmem:[%s1630 + $0x200] sm:$0xff]
        %v1696 = vld [vmem:[%s1630 + $0x208] sm:$0xff]
        %v1697 = vld [vmem:[%s1630 + $0x210] sm:$0xff]
        %v1698 = vld [vmem:[%s1630 + $0x218] sm:$0xff]
        %v1699 = vld [vmem:[%s1630 + $0x220] sm:$0xff]
        %v1700 = vld [vmem:[%s1630 + $0x228] sm:$0xff]
        %v1701 = vld [vmem:[%s1630 + $0x230] sm:$0xff]
        %v1702 = vld [vmem:[%s1630 + $0x238] sm:$0xff]
        %v1703 = vld [vmem:[%s1630 + $0x240] sm:$0xff]
        %v1704 = vld [vmem:[%s1630 + $0x248] sm:$0xff]
        %v1705 = vld [vmem:[%s1630 + $0x250] sm:$0xff]
        %v1706 = vld [vmem:[%s1630 + $0x258] sm:$0xff]
        %v1707 = vld [vmem:[%s1630 + $0x260] sm:$0xff]
        %v1708 = vld [vmem:[%s1630 + $0x268] sm:$0xff]
        %v1709 = vld [vmem:[%s1630 + $0x270] sm:$0xff]
        %v1710 = vld [vmem:[%s1630 + $0x278] sm:$0xff]
        %v1711 = vld [vmem:[%s1630 + $0x280] sm:$0xff]
        %v1712 = vld [vmem:[%s1630 + $0x288] sm:$0xff]
        %v1713 = vld [vmem:[%s1630 + $0x290] sm:$0xff]
        %v1714 = vld [vmem:[%s1630 + $0x298] sm:$0xff]
        %v1715 = vld [vmem:[%s1630 + $0x2a0] sm:$0xff]
        %v1716 = vld [vmem:[%s1630 + $0x2a8] sm:$0xff]
        %v1717 = vld [vmem:[%s1630 + $0x2b0] sm:$0xff]
        %v1718 = vld [vmem:[%s1630 + $0x2b8] sm:$0xff]
        %v1719 = vld [vmem:[%s1630 + $0x2c0] sm:$0xff]
        %v1720 = vld [vmem:[%s1630 + $0x2c8] sm:$0xff]
        %v1721 = vld [vmem:[%s1630 + $0x2d0] sm:$0xff]
        %v1722 = vld [vmem:[%s1630 + $0x2d8] sm:$0xff]
        %v1723 = vld [vmem:[%s1630 + $0x2e0] sm:$0xff]
        %v1724 = vld [vmem:[%s1630 + $0x2e8] sm:$0xff]
        %v1725 = vld [vmem:[%s1630 + $0x2f0] sm:$0xff]
        %v1726 = vld [vmem:[%s1630 + $0x2f8] sm:$0xff]
        %v1727 = vld [vmem:[%s1630 + $0x300] sm:$0xff]
        %v1728 = vld [vmem:[%s1630 + $0x308] sm:$0xff]
        %v1729 = vld [vmem:[%s1630 + $0x310] sm:$0xff]
        %v1730 = vld [vmem:[%s1630 + $0x318] sm:$0xff]
        %v1731 = vld [vmem:[%s1630 + $0x320] sm:$0xff]
        %v1732 = vld [vmem:[%s1630 + $0x328] sm:$0xff]
        %v1733 = vld [vmem:[%s1630 + $0x330] sm:$0xff]
        %v1734 = vld [vmem:[%s1630 + $0x338] sm:$0xff]
        %v1735 = vld [vmem:[%s1630 + $0x340] sm:$0xff]
        %v1736 = vld [vmem:[%s1630 + $0x348] sm:$0xff]
        %v1737 = vld [vmem:[%s1630 + $0x350] sm:$0xff]
        %v1738 = vld [vmem:[%s1630 + $0x358] sm:$0xff]
        %v1739 = vld [vmem:[%s1630 + $0x360] sm:$0xff]
        %v1740 = vld [vmem:[%s1630 + $0x368] sm:$0xff]
        %v1741 = vld [vmem:[%s1630 + $0x370] sm:$0xff]
        %v1742 = vld [vmem:[%s1630 + $0x378] sm:$0xff]
        %s1743 = scalar_lea.vmem %s3, 2
        %v1744 = vld [vmem:[%s1743] sm:$0x1]
        %v1746 = vlaneseq
        %v1747 = vshrl.u32 %v1746, 7
        %v1748 = vsub.s32 0, %v1747
        %v1749 = vrot.slane %v1744, %v1748
        %1751 = vmatprep.subr.mxu0 0.0
        %1752 = vmatpush1.msra.mxu0 %v1631
        %1753 = vmatprep.subr.mxu0 0.0
        %1754 = vmatpush1.msra.mxu0 %v1632
        %1755 = vmatprep.subr.mxu0 0.0
        %1756 = vmatpush1.msra.mxu0 %v1633
        %1757 = vmatprep.subr.mxu0 0.0
        %1758 = vmatpush1.msra.mxu0 %v1634
        %1759 = vmatprep.subr.mxu0 0.0
        %1760 = vmatpush1.msra.mxu0 %v1635
        %1761 = vmatprep.subr.mxu0 0.0
        %1762 = vmatpush1.msra.mxu0 %v1636
        %1763 = vmatprep.subr.mxu0 0.0
        %1764 = vmatpush1.msra.mxu0 %v1637
        %1765 = vmatprep.subr.mxu0 0.0
        %1766 = vmatpush1.msra.mxu0 %v1638
        %1767 = vmatprep.subr.mxu0 0.0
        %1768 = vmatpush1.msra.mxu0 %v1639
        %1769 = vmatprep.subr.mxu0 0.0
        %1770 = vmatpush1.msra.mxu0 %v1640
        %1771 = vmatprep.subr.mxu0 0.0
        %1772 = vmatpush1.msra.mxu0 %v1641
        %1773 = vmatprep.subr.mxu0 0.0
        %1774 = vmatpush1.msra.mxu0 %v1642
        %1775 = vmatprep.subr.mxu0 0.0
        %1776 = vmatpush1.msra.mxu0 %v1643
        %1777 = vmatprep.subr.mxu0 0.0
        %1778 = vmatpush1.msra.mxu0 %v1644
        %1779 = vmatprep.subr.mxu0 0.0
        %1780 = vmatpush1.msra.mxu0 %v1645
        %1781 = vmatprep.subr.mxu0 0.0
        %1782 = vmatpush1.msra.mxu0 %v1646
        %1783 = vmatprep.subr.mxu0 0.0
        %1784 = vmatpush1.msra.mxu0 %v1647
        %1785 = vmatprep.subr.mxu0 0.0
        %1786 = vmatpush1.msra.mxu0 %v1648
        %1787 = vmatprep.subr.mxu0 0.0
        %1788 = vmatpush1.msra.mxu0 %v1649
        %1789 = vmatprep.subr.mxu0 0.0
        %1790 = vmatpush1.msra.mxu0 %v1650
        %1791 = vmatprep.subr.mxu0 0.0
        %1792 = vmatpush1.msra.mxu0 %v1651
        %1793 = vmatprep.subr.mxu0 0.0
        %1794 = vmatpush1.msra.mxu0 %v1652
        %1795 = vmatprep.subr.mxu0 0.0
        %1796 = vmatpush1.msra.mxu0 %v1653
        %1797 = vmatprep.subr.mxu0 0.0
        %1798 = vmatpush1.msra.mxu0 %v1654
        %1799 = vmatprep.subr.mxu0 0.0
        %1800 = vmatpush1.msra.mxu0 %v1655
        %1801 = vmatprep.subr.mxu0 0.0
        %1802 = vmatpush1.msra.mxu0 %v1656
        %1803 = vmatprep.subr.mxu0 0.0
        %1804 = vmatpush1.msra.mxu0 %v1657
        %1805 = vmatprep.subr.mxu0 0.0
        %1806 = vmatpush1.msra.mxu0 %v1658
        %1807 = vmatprep.subr.mxu0 0.0
        %1808 = vmatpush1.msra.mxu0 %v1659
        %1809 = vmatprep.subr.mxu0 0.0
        %1810 = vmatpush1.msra.mxu0 %v1660
        %1811 = vmatprep.subr.mxu0 0.0
        %1812 = vmatpush1.msra.mxu0 %v1661
        %1813 = vmatprep.subr.mxu0 0.0
        %1814 = vmatpush1.msra.mxu0 %v1662
        %1815 = vmatprep.mubr.f32.mxu0 %v1606
        %1816 = vmatmul.mubr.f32.gmra.mrb[0].mxu0 %v1602
        %v1817 = vpop.f32.mrb[0].mxu0
        %v1818 = vadd.f32 %v1749, %v1817
        %v1819 = vpop.f32.mrb[0].mxu0
        %1820 = vmatprep.mubr.f32.mxu0 %v1607
        %1821 = vmatmul.mubr.f32.gmra.mrb[0].mxu0 %v1603
        %v1822 = vpop.f32.mrb[0].mxu0
        %v1823 = vadd.f32 %v1749, %v1822
        %v1824 = vpop.f32.mrb[0].mxu0
        %1825 = vmatprep.mubr.f32.mxu0 %v1608
        %1826 = vmatmul.mubr.f32.gmra.mrb[0].mxu0 %v1604
        %v1827 = vpop.f32.mrb[0].mxu0
        %v1828 = vadd.f32 %v1749, %v1827
        %v1829 = vpop.f32.mrb[0].mxu0
        %1830 = vmatprep.mubr.f32.mxu0 %v1609
        %1831 = vmatmul.mubr.f32.gmra.mrb[0].mxu0 %v1605
        %v1832 = vpop.f32.mrb[0].mxu0
        %v1833 = vadd.f32 %v1749, %v1832
        %v1834 = vpop.f32.mrb[0].mxu0
        %1835 = vdwg.mxu0
        %1836 = vmatprep.subr.mxu0 0.0
        %1837 = vmatpush1.msra.mxu0 %v1663
        %1838 = vmatprep.subr.mxu0 0.0
        %1839 = vmatpush1.msra.mxu0 %v1664
        %1840 = vmatprep.subr.mxu0 0.0
        %1841 = vmatpush1.msra.mxu0 %v1665
        %1842 = vmatprep.subr.mxu0 0.0
        %1843 = vmatpush1.msra.mxu0 %v1666
        %1844 = vmatprep.subr.mxu0 0.0
        %1845 = vmatpush1.msra.mxu0 %v1667
        %1846 = vmatprep.subr.mxu0 0.0
        %1847 = vmatpush1.msra.mxu0 %v1668
        %1848 = vmatprep.subr.mxu0 0.0
        %1849 = vmatpush1.msra.mxu0 %v1669
        %1850 = vmatprep.subr.mxu0 0.0
        %1851 = vmatpush1.msra.mxu0 %v1670
        %1852 = vmatprep.subr.mxu0 0.0
        %1853 = vmatpush1.msra.mxu0 %v1671
        %1854 = vmatprep.subr.mxu0 0.0
        %1855 = vmatpush1.msra.mxu0 %v1672
        %1856 = vmatprep.subr.mxu0 0.0
        %1857 = vmatpush1.msra.mxu0 %v1673
        %1858 = vmatprep.subr.mxu0 0.0
        %1859 = vmatpush1.msra.mxu0 %v1674
        %1860 = vmatprep.subr.mxu0 0.0
        %1861 = vmatpush1.msra.mxu0 %v1675
        %1862 = vmatprep.subr.mxu0 0.0
        %1863 = vmatpush1.msra.mxu0 %v1676
        %1864 = vmatprep.subr.mxu0 0.0
        %1865 = vmatpush1.msra.mxu0 %v1677
        %1866 = vmatprep.subr.mxu0 0.0
        %1867 = vmatpush1.msra.mxu0 %v1678
        %1868 = vmatprep.subr.mxu0 0.0
        %1869 = vmatpush1.msra.mxu0 %v1679
        %1870 = vmatprep.subr.mxu0 0.0
        %1871 = vmatpush1.msra.mxu0 %v1680
        %1872 = vmatprep.subr.mxu0 0.0
        %1873 = vmatpush1.msra.mxu0 %v1681
        %1874 = vmatprep.subr.mxu0 0.0
        %1875 = vmatpush1.msra.mxu0 %v1682
        %1876 = vmatprep.subr.mxu0 0.0
        %1877 = vmatpush1.msra.mxu0 %v1683
        %1878 = vmatprep.subr.mxu0 0.0
        %1879 = vmatpush1.msra.mxu0 %v1684
        %1880 = vmatprep.subr.mxu0 0.0
        %1881 = vmatpush1.msra.mxu0 %v1685
        %1882 = vmatprep.subr.mxu0 0.0
        %1883 = vmatpush1.msra.mxu0 %v1686
        %1884 = vmatprep.subr.mxu0 0.0
        %1885 = vmatpush1.msra.mxu0 %v1687
        %1886 = vmatprep.subr.mxu0 0.0
        %1887 = vmatpush1.msra.mxu0 %v1688
        %1888 = vmatprep.subr.mxu0 0.0
        %1889 = vmatpush1.msra.mxu0 %v1689
        %1890 = vmatprep.subr.mxu0 0.0
        %1891 = vmatpush1.msra.mxu0 %v1690
        %1892 = vmatprep.subr.mxu0 0.0
        %1893 = vmatpush1.msra.mxu0 %v1691
        %1894 = vmatprep.subr.mxu0 0.0
        %1895 = vmatpush1.msra.mxu0 %v1692
        %1896 = vmatprep.subr.mxu0 0.0
        %1897 = vmatpush1.msra.mxu0 %v1693
        %1898 = vmatprep.subr.mxu0 0.0
        %1899 = vmatpush1.msra.mxu0 %v1694
        %1900 = vmatprep.mubr.f32.mxu0 %v1614
        %1901 = vmatmul.mubr.f32.gmra.mrb[0].mxu0 %v1610
        %v1902 = vpop.f32.mrb[0].mxu0
        %v1903 = vadd.f32 %v1818, %v1902
        %v1904 = vpop.f32.mrb[0].mxu0
        %1905 = vmatprep.mubr.f32.mxu0 %v1615
        %1906 = vmatmul.mubr.f32.gmra.mrb[0].mxu0 %v1611
        %v1907 = vpop.f32.mrb[0].mxu0
        %v1908 = vadd.f32 %v1823, %v1907
        %v1909 = vpop.f32.mrb[0].mxu0
        %1910 = vmatprep.mubr.f32.mxu0 %v1616
        %1911 = vmatmul.mubr.f32.gmra.mrb[0].mxu0 %v1612
        %v1912 = vpop.f32.mrb[0].mxu0
        %v1913 = vadd.f32 %v1828, %v1912
        %v1914 = vpop.f32.mrb[0].mxu0
        %1915 = vmatprep.mubr.f32.mxu0 %v1617
        %1916 = vmatmul.mubr.f32.gmra.mrb[0].mxu0 %v1613
        %v1917 = vpop.f32.mrb[0].mxu0
        %v1918 = vadd.f32 %v1833, %v1917
        %v1919 = vpop.f32.mrb[0].mxu0
        %1920 = vdwg.mxu0
        %1921 = vmatprep.subr.mxu0 0.0
        %1922 = vmatpush1.msra.mxu0 %v1695
        %1923 = vmatprep.subr.mxu0 0.0
        %1924 = vmatpush1.msra.mxu0 %v1696
        %1925 = vmatprep.subr.mxu0 0.0
        %1926 = vmatpush1.msra.mxu0 %v1697
        %1927 = vmatprep.subr.mxu0 0.0
        %1928 = vmatpush1.msra.mxu0 %v1698
        %1929 = vmatprep.subr.mxu0 0.0
        %1930 = vmatpush1.msra.mxu0 %v1699
        %1931 = vmatprep.subr.mxu0 0.0
        %1932 = vmatpush1.msra.mxu0 %v1700
        %1933 = vmatprep.subr.mxu0 0.0
        %1934 = vmatpush1.msra.mxu0 %v1701
        %1935 = vmatprep.subr.mxu0 0.0
        %1936 = vmatpush1.msra.mxu0 %v1702
        %1937 = vmatprep.subr.mxu0 0.0
        %1938 = vmatpush1.msra.mxu0 %v1703
        %1939 = vmatprep.subr.mxu0 0.0
        %1940 = vmatpush1.msra.mxu0 %v1704
        %1941 = vmatprep.subr.mxu0 0.0
        %1942 = vmatpush1.msra.mxu0 %v1705
        %1943 = vmatprep.subr.mxu0 0.0
        %1944 = vmatpush1.msra.mxu0 %v1706
        %1945 = vmatprep.subr.mxu0 0.0
        %1946 = vmatpush1.msra.mxu0 %v1707
        %1947 = vmatprep.subr.mxu0 0.0
        %1948 = vmatpush1.msra.mxu0 %v1708
        %1949 = vmatprep.subr.mxu0 0.0
        %1950 = vmatpush1.msra.mxu0 %v1709
        %1951 = vmatprep.subr.mxu0 0.0
        %1952 = vmatpush1.msra.mxu0 %v1710
        %1953 = vmatprep.subr.mxu0 0.0
        %1954 = vmatpush1.msra.mxu0 %v1711
        %1955 = vmatprep.subr.mxu0 0.0
        %1956 = vmatpush1.msra.mxu0 %v1712
        %1957 = vmatprep.subr.mxu0 0.0
        %1958 = vmatpush1.msra.mxu0 %v1713
        %1959 = vmatprep.subr.mxu0 0.0
        %1960 = vmatpush1.msra.mxu0 %v1714
        %1961 = vmatprep.subr.mxu0 0.0
        %1962 = vmatpush1.msra.mxu0 %v1715
        %1963 = vmatprep.subr.mxu0 0.0
        %1964 = vmatpush1.msra.mxu0 %v1716
        %1965 = vmatprep.subr.mxu0 0.0
        %1966 = vmatpush1.msra.mxu0 %v1717
        %1967 = vmatprep.subr.mxu0 0.0
        %1968 = vmatpush1.msra.mxu0 %v1718
        %1969 = vmatprep.subr.mxu0 0.0
        %1970 = vmatpush1.msra.mxu0 %v1719
        %1971 = vmatprep.subr.mxu0 0.0
        %1972 = vmatpush1.msra.mxu0 %v1720
        %1973 = vmatprep.subr.mxu0 0.0
        %1974 = vmatpush1.msra.mxu0 %v1721
        %1975 = vmatprep.subr.mxu0 0.0
        %1976 = vmatpush1.msra.mxu0 %v1722
        %1977 = vmatprep.subr.mxu0 0.0
        %1978 = vmatpush1.msra.mxu0 %v1723
        %1979 = vmatprep.subr.mxu0 0.0
        %1980 = vmatpush1.msra.mxu0 %v1724
        %1981 = vmatprep.subr.mxu0 0.0
        %1982 = vmatpush1.msra.mxu0 %v1725
        %1983 = vmatprep.subr.mxu0 0.0
        %1984 = vmatpush1.msra.mxu0 %v1726
        %1985 = vmatprep.mubr.f32.mxu0 %v1622
        %1986 = vmatmul.mubr.f32.gmra.mrb[0].mxu0 %v1618
        %v1987 = vpop.f32.mrb[0].mxu0
        %v1988 = vadd.f32 %v1903, %v1987
        %v1989 = vpop.f32.mrb[0].mxu0
        %1990 = vmatprep.mubr.f32.mxu0 %v1623
        %1991 = vmatmul.mubr.f32.gmra.mrb[0].mxu0 %v1619
        %v1992 = vpop.f32.mrb[0].mxu0
        %v1993 = vadd.f32 %v1908, %v1992
        %v1994 = vpop.f32.mrb[0].mxu0
        %1995 = vmatprep.mubr.f32.mxu0 %v1624
        %1996 = vmatmul.mubr.f32.gmra.mrb[0].mxu0 %v1620
        %v1997 = vpop.f32.mrb[0].mxu0
        %v1998 = vadd.f32 %v1913, %v1997
        %v1999 = vpop.f32.mrb[0].mxu0
        %2000 = vmatprep.mubr.f32.mxu0 %v1625
        %2001 = vmatmul.mubr.f32.gmra.mrb[0].mxu0 %v1621
        %v2002 = vpop.f32.mrb[0].mxu0
        %v2003 = vadd.f32 %v1918, %v2002
        %v2004 = vpop.f32.mrb[0].mxu0
        %2005 = vdwg.mxu0
        %2006 = vmatprep.subr.mxu0 0.0
        %2007 = vmatpush1.msra.mxu0 %v1727
        %2008 = vmatprep.subr.mxu0 0.0
        %2009 = vmatpush1.msra.mxu0 %v1728
        %2010 = vmatprep.subr.mxu0 0.0
        %2011 = vmatpush1.msra.mxu0 %v1729
        %2012 = vmatprep.subr.mxu0 0.0
        %2013 = vmatpush1.msra.mxu0 %v1730
        %2014 = vmatprep.subr.mxu0 0.0
        %2015 = vmatpush1.msra.mxu0 %v1731
        %2016 = vmatprep.subr.mxu0 0.0
        %2017 = vmatpush1.msra.mxu0 %v1732
        %2018 = vmatprep.subr.mxu0 0.0
        %2019 = vmatpush1.msra.mxu0 %v1733
        %2020 = vmatprep.subr.mxu0 0.0
        %2021 = vmatpush1.msra.mxu0 %v1734
        %2022 = vmatprep.subr.mxu0 0.0
        %2023 = vmatpush1.msra.mxu0 %v1735
        %2024 = vmatprep.subr.mxu0 0.0
        %2025 = vmatpush1.msra.mxu0 %v1736
        %2026 = vmatprep.subr.mxu0 0.0
        %2027 = vmatpush1.msra.mxu0 %v1737
        %2028 = vmatprep.subr.mxu0 0.0
        %2029 = vmatpush1.msra.mxu0 %v1738
        %2030 = vmatprep.subr.mxu0 0.0
        %2031 = vmatpush1.msra.mxu0 %v1739
        %2032 = vmatprep.subr.mxu0 0.0
        %2033 = vmatpush1.msra.mxu0 %v1740
        %2034 = vmatprep.subr.mxu0 0.0
        %2035 = vmatpush1.msra.mxu0 %v1741
        %2036 = vmatprep.subr.mxu0 0.0
        %2037 = vmatpush1.msra.mxu0 %v1742
        %2038 = vmatprep.subr.mxu0 0.0
        %2039 = vmatpush1.msra.mxu0 0.0
        %2040 = vmatprep.subr.mxu0 0.0
        %2041 = vmatpush1.msra.mxu0 0.0
        %2042 = vmatprep.subr.mxu0 0.0
        %2043 = vmatpush1.msra.mxu0 0.0
        %2044 = vmatprep.subr.mxu0 0.0
        %2045 = vmatpush1.msra.mxu0 0.0
        %2046 = vmatprep.subr.mxu0 0.0
        %2047 = vmatpush1.msra.mxu0 0.0
        %2048 = vmatprep.subr.mxu0 0.0
        %2049 = vmatpush1.msra.mxu0 0.0
        %2050 = vmatprep.subr.mxu0 0.0
        %2051 = vmatpush1.msra.mxu0 0.0
        %2052 = vmatprep.subr.mxu0 0.0
        %2053 = vmatpush1.msra.mxu0 0.0
        %2054 = vmatprep.subr.mxu0 0.0
        %2055 = vmatpush1.msra.mxu0 0.0
        %2056 = vmatprep.subr.mxu0 0.0
        %2057 = vmatpush1.msra.mxu0 0.0
        %2058 = vmatprep.subr.mxu0 0.0
        %2059 = vmatpush1.msra.mxu0 0.0
        %2060 = vmatprep.subr.mxu0 0.0
        %2061 = vmatpush1.msra.mxu0 0.0
        %2062 = vmatprep.subr.mxu0 0.0
        %2063 = vmatpush1.msra.mxu0 0.0
        %2064 = vmatprep.subr.mxu0 0.0
        %2065 = vmatpush1.msra.mxu0 0.0
        %2066 = vmatprep.subr.mxu0 0.0
        %2067 = vmatpush1.msra.mxu0 0.0
        %2068 = vmatprep.subr.mxu0 0.0
        %2069 = vmatpush1.msra.mxu0 0.0
        %2070 = vmatprep.mubr.f32.mxu0 0.0
        %2071 = vmatmul.mubr.f32.gmra.mrb[0].mxu0 %v1626
        %v2072 = vpop.f32.mrb[0].mxu0
        %v2073 = vadd.f32 %v1988, %v2072
        %v2074 = vpop.f32.mrb[0].mxu0
        %2075 = vmatprep.mubr.f32.mxu0 0.0
        %2076 = vmatmul.mubr.f32.gmra.mrb[0].mxu0 %v1627
        %v2077 = vpop.f32.mrb[0].mxu0
        %v2078 = vadd.f32 %v1993, %v2077
        %v2079 = vpop.f32.mrb[0].mxu0
        %2080 = vmatprep.mubr.f32.mxu0 0.0
        %2081 = vmatmul.mubr.f32.gmra.mrb[0].mxu0 %v1628
        %v2082 = vpop.f32.mrb[0].mxu0
        %v2083 = vadd.f32 %v1998, %v2082
        %v2084 = vpop.f32.mrb[0].mxu0
        %2085 = vmatprep.mubr.f32.mxu0 0.0
        %2086 = vmatmul.mubr.f32.gmra.mrb[0].mxu0 %v1629
        %v2087 = vpop.f32.mrb[0].mxu0
        %v2088 = vadd.f32 %v2003, %v2087
        %v2089 = vpop.f32.mrb[0].mxu0
        %2090 = vdwg.mxu0
        %s2091 = sld [smem:[#allocation4 + $0x4]]
        %vm2092 = vcmp.ge.f32.partialorder %v2073, 0.0
        %vm2093 = vcmp.ge.f32.partialorder %v2078, 0.0
        %vm2094 = vcmp.ge.f32.partialorder %v2083, 0.0
        %vm2095 = vcmp.ge.f32.partialorder %v2088, 0.0
        %v2096 = vstv %s2091
        %v2097 = vmul.f32 %v2096, %v2073
        %v2098 = vmul.f32 %v2096, %v2078
        %v2099 = vmul.f32 %v2096, %v2083
        %v2100 = vmul.f32 %v2096, %v2088
        %v2101 = vsel %vm2092, %v2073, %v2097
        %v2102 = vsel %vm2093, %v2078, %v2098
        %v2103 = vsel %vm2094, %v2083, %v2099
        %v2104 = vsel %vm2095, %v2088, %v2100
        %s2105 = scalar_lea.vmem %s4, 256
        %v2106 = vld [vmem:[%s2105] sm:$0xff]
        %v2107 = vld [vmem:[%s2105 + $0x8] sm:$0xff]
        %v2108 = vld [vmem:[%s2105 + $0x10] sm:$0xff]
        %v2109 = vld [vmem:[%s2105 + $0x18] sm:$0xff]
        %v2110 = vld [vmem:[%s2105 + $0x20] sm:$0xff]
        %v2111 = vld [vmem:[%s2105 + $0x28] sm:$0xff]
        %v2112 = vld [vmem:[%s2105 + $0x30] sm:$0xff]
        %v2113 = vld [vmem:[%s2105 + $0x38] sm:$0xff]
        %v2114 = vld [vmem:[%s2105 + $0x40] sm:$0xff]
        %v2115 = vld [vmem:[%s2105 + $0x48] sm:$0xff]
        %v2116 = vld [vmem:[%s2105 + $0x50] sm:$0xff]
        %v2117 = vld [vmem:[%s2105 + $0x58] sm:$0xff]
        %v2118 = vld [vmem:[%s2105 + $0x60] sm:$0xff]
        %v2119 = vld [vmem:[%s2105 + $0x68] sm:$0xff]
        %v2120 = vld [vmem:[%s2105 + $0x70] sm:$0xff]
        %v2121 = vld [vmem:[%s2105 + $0x78] sm:$0xff]
        %s2122 = scalar_lea.vmem %s5, 2
        %v2123 = vld [vmem:[%s2122] sm:$0x1]
        %v2125 = vlaneseq
        %v2126 = vshrl.u32 %v2125, 7
        %v2127 = vsub.s32 0, %v2126
        %v2128 = vrot.slane %v2123, %v2127
        %2130 = vmatprep.subr.mxu0 0.0
        %2131 = vmatpush1.msra.mxu0 %v2106
        %2132 = vmatprep.subr.mxu0 0.0
        %2133 = vmatpush1.msra.mxu0 %v2107
        %2134 = vmatprep.subr.mxu0 0.0
        %2135 = vmatpush1.msra.mxu0 %v2108
        %2136 = vmatprep.subr.mxu0 0.0
        %2137 = vmatpush1.msra.mxu0 %v2109
        %2138 = vmatprep.subr.mxu0 0.0
        %2139 = vmatpush1.msra.mxu0 %v2110
        %2140 = vmatprep.subr.mxu0 0.0
        %2141 = vmatpush1.msra.mxu0 %v2111
        %2142 = vmatprep.subr.mxu0 0.0
        %2143 = vmatpush1.msra.mxu0 %v2112
        %2144 = vmatprep.subr.mxu0 0.0
        %2145 = vmatpush1.msra.mxu0 %v2113
        %2146 = vmatprep.subr.mxu0 0.0
        %2147 = vmatpush1.msra.mxu0 %v2114
        %2148 = vmatprep.subr.mxu0 0.0
        %2149 = vmatpush1.msra.mxu0 %v2115
        %2150 = vmatprep.subr.mxu0 0.0
        %2151 = vmatpush1.msra.mxu0 %v2116
        %2152 = vmatprep.subr.mxu0 0.0
        %2153 = vmatpush1.msra.mxu0 %v2117
        %2154 = vmatprep.subr.mxu0 0.0
        %2155 = vmatpush1.msra.mxu0 %v2118
        %2156 = vmatprep.subr.mxu0 0.0
        %2157 = vmatpush1.msra.mxu0 %v2119
        %2158 = vmatprep.subr.mxu0 0.0
        %2159 = vmatpush1.msra.mxu0 %v2120
        %2160 = vmatprep.subr.mxu0 0.0
        %2161 = vmatpush1.msra.mxu0 %v2121
        %2162 = vmatprep.subr.mxu0 0.0
        %2163 = vmatpush1.msra.mxu0 0.0
        %2164 = vmatprep.subr.mxu0 0.0
        %2165 = vmatpush1.msra.mxu0 0.0
        %2166 = vmatprep.subr.mxu0 0.0
        %2167 = vmatpush1.msra.mxu0 0.0
        %2168 = vmatprep.subr.mxu0 0.0
        %2169 = vmatpush1.msra.mxu0 0.0
        %2170 = vmatprep.subr.mxu0 0.0
        %2171 = vmatpush1.msra.mxu0 0.0
        %2172 = vmatprep.subr.mxu0 0.0
        %2173 = vmatpush1.msra.mxu0 0.0
        %2174 = vmatprep.subr.mxu0 0.0
        %2175 = vmatpush1.msra.mxu0 0.0
        %2176 = vmatprep.subr.mxu0 0.0
        %2177 = vmatpush1.msra.mxu0 0.0
        %2178 = vmatprep.subr.mxu0 0.0
        %2179 = vmatpush1.msra.mxu0 0.0
        %2180 = vmatprep.subr.mxu0 0.0
        %2181 = vmatpush1.msra.mxu0 0.0
        %2182 = vmatprep.subr.mxu0 0.0
        %2183 = vmatpush1.msra.mxu0 0.0
        %2184 = vmatprep.subr.mxu0 0.0
        %2185 = vmatpush1.msra.mxu0 0.0
        %2186 = vmatprep.subr.mxu0 0.0
        %2187 = vmatpush1.msra.mxu0 0.0
        %2188 = vmatprep.subr.mxu0 0.0
        %2189 = vmatpush1.msra.mxu0 0.0
        %2190 = vmatprep.subr.mxu0 0.0
        %2191 = vmatpush1.msra.mxu0 0.0
        %2192 = vmatprep.subr.mxu0 0.0
        %2193 = vmatpush1.msra.mxu0 0.0
        %2194 = vmatprep.mubr.f32.mxu0 0.0
        %2195 = vmatmul.mubr.f32.gmra.mrb[0].mxu0 %v2101
        %v2196 = vpop.f32.mrb[0].mxu0
        %v2197 = vadd.f32 %v2128, %v2196
        %v2198 = vpop.f32.mrb[0].mxu0
        %2199 = vmatprep.mubr.f32.mxu0 0.0
        %2200 = vmatmul.mubr.f32.gmra.mrb[0].mxu0 %v2102
        %v2201 = vpop.f32.mrb[0].mxu0
        %v2202 = vadd.f32 %v2128, %v2201
        %v2203 = vpop.f32.mrb[0].mxu0
        %2204 = vmatprep.mubr.f32.mxu0 0.0
        %2205 = vmatmul.mubr.f32.gmra.mrb[0].mxu0 %v2103
        %v2206 = vpop.f32.mrb[0].mxu0
        %v2207 = vadd.f32 %v2128, %v2206
        %v2208 = vpop.f32.mrb[0].mxu0
        %2209 = vmatprep.mubr.f32.mxu0 0.0
        %2210 = vmatmul.mubr.f32.gmra.mrb[0].mxu0 %v2104
        %v2211 = vpop.f32.mrb[0].mxu0
        %v2212 = vadd.f32 %v2128, %v2211
        %v2213 = vpop.f32.mrb[0].mxu0
        %2214 = vdwg.mxu0
        %s2215 = sld [smem:[#allocation4 + $0x5]]
        %vm2216 = vcmp.ge.f32.partialorder %v2197, 0.0
        %vm2217 = vcmp.ge.f32.partialorder %v2202, 0.0
        %vm2218 = vcmp.ge.f32.partialorder %v2207, 0.0
        %vm2219 = vcmp.ge.f32.partialorder %v2212, 0.0
        %v2220 = vstv %s2215
        %v2221 = vmul.f32 %v2220, %v2197
        %v2222 = vmul.f32 %v2220, %v2202
        %v2223 = vmul.f32 %v2220, %v2207
        %v2224 = vmul.f32 %v2220, %v2212
        %v2225 = vsel %vm2216, %v2197, %v2221
        %v2226 = vsel %vm2217, %v2202, %v2222
        %v2227 = vsel %vm2218, %v2207, %v2223
        %v2228 = vsel %vm2219, %v2212, %v2224
        %v2229 = vadd.f32 %v2225, %v1614
        %v2230 = vadd.f32 %v2226, %v1615
        %v2231 = vadd.f32 %v2227, %v1616
        %v2232 = vadd.f32 %v2228, %v1617
        %2233 = vst [vmem:[#allocation2 + $0x20] sm:$0xff] %v2229
        %2234 = vst [vmem:[#allocation2 + $0x28] sm:$0xff] %v2230
        %2235 = vst [vmem:[#allocation2 + $0x30] sm:$0xff] %v2231
        %2236 = vst [vmem:[#allocation2 + $0x38] sm:$0xff] %v2232
        %v2237 = vld [vmem:[#allocation2 + $0xb] sm:$0xff]
        %v2238 = vld [vmem:[#allocation2 + $0x13] sm:$0xff]
        %v2239 = vld [vmem:[#allocation2 + $0x1b] sm:$0xff]
        %v2240 = vld [vmem:[#allocation2 + $0x23] sm:$0xff]
        %v2241 = vld [vmem:[#allocation2 + $0x12] sm:$0xff]
        %v2242 = vld [vmem:[#allocation2 + $0x1a] sm:$0xff]
        %v2243 = vld [vmem:[#allocation2 + $0x22] sm:$0xff]
        %v2244 = vld [vmem:[#allocation2 + $0x2a] sm:$0xff]
        %v2245 = vld [vmem:[#allocation2 + $0x19] sm:$0xff]
        %v2246 = vld [vmem:[#allocation2 + $0x21] sm:$0xff]
        %v2247 = vld [vmem:[#allocation2 + $0x29] sm:$0xff]
        %v2248 = vld [vmem:[#allocation2 + $0x31] sm:$0xff]
        %v2249 = vld [vmem:[#allocation2 + $0x20] sm:$0xff]
        %v2250 = vld [vmem:[#allocation2 + $0x28] sm:$0xff]
        %v2251 = vld [vmem:[#allocation2 + $0x30] sm:$0xff]
        %v2252 = vld [vmem:[#allocation2 + $0x38] sm:$0xff]
        %v2253 = vld [vmem:[#allocation2 + $0x27] sm:$0xff]
        %v2254 = vld [vmem:[#allocation2 + $0x2f] sm:$0xff]
        %v2255 = vld [vmem:[#allocation2 + $0x37] sm:$0xff]
        %v2256 = vld [vmem:[#allocation2 + $0x3f] sm:$0xff]
        %v2257 = vld [vmem:[#allocation2 + $0x2e] sm:$0xff]
        %v2258 = vld [vmem:[#allocation2 + $0x36] sm:$0xff]
        %v2259 = vld [vmem:[#allocation2 + $0x3e] sm:$0xff]
        %v2260 = vld [vmem:[#allocation2 + $0x46] sm:$0xff]
        %v2261 = vld [vmem:[#allocation2 + $0x35] sm:$0xff]
        %v2262 = vld [vmem:[#allocation2 + $0x3d] sm:$0xff]
        %v2263 = vld [vmem:[#allocation2 + $0x45] sm:$0xff]
        %v2264 = vld [vmem:[#allocation2 + $0x4d] sm:$0xff]
        %s2265 = scalar_lea.vmem %s2, 2688
        %v2266 = vld [vmem:[%s2265] sm:$0xff]
        %v2267 = vld [vmem:[%s2265 + $0x8] sm:$0xff]
        %v2268 = vld [vmem:[%s2265 + $0x10] sm:$0xff]
        %v2269 = vld [vmem:[%s2265 + $0x18] sm:$0xff]
        %v2270 = vld [vmem:[%s2265 + $0x20] sm:$0xff]
        %v2271 = vld [vmem:[%s2265 + $0x28] sm:$0xff]
        %v2272 = vld [vmem:[%s2265 + $0x30] sm:$0xff]
        %v2273 = vld [vmem:[%s2265 + $0x38] sm:$0xff]
        %v2274 = vld [vmem:[%s2265 + $0x40] sm:$0xff]
        %v2275 = vld [vmem:[%s2265 + $0x48] sm:$0xff]
        %v2276 = vld [vmem:[%s2265 + $0x50] sm:$0xff]
        %v2277 = vld [vmem:[%s2265 + $0x58] sm:$0xff]
        %v2278 = vld [vmem:[%s2265 + $0x60] sm:$0xff]
        %v2279 = vld [vmem:[%s2265 + $0x68] sm:$0xff]
        %v2280 = vld [vmem:[%s2265 + $0x70] sm:$0xff]
        %v2281 = vld [vmem:[%s2265 + $0x78] sm:$0xff]
        %v2282 = vld [vmem:[%s2265 + $0x80] sm:$0xff]
        %v2283 = vld [vmem:[%s2265 + $0x88] sm:$0xff]
        %v2284 = vld [vmem:[%s2265 + $0x90] sm:$0xff]
        %v2285 = vld [vmem:[%s2265 + $0x98] sm:$0xff]
        %v2286 = vld [vmem:[%s2265 + $0xa0] sm:$0xff]
        %v2287 = vld [vmem:[%s2265 + $0xa8] sm:$0xff]
        %v2288 = vld [vmem:[%s2265 + $0xb0] sm:$0xff]
        %v2289 = vld [vmem:[%s2265 + $0xb8] sm:$0xff]
        %v2290 = vld [vmem:[%s2265 + $0xc0] sm:$0xff]
        %v2291 = vld [vmem:[%s2265 + $0xc8] sm:$0xff]
        %v2292 = vld [vmem:[%s2265 + $0xd0] sm:$0xff]
        %v2293 = vld [vmem:[%s2265 + $0xd8] sm:$0xff]
        %v2294 = vld [vmem:[%s2265 + $0xe0] sm:$0xff]
        %v2295 = vld [vmem:[%s2265 + $0xe8] sm:$0xff]
        %v2296 = vld [vmem:[%s2265 + $0xf0] sm:$0xff]
        %v2297 = vld [vmem:[%s2265 + $0xf8] sm:$0xff]
        %v2298 = vld [vmem:[%s2265 + $0x100] sm:$0xff]
        %v2299 = vld [vmem:[%s2265 + $0x108] sm:$0xff]
        %v2300 = vld [vmem:[%s2265 + $0x110] sm:$0xff]
        %v2301 = vld [vmem:[%s2265 + $0x118] sm:$0xff]
        %v2302 = vld [vmem:[%s2265 + $0x120] sm:$0xff]
        %v2303 = vld [vmem:[%s2265 + $0x128] sm:$0xff]
        %v2304 = vld [vmem:[%s2265 + $0x130] sm:$0xff]
        %v2305 = vld [vmem:[%s2265 + $0x138] sm:$0xff]
        %v2306 = vld [vmem:[%s2265 + $0x140] sm:$0xff]
        %v2307 = vld [vmem:[%s2265 + $0x148] sm:$0xff]
        %v2308 = vld [vmem:[%s2265 + $0x150] sm:$0xff]
        %v2309 = vld [vmem:[%s2265 + $0x158] sm:$0xff]
        %v2310 = vld [vmem:[%s2265 + $0x160] sm:$0xff]
        %v2311 = vld [vmem:[%s2265 + $0x168] sm:$0xff]
        %v2312 = vld [vmem:[%s2265 + $0x170] sm:$0xff]
        %v2313 = vld [vmem:[%s2265 + $0x178] sm:$0xff]
        %v2314 = vld [vmem:[%s2265 + $0x180] sm:$0xff]
        %v2315 = vld [vmem:[%s2265 + $0x188] sm:$0xff]
        %v2316 = vld [vmem:[%s2265 + $0x190] sm:$0xff]
        %v2317 = vld [vmem:[%s2265 + $0x198] sm:$0xff]
        %v2318 = vld [vmem:[%s2265 + $0x1a0] sm:$0xff]
        %v2319 = vld [vmem:[%s2265 + $0x1a8] sm:$0xff]
        %v2320 = vld [vmem:[%s2265 + $0x1b0] sm:$0xff]
        %v2321 = vld [vmem:[%s2265 + $0x1b8] sm:$0xff]
        %v2322 = vld [vmem:[%s2265 + $0x1c0] sm:$0xff]
        %v2323 = vld [vmem:[%s2265 + $0x1c8] sm:$0xff]
        %v2324 = vld [vmem:[%s2265 + $0x1d0] sm:$0xff]
        %v2325 = vld [vmem:[%s2265 + $0x1d8] sm:$0xff]
        %v2326 = vld [vmem:[%s2265 + $0x1e0] sm:$0xff]
        %v2327 = vld [vmem:[%s2265 + $0x1e8] sm:$0xff]
        %v2328 = vld [vmem:[%s2265 + $0x1f0] sm:$0xff]
        %v2329 = vld [vmem:[%s2265 + $0x1f8] sm:$0xff]
        %v2330 = vld [vmem:[%s2265 + $0x200] sm:$0xff]
        %v2331 = vld [vmem:[%s2265 + $0x208] sm:$0xff]
        %v2332 = vld [vmem:[%s2265 + $0x210] sm:$0xff]
        %v2333 = vld [vmem:[%s2265 + $0x218] sm:$0xff]
        %v2334 = vld [vmem:[%s2265 + $0x220] sm:$0xff]
        %v2335 = vld [vmem:[%s2265 + $0x228] sm:$0xff]
        %v2336 = vld [vmem:[%s2265 + $0x230] sm:$0xff]
        %v2337 = vld [vmem:[%s2265 + $0x238] sm:$0xff]
        %v2338 = vld [vmem:[%s2265 + $0x240] sm:$0xff]
        %v2339 = vld [vmem:[%s2265 + $0x248] sm:$0xff]
        %v2340 = vld [vmem:[%s2265 + $0x250] sm:$0xff]
        %v2341 = vld [vmem:[%s2265 + $0x258] sm:$0xff]
        %v2342 = vld [vmem:[%s2265 + $0x260] sm:$0xff]
        %v2343 = vld [vmem:[%s2265 + $0x268] sm:$0xff]
        %v2344 = vld [vmem:[%s2265 + $0x270] sm:$0xff]
        %v2345 = vld [vmem:[%s2265 + $0x278] sm:$0xff]
        %v2346 = vld [vmem:[%s2265 + $0x280] sm:$0xff]
        %v2347 = vld [vmem:[%s2265 + $0x288] sm:$0xff]
        %v2348 = vld [vmem:[%s2265 + $0x290] sm:$0xff]
        %v2349 = vld [vmem:[%s2265 + $0x298] sm:$0xff]
        %v2350 = vld [vmem:[%s2265 + $0x2a0] sm:$0xff]
        %v2351 = vld [vmem:[%s2265 + $0x2a8] sm:$0xff]
        %v2352 = vld [vmem:[%s2265 + $0x2b0] sm:$0xff]
        %v2353 = vld [vmem:[%s2265 + $0x2b8] sm:$0xff]
        %v2354 = vld [vmem:[%s2265 + $0x2c0] sm:$0xff]
        %v2355 = vld [vmem:[%s2265 + $0x2c8] sm:$0xff]
        %v2356 = vld [vmem:[%s2265 + $0x2d0] sm:$0xff]
        %v2357 = vld [vmem:[%s2265 + $0x2d8] sm:$0xff]
        %v2358 = vld [vmem:[%s2265 + $0x2e0] sm:$0xff]
        %v2359 = vld [vmem:[%s2265 + $0x2e8] sm:$0xff]
        %v2360 = vld [vmem:[%s2265 + $0x2f0] sm:$0xff]
        %v2361 = vld [vmem:[%s2265 + $0x2f8] sm:$0xff]
        %v2362 = vld [vmem:[%s2265 + $0x300] sm:$0xff]
        %v2363 = vld [vmem:[%s2265 + $0x308] sm:$0xff]
        %v2364 = vld [vmem:[%s2265 + $0x310] sm:$0xff]
        %v2365 = vld [vmem:[%s2265 + $0x318] sm:$0xff]
        %v2366 = vld [vmem:[%s2265 + $0x320] sm:$0xff]
        %v2367 = vld [vmem:[%s2265 + $0x328] sm:$0xff]
        %v2368 = vld [vmem:[%s2265 + $0x330] sm:$0xff]
        %v2369 = vld [vmem:[%s2265 + $0x338] sm:$0xff]
        %v2370 = vld [vmem:[%s2265 + $0x340] sm:$0xff]
        %v2371 = vld [vmem:[%s2265 + $0x348] sm:$0xff]
        %v2372 = vld [vmem:[%s2265 + $0x350] sm:$0xff]
        %v2373 = vld [vmem:[%s2265 + $0x358] sm:$0xff]
        %v2374 = vld [vmem:[%s2265 + $0x360] sm:$0xff]
        %v2375 = vld [vmem:[%s2265 + $0x368] sm:$0xff]
        %v2376 = vld [vmem:[%s2265 + $0x370] sm:$0xff]
        %v2377 = vld [vmem:[%s2265 + $0x378] sm:$0xff]
        %s2378 = scalar_lea.vmem %s3, 3
        %v2379 = vld [vmem:[%s2378] sm:$0x1]
        %v2381 = vlaneseq
        %v2382 = vshrl.u32 %v2381, 7
        %v2383 = vsub.s32 0, %v2382
        %v2384 = vrot.slane %v2379, %v2383
        %2386 = vmatprep.subr.mxu0 0.0
        %2387 = vmatpush1.msra.mxu0 %v2266
        %2388 = vmatprep.subr.mxu0 0.0
        %2389 = vmatpush1.msra.mxu0 %v2267
        %2390 = vmatprep.subr.mxu0 0.0
        %2391 = vmatpush1.msra.mxu0 %v2268
        %2392 = vmatprep.subr.mxu0 0.0
        %2393 = vmatpush1.msra.mxu0 %v2269
        %2394 = vmatprep.subr.mxu0 0.0
        %2395 = vmatpush1.msra.mxu0 %v2270
        %2396 = vmatprep.subr.mxu0 0.0
        %2397 = vmatpush1.msra.mxu0 %v2271
        %2398 = vmatprep.subr.mxu0 0.0
        %2399 = vmatpush1.msra.mxu0 %v2272
        %2400 = vmatprep.subr.mxu0 0.0
        %2401 = vmatpush1.msra.mxu0 %v2273
        %2402 = vmatprep.subr.mxu0 0.0
        %2403 = vmatpush1.msra.mxu0 %v2274
        %2404 = vmatprep.subr.mxu0 0.0
        %2405 = vmatpush1.msra.mxu0 %v2275
        %2406 = vmatprep.subr.mxu0 0.0
        %2407 = vmatpush1.msra.mxu0 %v2276
        %2408 = vmatprep.subr.mxu0 0.0
        %2409 = vmatpush1.msra.mxu0 %v2277
        %2410 = vmatprep.subr.mxu0 0.0
        %2411 = vmatpush1.msra.mxu0 %v2278
        %2412 = vmatprep.subr.mxu0 0.0
        %2413 = vmatpush1.msra.mxu0 %v2279
        %2414 = vmatprep.subr.mxu0 0.0
        %2415 = vmatpush1.msra.mxu0 %v2280
        %2416 = vmatprep.subr.mxu0 0.0
        %2417 = vmatpush1.msra.mxu0 %v2281
        %2418 = vmatprep.subr.mxu0 0.0
        %2419 = vmatpush1.msra.mxu0 %v2282
        %2420 = vmatprep.subr.mxu0 0.0
        %2421 = vmatpush1.msra.mxu0 %v2283
        %2422 = vmatprep.subr.mxu0 0.0
        %2423 = vmatpush1.msra.mxu0 %v2284
        %2424 = vmatprep.subr.mxu0 0.0
        %2425 = vmatpush1.msra.mxu0 %v2285
        %2426 = vmatprep.subr.mxu0 0.0
        %2427 = vmatpush1.msra.mxu0 %v2286
        %2428 = vmatprep.subr.mxu0 0.0
        %2429 = vmatpush1.msra.mxu0 %v2287
        %2430 = vmatprep.subr.mxu0 0.0
        %2431 = vmatpush1.msra.mxu0 %v2288
        %2432 = vmatprep.subr.mxu0 0.0
        %2433 = vmatpush1.msra.mxu0 %v2289
        %2434 = vmatprep.subr.mxu0 0.0
        %2435 = vmatpush1.msra.mxu0 %v2290
        %2436 = vmatprep.subr.mxu0 0.0
        %2437 = vmatpush1.msra.mxu0 %v2291
        %2438 = vmatprep.subr.mxu0 0.0
        %2439 = vmatpush1.msra.mxu0 %v2292
        %2440 = vmatprep.subr.mxu0 0.0
        %2441 = vmatpush1.msra.mxu0 %v2293
        %2442 = vmatprep.subr.mxu0 0.0
        %2443 = vmatpush1.msra.mxu0 %v2294
        %2444 = vmatprep.subr.mxu0 0.0
        %2445 = vmatpush1.msra.mxu0 %v2295
        %2446 = vmatprep.subr.mxu0 0.0
        %2447 = vmatpush1.msra.mxu0 %v2296
        %2448 = vmatprep.subr.mxu0 0.0
        %2449 = vmatpush1.msra.mxu0 %v2297
        %2450 = vmatprep.mubr.f32.mxu0 %v2241
        %2451 = vmatmul.mubr.f32.gmra.mrb[0].mxu0 %v2237
        %v2452 = vpop.f32.mrb[0].mxu0
        %v2453 = vadd.f32 %v2384, %v2452
        %v2454 = vpop.f32.mrb[0].mxu0
        %2455 = vmatprep.mubr.f32.mxu0 %v2242
        %2456 = vmatmul.mubr.f32.gmra.mrb[0].mxu0 %v2238
        %v2457 = vpop.f32.mrb[0].mxu0
        %v2458 = vadd.f32 %v2384, %v2457
        %v2459 = vpop.f32.mrb[0].mxu0
        %2460 = vmatprep.mubr.f32.mxu0 %v2243
        %2461 = vmatmul.mubr.f32.gmra.mrb[0].mxu0 %v2239
        %v2462 = vpop.f32.mrb[0].mxu0
        %v2463 = vadd.f32 %v2384, %v2462
        %v2464 = vpop.f32.mrb[0].mxu0
        %2465 = vmatprep.mubr.f32.mxu0 %v2244
        %2466 = vmatmul.mubr.f32.gmra.mrb[0].mxu0 %v2240
        %v2467 = vpop.f32.mrb[0].mxu0
        %v2468 = vadd.f32 %v2384, %v2467
        %v2469 = vpop.f32.mrb[0].mxu0
        %2470 = vdwg.mxu0
        %2471 = vmatprep.subr.mxu0 0.0
        %2472 = vmatpush1.msra.mxu0 %v2298
        %2473 = vmatprep.subr.mxu0 0.0
        %2474 = vmatpush1.msra.mxu0 %v2299
        %2475 = vmatprep.subr.mxu0 0.0
        %2476 = vmatpush1.msra.mxu0 %v2300
        %2477 = vmatprep.subr.mxu0 0.0
        %2478 = vmatpush1.msra.mxu0 %v2301
        %2479 = vmatprep.subr.mxu0 0.0
        %2480 = vmatpush1.msra.mxu0 %v2302
        %2481 = vmatprep.subr.mxu0 0.0
        %2482 = vmatpush1.msra.mxu0 %v2303
        %2483 = vmatprep.subr.mxu0 0.0
        %2484 = vmatpush1.msra.mxu0 %v2304
        %2485 = vmatprep.subr.mxu0 0.0
        %2486 = vmatpush1.msra.mxu0 %v2305
        %2487 = vmatprep.subr.mxu0 0.0
        %2488 = vmatpush1.msra.mxu0 %v2306
        %2489 = vmatprep.subr.mxu0 0.0
        %2490 = vmatpush1.msra.mxu0 %v2307
        %2491 = vmatprep.subr.mxu0 0.0
        %2492 = vmatpush1.msra.mxu0 %v2308
        %2493 = vmatprep.subr.mxu0 0.0
        %2494 = vmatpush1.msra.mxu0 %v2309
        %2495 = vmatprep.subr.mxu0 0.0
        %2496 = vmatpush1.msra.mxu0 %v2310
        %2497 = vmatprep.subr.mxu0 0.0
        %2498 = vmatpush1.msra.mxu0 %v2311
        %2499 = vmatprep.subr.mxu0 0.0
        %2500 = vmatpush1.msra.mxu0 %v2312
        %2501 = vmatprep.subr.mxu0 0.0
        %2502 = vmatpush1.msra.mxu0 %v2313
        %2503 = vmatprep.subr.mxu0 0.0
        %2504 = vmatpush1.msra.mxu0 %v2314
        %2505 = vmatprep.subr.mxu0 0.0
        %2506 = vmatpush1.msra.mxu0 %v2315
        %2507 = vmatprep.subr.mxu0 0.0
        %2508 = vmatpush1.msra.mxu0 %v2316
        %2509 = vmatprep.subr.mxu0 0.0
        %2510 = vmatpush1.msra.mxu0 %v2317
        %2511 = vmatprep.subr.mxu0 0.0
        %2512 = vmatpush1.msra.mxu0 %v2318
        %2513 = vmatprep.subr.mxu0 0.0
        %2514 = vmatpush1.msra.mxu0 %v2319
        %2515 = vmatprep.subr.mxu0 0.0
        %2516 = vmatpush1.msra.mxu0 %v2320
        %2517 = vmatprep.subr.mxu0 0.0
        %2518 = vmatpush1.msra.mxu0 %v2321
        %2519 = vmatprep.subr.mxu0 0.0
        %2520 = vmatpush1.msra.mxu0 %v2322
        %2521 = vmatprep.subr.mxu0 0.0
        %2522 = vmatpush1.msra.mxu0 %v2323
        %2523 = vmatprep.subr.mxu0 0.0
        %2524 = vmatpush1.msra.mxu0 %v2324
        %2525 = vmatprep.subr.mxu0 0.0
        %2526 = vmatpush1.msra.mxu0 %v2325
        %2527 = vmatprep.subr.mxu0 0.0
        %2528 = vmatpush1.msra.mxu0 %v2326
        %2529 = vmatprep.subr.mxu0 0.0
        %2530 = vmatpush1.msra.mxu0 %v2327
        %2531 = vmatprep.subr.mxu0 0.0
        %2532 = vmatpush1.msra.mxu0 %v2328
        %2533 = vmatprep.subr.mxu0 0.0
        %2534 = vmatpush1.msra.mxu0 %v2329
        %2535 = vmatprep.mubr.f32.mxu0 %v2249
        %2536 = vmatmul.mubr.f32.gmra.mrb[0].mxu0 %v2245
        %v2537 = vpop.f32.mrb[0].mxu0
        %v2538 = vadd.f32 %v2453, %v2537
        %v2539 = vpop.f32.mrb[0].mxu0
        %2540 = vmatprep.mubr.f32.mxu0 %v2250
        %2541 = vmatmul.mubr.f32.gmra.mrb[0].mxu0 %v2246
        %v2542 = vpop.f32.mrb[0].mxu0
        %v2543 = vadd.f32 %v2458, %v2542
        %v2544 = vpop.f32.mrb[0].mxu0
        %2545 = vmatprep.mubr.f32.mxu0 %v2251
        %2546 = vmatmul.mubr.f32.gmra.mrb[0].mxu0 %v2247
        %v2547 = vpop.f32.mrb[0].mxu0
        %v2548 = vadd.f32 %v2463, %v2547
        %v2549 = vpop.f32.mrb[0].mxu0
        %2550 = vmatprep.mubr.f32.mxu0 %v2252
        %2551 = vmatmul.mubr.f32.gmra.mrb[0].mxu0 %v2248
        %v2552 = vpop.f32.mrb[0].mxu0
        %v2553 = vadd.f32 %v2468, %v2552
        %v2554 = vpop.f32.mrb[0].mxu0
        %2555 = vdwg.mxu0
        %2556 = vmatprep.subr.mxu0 0.0
        %2557 = vmatpush1.msra.mxu0 %v2330
        %2558 = vmatprep.subr.mxu0 0.0
        %2559 = vmatpush1.msra.mxu0 %v2331
        %2560 = vmatprep.subr.mxu0 0.0
        %2561 = vmatpush1.msra.mxu0 %v2332
        %2562 = vmatprep.subr.mxu0 0.0
        %2563 = vmatpush1.msra.mxu0 %v2333
        %2564 = vmatprep.subr.mxu0 0.0
        %2565 = vmatpush1.msra.mxu0 %v2334
        %2566 = vmatprep.subr.mxu0 0.0
        %2567 = vmatpush1.msra.mxu0 %v2335
        %2568 = vmatprep.subr.mxu0 0.0
        %2569 = vmatpush1.msra.mxu0 %v2336
        %2570 = vmatprep.subr.mxu0 0.0
        %2571 = vmatpush1.msra.mxu0 %v2337
        %2572 = vmatprep.subr.mxu0 0.0
        %2573 = vmatpush1.msra.mxu0 %v2338
        %2574 = vmatprep.subr.mxu0 0.0
        %2575 = vmatpush1.msra.mxu0 %v2339
        %2576 = vmatprep.subr.mxu0 0.0
        %2577 = vmatpush1.msra.mxu0 %v2340
        %2578 = vmatprep.subr.mxu0 0.0
        %2579 = vmatpush1.msra.mxu0 %v2341
        %2580 = vmatprep.subr.mxu0 0.0
        %2581 = vmatpush1.msra.mxu0 %v2342
        %2582 = vmatprep.subr.mxu0 0.0
        %2583 = vmatpush1.msra.mxu0 %v2343
        %2584 = vmatprep.subr.mxu0 0.0
        %2585 = vmatpush1.msra.mxu0 %v2344
        %2586 = vmatprep.subr.mxu0 0.0
        %2587 = vmatpush1.msra.mxu0 %v2345
        %2588 = vmatprep.subr.mxu0 0.0
        %2589 = vmatpush1.msra.mxu0 %v2346
        %2590 = vmatprep.subr.mxu0 0.0
        %2591 = vmatpush1.msra.mxu0 %v2347
        %2592 = vmatprep.subr.mxu0 0.0
        %2593 = vmatpush1.msra.mxu0 %v2348
        %2594 = vmatprep.subr.mxu0 0.0
        %2595 = vmatpush1.msra.mxu0 %v2349
        %2596 = vmatprep.subr.mxu0 0.0
        %2597 = vmatpush1.msra.mxu0 %v2350
        %2598 = vmatprep.subr.mxu0 0.0
        %2599 = vmatpush1.msra.mxu0 %v2351
        %2600 = vmatprep.subr.mxu0 0.0
        %2601 = vmatpush1.msra.mxu0 %v2352
        %2602 = vmatprep.subr.mxu0 0.0
        %2603 = vmatpush1.msra.mxu0 %v2353
        %2604 = vmatprep.subr.mxu0 0.0
        %2605 = vmatpush1.msra.mxu0 %v2354
        %2606 = vmatprep.subr.mxu0 0.0
        %2607 = vmatpush1.msra.mxu0 %v2355
        %2608 = vmatprep.subr.mxu0 0.0
        %2609 = vmatpush1.msra.mxu0 %v2356
        %2610 = vmatprep.subr.mxu0 0.0
        %2611 = vmatpush1.msra.mxu0 %v2357
        %2612 = vmatprep.subr.mxu0 0.0
        %2613 = vmatpush1.msra.mxu0 %v2358
        %2614 = vmatprep.subr.mxu0 0.0
        %2615 = vmatpush1.msra.mxu0 %v2359
        %2616 = vmatprep.subr.mxu0 0.0
        %2617 = vmatpush1.msra.mxu0 %v2360
        %2618 = vmatprep.subr.mxu0 0.0
        %2619 = vmatpush1.msra.mxu0 %v2361
        %2620 = vmatprep.mubr.f32.mxu0 %v2257
        %2621 = vmatmul.mubr.f32.gmra.mrb[0].mxu0 %v2253
        %v2622 = vpop.f32.mrb[0].mxu0
        %v2623 = vadd.f32 %v2538, %v2622
        %v2624 = vpop.f32.mrb[0].mxu0
        %2625 = vmatprep.mubr.f32.mxu0 %v2258
        %2626 = vmatmul.mubr.f32.gmra.mrb[0].mxu0 %v2254
        %v2627 = vpop.f32.mrb[0].mxu0
        %v2628 = vadd.f32 %v2543, %v2627
        %v2629 = vpop.f32.mrb[0].mxu0
        %2630 = vmatprep.mubr.f32.mxu0 %v2259
        %2631 = vmatmul.mubr.f32.gmra.mrb[0].mxu0 %v2255
        %v2632 = vpop.f32.mrb[0].mxu0
        %v2633 = vadd.f32 %v2548, %v2632
        %v2634 = vpop.f32.mrb[0].mxu0
        %2635 = vmatprep.mubr.f32.mxu0 %v2260
        %2636 = vmatmul.mubr.f32.gmra.mrb[0].mxu0 %v2256
        %v2637 = vpop.f32.mrb[0].mxu0
        %v2638 = vadd.f32 %v2553, %v2637
        %v2639 = vpop.f32.mrb[0].mxu0
        %2640 = vdwg.mxu0
        %2641 = vmatprep.subr.mxu0 0.0
        %2642 = vmatpush1.msra.mxu0 %v2362
        %2643 = vmatprep.subr.mxu0 0.0
        %2644 = vmatpush1.msra.mxu0 %v2363
        %2645 = vmatprep.subr.mxu0 0.0
        %2646 = vmatpush1.msra.mxu0 %v2364
        %2647 = vmatprep.subr.mxu0 0.0
        %2648 = vmatpush1.msra.mxu0 %v2365
        %2649 = vmatprep.subr.mxu0 0.0
        %2650 = vmatpush1.msra.mxu0 %v2366
        %2651 = vmatprep.subr.mxu0 0.0
        %2652 = vmatpush1.msra.mxu0 %v2367
        %2653 = vmatprep.subr.mxu0 0.0
        %2654 = vmatpush1.msra.mxu0 %v2368
        %2655 = vmatprep.subr.mxu0 0.0
        %2656 = vmatpush1.msra.mxu0 %v2369
        %2657 = vmatprep.subr.mxu0 0.0
        %2658 = vmatpush1.msra.mxu0 %v2370
        %2659 = vmatprep.subr.mxu0 0.0
        %2660 = vmatpush1.msra.mxu0 %v2371
        %2661 = vmatprep.subr.mxu0 0.0
        %2662 = vmatpush1.msra.mxu0 %v2372
        %2663 = vmatprep.subr.mxu0 0.0
        %2664 = vmatpush1.msra.mxu0 %v2373
        %2665 = vmatprep.subr.mxu0 0.0
        %2666 = vmatpush1.msra.mxu0 %v2374
        %2667 = vmatprep.subr.mxu0 0.0
        %2668 = vmatpush1.msra.mxu0 %v2375
        %2669 = vmatprep.subr.mxu0 0.0
        %2670 = vmatpush1.msra.mxu0 %v2376
        %2671 = vmatprep.subr.mxu0 0.0
        %2672 = vmatpush1.msra.mxu0 %v2377
        %2673 = vmatprep.subr.mxu0 0.0
        %2674 = vmatpush1.msra.mxu0 0.0
        %2675 = vmatprep.subr.mxu0 0.0
        %2676 = vmatpush1.msra.mxu0 0.0
        %2677 = vmatprep.subr.mxu0 0.0
        %2678 = vmatpush1.msra.mxu0 0.0
        %2679 = vmatprep.subr.mxu0 0.0
        %2680 = vmatpush1.msra.mxu0 0.0
        %2681 = vmatprep.subr.mxu0 0.0
        %2682 = vmatpush1.msra.mxu0 0.0
        %2683 = vmatprep.subr.mxu0 0.0
        %2684 = vmatpush1.msra.mxu0 0.0
        %2685 = vmatprep.subr.mxu0 0.0
        %2686 = vmatpush1.msra.mxu0 0.0
        %2687 = vmatprep.subr.mxu0 0.0
        %2688 = vmatpush1.msra.mxu0 0.0
        %2689 = vmatprep.subr.mxu0 0.0
        %2690 = vmatpush1.msra.mxu0 0.0
        %2691 = vmatprep.subr.mxu0 0.0
        %2692 = vmatpush1.msra.mxu0 0.0
        %2693 = vmatprep.subr.mxu0 0.0
        %2694 = vmatpush1.msra.mxu0 0.0
        %2695 = vmatprep.subr.mxu0 0.0
        %2696 = vmatpush1.msra.mxu0 0.0
        %2697 = vmatprep.subr.mxu0 0.0
        %2698 = vmatpush1.msra.mxu0 0.0
        %2699 = vmatprep.subr.mxu0 0.0
        %2700 = vmatpush1.msra.mxu0 0.0
        %2701 = vmatprep.subr.mxu0 0.0
        %2702 = vmatpush1.msra.mxu0 0.0
        %2703 = vmatprep.subr.mxu0 0.0
        %2704 = vmatpush1.msra.mxu0 0.0
        %2705 = vmatprep.mubr.f32.mxu0 0.0
        %2706 = vmatmul.mubr.f32.gmra.mrb[0].mxu0 %v2261
        %v2707 = vpop.f32.mrb[0].mxu0
        %v2708 = vadd.f32 %v2623, %v2707
        %v2709 = vpop.f32.mrb[0].mxu0
        %2710 = vmatprep.mubr.f32.mxu0 0.0
        %2711 = vmatmul.mubr.f32.gmra.mrb[0].mxu0 %v2262
        %v2712 = vpop.f32.mrb[0].mxu0
        %v2713 = vadd.f32 %v2628, %v2712
        %v2714 = vpop.f32.mrb[0].mxu0
        %2715 = vmatprep.mubr.f32.mxu0 0.0
        %2716 = vmatmul.mubr.f32.gmra.mrb[0].mxu0 %v2263
        %v2717 = vpop.f32.mrb[0].mxu0
        %v2718 = vadd.f32 %v2633, %v2717
        %v2719 = vpop.f32.mrb[0].mxu0
        %2720 = vmatprep.mubr.f32.mxu0 0.0
        %2721 = vmatmul.mubr.f32.gmra.mrb[0].mxu0 %v2264
        %v2722 = vpop.f32.mrb[0].mxu0
        %v2723 = vadd.f32 %v2638, %v2722
        %v2724 = vpop.f32.mrb[0].mxu0
        %2725 = vdwg.mxu0
        %s2726 = sld [smem:[#allocation4 + $0x6]]
        %vm2727 = vcmp.ge.f32.partialorder %v2708, 0.0
        %vm2728 = vcmp.ge.f32.partialorder %v2713, 0.0
        %vm2729 = vcmp.ge.f32.partialorder %v2718, 0.0
        %vm2730 = vcmp.ge.f32.partialorder %v2723, 0.0
        %v2731 = vstv %s2726
        %v2732 = vmul.f32 %v2731, %v2708
        %v2733 = vmul.f32 %v2731, %v2713
        %v2734 = vmul.f32 %v2731, %v2718
        %v2735 = vmul.f32 %v2731, %v2723
        %v2736 = vsel %vm2727, %v2708, %v2732
        %v2737 = vsel %vm2728, %v2713, %v2733
        %v2738 = vsel %vm2729, %v2718, %v2734
        %v2739 = vsel %vm2730, %v2723, %v2735
        %s2740 = scalar_lea.vmem %s4, 384
        %v2741 = vld [vmem:[%s2740] sm:$0xff]
        %v2742 = vld [vmem:[%s2740 + $0x8] sm:$0xff]
        %v2743 = vld [vmem:[%s2740 + $0x10] sm:$0xff]
        %v2744 = vld [vmem:[%s2740 + $0x18] sm:$0xff]
        %v2745 = vld [vmem:[%s2740 + $0x20] sm:$0xff]
        %v2746 = vld [vmem:[%s2740 + $0x28] sm:$0xff]
        %v2747 = vld [vmem:[%s2740 + $0x30] sm:$0xff]
        %v2748 = vld [vmem:[%s2740 + $0x38] sm:$0xff]
        %v2749 = vld [vmem:[%s2740 + $0x40] sm:$0xff]
        %v2750 = vld [vmem:[%s2740 + $0x48] sm:$0xff]
        %v2751 = vld [vmem:[%s2740 + $0x50] sm:$0xff]
        %v2752 = vld [vmem:[%s2740 + $0x58] sm:$0xff]
        %v2753 = vld [vmem:[%s2740 + $0x60] sm:$0xff]
        %v2754 = vld [vmem:[%s2740 + $0x68] sm:$0xff]
        %v2755 = vld [vmem:[%s2740 + $0x70] sm:$0xff]
        %v2756 = vld [vmem:[%s2740 + $0x78] sm:$0xff]
        %s2757 = scalar_lea.vmem %s5, 3
        %v2758 = vld [vmem:[%s2757] sm:$0x1]
        %v2760 = vlaneseq
        %v2761 = vshrl.u32 %v2760, 7
        %v2762 = vsub.s32 0, %v2761
        %v2763 = vrot.slane %v2758, %v2762
        %2765 = vmatprep.subr.mxu0 0.0
        %2766 = vmatpush1.msra.mxu0 %v2741
        %2767 = vmatprep.subr.mxu0 0.0
        %2768 = vmatpush1.msra.mxu0 %v2742
        %2769 = vmatprep.subr.mxu0 0.0
        %2770 = vmatpush1.msra.mxu0 %v2743
        %2771 = vmatprep.subr.mxu0 0.0
        %2772 = vmatpush1.msra.mxu0 %v2744
        %2773 = vmatprep.subr.mxu0 0.0
        %2774 = vmatpush1.msra.mxu0 %v2745
        %2775 = vmatprep.subr.mxu0 0.0
        %2776 = vmatpush1.msra.mxu0 %v2746
        %2777 = vmatprep.subr.mxu0 0.0
        %2778 = vmatpush1.msra.mxu0 %v2747
        %2779 = vmatprep.subr.mxu0 0.0
        %2780 = vmatpush1.msra.mxu0 %v2748
        %2781 = vmatprep.subr.mxu0 0.0
        %2782 = vmatpush1.msra.mxu0 %v2749
        %2783 = vmatprep.subr.mxu0 0.0
        %2784 = vmatpush1.msra.mxu0 %v2750
        %2785 = vmatprep.subr.mxu0 0.0
        %2786 = vmatpush1.msra.mxu0 %v2751
        %2787 = vmatprep.subr.mxu0 0.0
        %2788 = vmatpush1.msra.mxu0 %v2752
        %2789 = vmatprep.subr.mxu0 0.0
        %2790 = vmatpush1.msra.mxu0 %v2753
        %2791 = vmatprep.subr.mxu0 0.0
        %2792 = vmatpush1.msra.mxu0 %v2754
        %2793 = vmatprep.subr.mxu0 0.0
        %2794 = vmatpush1.msra.mxu0 %v2755
        %2795 = vmatprep.subr.mxu0 0.0
        %2796 = vmatpush1.msra.mxu0 %v2756
        %2797 = vmatprep.subr.mxu0 0.0
        %2798 = vmatpush1.msra.mxu0 0.0
        %2799 = vmatprep.subr.mxu0 0.0
        %2800 = vmatpush1.msra.mxu0 0.0
        %2801 = vmatprep.subr.mxu0 0.0
        %2802 = vmatpush1.msra.mxu0 0.0
        %2803 = vmatprep.subr.mxu0 0.0
        %2804 = vmatpush1.msra.mxu0 0.0
        %2805 = vmatprep.subr.mxu0 0.0
        %2806 = vmatpush1.msra.mxu0 0.0
        %2807 = vmatprep.subr.mxu0 0.0
        %2808 = vmatpush1.msra.mxu0 0.0
        %2809 = vmatprep.subr.mxu0 0.0
        %2810 = vmatpush1.msra.mxu0 0.0
        %2811 = vmatprep.subr.mxu0 0.0
        %2812 = vmatpush1.msra.mxu0 0.0
        %2813 = vmatprep.subr.mxu0 0.0
        %2814 = vmatpush1.msra.mxu0 0.0
        %2815 = vmatprep.subr.mxu0 0.0
        %2816 = vmatpush1.msra.mxu0 0.0
        %2817 = vmatprep.subr.mxu0 0.0
        %2818 = vmatpush1.msra.mxu0 0.0
        %2819 = vmatprep.subr.mxu0 0.0
        %2820 = vmatpush1.msra.mxu0 0.0
        %2821 = vmatprep.subr.mxu0 0.0
        %2822 = vmatpush1.msra.mxu0 0.0
        %2823 = vmatprep.subr.mxu0 0.0
        %2824 = vmatpush1.msra.mxu0 0.0
        %2825 = vmatprep.subr.mxu0 0.0
        %2826 = vmatpush1.msra.mxu0 0.0
        %2827 = vmatprep.subr.mxu0 0.0
        %2828 = vmatpush1.msra.mxu0 0.0
        %2829 = vmatprep.mubr.f32.mxu0 0.0
        %2830 = vmatmul.mubr.f32.gmra.mrb[0].mxu0 %v2736
        %v2831 = vpop.f32.mrb[0].mxu0
        %v2832 = vadd.f32 %v2763, %v2831
        %v2833 = vpop.f32.mrb[0].mxu0
        %2834 = vmatprep.mubr.f32.mxu0 0.0
        %2835 = vmatmul.mubr.f32.gmra.mrb[0].mxu0 %v2737
        %v2836 = vpop.f32.mrb[0].mxu0
        %v2837 = vadd.f32 %v2763, %v2836
        %v2838 = vpop.f32.mrb[0].mxu0
        %2839 = vmatprep.mubr.f32.mxu0 0.0
        %2840 = vmatmul.mubr.f32.gmra.mrb[0].mxu0 %v2738
        %v2841 = vpop.f32.mrb[0].mxu0
        %v2842 = vadd.f32 %v2763, %v2841
        %v2843 = vpop.f32.mrb[0].mxu0
        %2844 = vmatprep.mubr.f32.mxu0 0.0
        %2845 = vmatmul.mubr.f32.gmra.mrb[0].mxu0 %v2739
        %v2846 = vpop.f32.mrb[0].mxu0
        %v2847 = vadd.f32 %v2763, %v2846
        %v2848 = vpop.f32.mrb[0].mxu0
        %2849 = vdwg.mxu0
        %s2850 = sld [smem:[#allocation4 + $0x7]]
        %vm2851 = vcmp.ge.f32.partialorder %v2832, 0.0
        %vm2852 = vcmp.ge.f32.partialorder %v2837, 0.0
        %vm2853 = vcmp.ge.f32.partialorder %v2842, 0.0
        %vm2854 = vcmp.ge.f32.partialorder %v2847, 0.0
        %v2855 = vstv %s2850
        %v2856 = vmul.f32 %v2855, %v2832
        %v2857 = vmul.f32 %v2855, %v2837
        %v2858 = vmul.f32 %v2855, %v2842
        %v2859 = vmul.f32 %v2855, %v2847
        %v2860 = vsel %vm2851, %v2832, %v2856
        %v2861 = vsel %vm2852, %v2837, %v2857
        %v2862 = vsel %vm2853, %v2842, %v2858
        %v2863 = vsel %vm2854, %v2847, %v2859
        %v2864 = vadd.f32 %v2860, %v2249
        %v2865 = vadd.f32 %v2861, %v2250
        %v2866 = vadd.f32 %v2862, %v2251
        %v2867 = vadd.f32 %v2863, %v2252
        %2868 = vst [vmem:[#allocation2 + $0x20] sm:$0xff] %v2864
        %2869 = vst [vmem:[#allocation2 + $0x28] sm:$0xff] %v2865
        %2870 = vst [vmem:[#allocation2 + $0x30] sm:$0xff] %v2866
        %2871 = vst [vmem:[#allocation2 + $0x38] sm:$0xff] %v2867
        %v2872 = vld [vmem:[#allocation2 + $0x5] sm:$0xff]
        %v2873 = vld [vmem:[#allocation2 + $0xd] sm:$0xff]
        %v2874 = vld [vmem:[#allocation2 + $0x15] sm:$0xff]
        %v2875 = vld [vmem:[#allocation2 + $0x1d] sm:$0xff]
        %v2876 = vld [vmem:[#allocation2 + $0xe] sm:$0xff]
        %v2877 = vld [vmem:[#allocation2 + $0x16] sm:$0xff]
        %v2878 = vld [vmem:[#allocation2 + $0x1e] sm:$0xff]
        %v2879 = vld [vmem:[#allocation2 + $0x26] sm:$0xff]
        %v2880 = vld [vmem:[#allocation2 + $0x17] sm:$0xff]
        %v2881 = vld [vmem:[#allocation2 + $0x1f] sm:$0xff]
        %v2882 = vld [vmem:[#allocation2 + $0x27] sm:$0xff]
        %v2883 = vld [vmem:[#allocation2 + $0x2f] sm:$0xff]
        %v2884 = vld [vmem:[#allocation2 + $0x20] sm:$0xff]
        %v2885 = vld [vmem:[#allocation2 + $0x28] sm:$0xff]
        %v2886 = vld [vmem:[#allocation2 + $0x30] sm:$0xff]
        %v2887 = vld [vmem:[#allocation2 + $0x38] sm:$0xff]
        %v2888 = vld [vmem:[#allocation2 + $0x29] sm:$0xff]
        %v2889 = vld [vmem:[#allocation2 + $0x31] sm:$0xff]
        %v2890 = vld [vmem:[#allocation2 + $0x39] sm:$0xff]
        %v2891 = vld [vmem:[#allocation2 + $0x41] sm:$0xff]
        %v2892 = vld [vmem:[#allocation2 + $0x32] sm:$0xff]
        %v2893 = vld [vmem:[#allocation2 + $0x3a] sm:$0xff]
        %v2894 = vld [vmem:[#allocation2 + $0x42] sm:$0xff]
        %v2895 = vld [vmem:[#allocation2 + $0x4a] sm:$0xff]
        %v2896 = vld [vmem:[#allocation2 + $0x3b] sm:$0xff]
        %v2897 = vld [vmem:[#allocation2 + $0x43] sm:$0xff]
        %v2898 = vld [vmem:[#allocation2 + $0x4b] sm:$0xff]
        %v2899 = vld [vmem:[#allocation2 + $0x53] sm:$0xff]
        %s2900 = scalar_lea.vmem %s2, 3584
        %v2901 = vld [vmem:[%s2900] sm:$0xff]
        %v2902 = vld [vmem:[%s2900 + $0x8] sm:$0xff]
        %v2903 = vld [vmem:[%s2900 + $0x10] sm:$0xff]
        %v2904 = vld [vmem:[%s2900 + $0x18] sm:$0xff]
        %v2905 = vld [vmem:[%s2900 + $0x20] sm:$0xff]
        %v2906 = vld [vmem:[%s2900 + $0x28] sm:$0xff]
        %v2907 = vld [vmem:[%s2900 + $0x30] sm:$0xff]
        %v2908 = vld [vmem:[%s2900 + $0x38] sm:$0xff]
        %v2909 = vld [vmem:[%s2900 + $0x40] sm:$0xff]
        %v2910 = vld [vmem:[%s2900 + $0x48] sm:$0xff]
        %v2911 = vld [vmem:[%s2900 + $0x50] sm:$0xff]
        %v2912 = vld [vmem:[%s2900 + $0x58] sm:$0xff]
        %v2913 = vld [vmem:[%s2900 + $0x60] sm:$0xff]
        %v2914 = vld [vmem:[%s2900 + $0x68] sm:$0xff]
        %v2915 = vld [vmem:[%s2900 + $0x70] sm:$0xff]
        %v2916 = vld [vmem:[%s2900 + $0x78] sm:$0xff]
        %v2917 = vld [vmem:[%s2900 + $0x80] sm:$0xff]
        %v2918 = vld [vmem:[%s2900 + $0x88] sm:$0xff]
        %v2919 = vld [vmem:[%s2900 + $0x90] sm:$0xff]
        %v2920 = vld [vmem:[%s2900 + $0x98] sm:$0xff]
        %v2921 = vld [vmem:[%s2900 + $0xa0] sm:$0xff]
        %v2922 = vld [vmem:[%s2900 + $0xa8] sm:$0xff]
        %v2923 = vld [vmem:[%s2900 + $0xb0] sm:$0xff]
        %v2924 = vld [vmem:[%s2900 + $0xb8] sm:$0xff]
        %v2925 = vld [vmem:[%s2900 + $0xc0] sm:$0xff]
        %v2926 = vld [vmem:[%s2900 + $0xc8] sm:$0xff]
        %v2927 = vld [vmem:[%s2900 + $0xd0] sm:$0xff]
        %v2928 = vld [vmem:[%s2900 + $0xd8] sm:$0xff]
        %v2929 = vld [vmem:[%s2900 + $0xe0] sm:$0xff]
        %v2930 = vld [vmem:[%s2900 + $0xe8] sm:$0xff]
        %v2931 = vld [vmem:[%s2900 + $0xf0] sm:$0xff]
        %v2932 = vld [vmem:[%s2900 + $0xf8] sm:$0xff]
        %v2933 = vld [vmem:[%s2900 + $0x100] sm:$0xff]
        %v2934 = vld [vmem:[%s2900 + $0x108] sm:$0xff]
        %v2935 = vld [vmem:[%s2900 + $0x110] sm:$0xff]
        %v2936 = vld [vmem:[%s2900 + $0x118] sm:$0xff]
        %v2937 = vld [vmem:[%s2900 + $0x120] sm:$0xff]
        %v2938 = vld [vmem:[%s2900 + $0x128] sm:$0xff]
        %v2939 = vld [vmem:[%s2900 + $0x130] sm:$0xff]
        %v2940 = vld [vmem:[%s2900 + $0x138] sm:$0xff]
        %v2941 = vld [vmem:[%s2900 + $0x140] sm:$0xff]
        %v2942 = vld [vmem:[%s2900 + $0x148] sm:$0xff]
        %v2943 = vld [vmem:[%s2900 + $0x150] sm:$0xff]
        %v2944 = vld [vmem:[%s2900 + $0x158] sm:$0xff]
        %v2945 = vld [vmem:[%s2900 + $0x160] sm:$0xff]
        %v2946 = vld [vmem:[%s2900 + $0x168] sm:$0xff]
        %v2947 = vld [vmem:[%s2900 + $0x170] sm:$0xff]
        %v2948 = vld [vmem:[%s2900 + $0x178] sm:$0xff]
        %v2949 = vld [vmem:[%s2900 + $0x180] sm:$0xff]
        %v2950 = vld [vmem:[%s2900 + $0x188] sm:$0xff]
        %v2951 = vld [vmem:[%s2900 + $0x190] sm:$0xff]
        %v2952 = vld [vmem:[%s2900 + $0x198] sm:$0xff]
        %v2953 = vld [vmem:[%s2900 + $0x1a0] sm:$0xff]
        %v2954 = vld [vmem:[%s2900 + $0x1a8] sm:$0xff]
        %v2955 = vld [vmem:[%s2900 + $0x1b0] sm:$0xff]
        %v2956 = vld [vmem:[%s2900 + $0x1b8] sm:$0xff]
        %v2957 = vld [vmem:[%s2900 + $0x1c0] sm:$0xff]
        %v2958 = vld [vmem:[%s2900 + $0x1c8] sm:$0xff]
        %v2959 = vld [vmem:[%s2900 + $0x1d0] sm:$0xff]
        %v2960 = vld [vmem:[%s2900 + $0x1d8] sm:$0xff]
        %v2961 = vld [vmem:[%s2900 + $0x1e0] sm:$0xff]
        %v2962 = vld [vmem:[%s2900 + $0x1e8] sm:$0xff]
        %v2963 = vld [vmem:[%s2900 + $0x1f0] sm:$0xff]
        %v2964 = vld [vmem:[%s2900 + $0x1f8] sm:$0xff]
        %v2965 = vld [vmem:[%s2900 + $0x200] sm:$0xff]
        %v2966 = vld [vmem:[%s2900 + $0x208] sm:$0xff]
        %v2967 = vld [vmem:[%s2900 + $0x210] sm:$0xff]
        %v2968 = vld [vmem:[%s2900 + $0x218] sm:$0xff]
        %v2969 = vld [vmem:[%s2900 + $0x220] sm:$0xff]
        %v2970 = vld [vmem:[%s2900 + $0x228] sm:$0xff]
        %v2971 = vld [vmem:[%s2900 + $0x230] sm:$0xff]
        %v2972 = vld [vmem:[%s2900 + $0x238] sm:$0xff]
        %v2973 = vld [vmem:[%s2900 + $0x240] sm:$0xff]
        %v2974 = vld [vmem:[%s2900 + $0x248] sm:$0xff]
        %v2975 = vld [vmem:[%s2900 + $0x250] sm:$0xff]
        %v2976 = vld [vmem:[%s2900 + $0x258] sm:$0xff]
        %v2977 = vld [vmem:[%s2900 + $0x260] sm:$0xff]
        %v2978 = vld [vmem:[%s2900 + $0x268] sm:$0xff]
        %v2979 = vld [vmem:[%s2900 + $0x270] sm:$0xff]
        %v2980 = vld [vmem:[%s2900 + $0x278] sm:$0xff]
        %v2981 = vld [vmem:[%s2900 + $0x280] sm:$0xff]
        %v2982 = vld [vmem:[%s2900 + $0x288] sm:$0xff]
        %v2983 = vld [vmem:[%s2900 + $0x290] sm:$0xff]
        %v2984 = vld [vmem:[%s2900 + $0x298] sm:$0xff]
        %v2985 = vld [vmem:[%s2900 + $0x2a0] sm:$0xff]
        %v2986 = vld [vmem:[%s2900 + $0x2a8] sm:$0xff]
        %v2987 = vld [vmem:[%s2900 + $0x2b0] sm:$0xff]
        %v2988 = vld [vmem:[%s2900 + $0x2b8] sm:$0xff]
        %v2989 = vld [vmem:[%s2900 + $0x2c0] sm:$0xff]
        %v2990 = vld [vmem:[%s2900 + $0x2c8] sm:$0xff]
        %v2991 = vld [vmem:[%s2900 + $0x2d0] sm:$0xff]
        %v2992 = vld [vmem:[%s2900 + $0x2d8] sm:$0xff]
        %v2993 = vld [vmem:[%s2900 + $0x2e0] sm:$0xff]
        %v2994 = vld [vmem:[%s2900 + $0x2e8] sm:$0xff]
        %v2995 = vld [vmem:[%s2900 + $0x2f0] sm:$0xff]
        %v2996 = vld [vmem:[%s2900 + $0x2f8] sm:$0xff]
        %v2997 = vld [vmem:[%s2900 + $0x300] sm:$0xff]
        %v2998 = vld [vmem:[%s2900 + $0x308] sm:$0xff]
        %v2999 = vld [vmem:[%s2900 + $0x310] sm:$0xff]
        %v3000 = vld [vmem:[%s2900 + $0x318] sm:$0xff]
        %v3001 = vld [vmem:[%s2900 + $0x320] sm:$0xff]
        %v3002 = vld [vmem:[%s2900 + $0x328] sm:$0xff]
        %v3003 = vld [vmem:[%s2900 + $0x330] sm:$0xff]
        %v3004 = vld [vmem:[%s2900 + $0x338] sm:$0xff]
        %v3005 = vld [vmem:[%s2900 + $0x340] sm:$0xff]
        %v3006 = vld [vmem:[%s2900 + $0x348] sm:$0xff]
        %v3007 = vld [vmem:[%s2900 + $0x350] sm:$0xff]
        %v3008 = vld [vmem:[%s2900 + $0x358] sm:$0xff]
        %v3009 = vld [vmem:[%s2900 + $0x360] sm:$0xff]
        %v3010 = vld [vmem:[%s2900 + $0x368] sm:$0xff]
        %v3011 = vld [vmem:[%s2900 + $0x370] sm:$0xff]
        %v3012 = vld [vmem:[%s2900 + $0x378] sm:$0xff]
        %s3013 = scalar_lea.vmem %s3, 4
        %v3014 = vld [vmem:[%s3013] sm:$0x1]
        %v3016 = vlaneseq
        %v3017 = vshrl.u32 %v3016, 7
        %v3018 = vsub.s32 0, %v3017
        %v3019 = vrot.slane %v3014, %v3018
        %3021 = vmatprep.subr.mxu0 0.0
        %3022 = vmatpush1.msra.mxu0 %v2901
        %3023 = vmatprep.subr.mxu0 0.0
        %3024 = vmatpush1.msra.mxu0 %v2902
        %3025 = vmatprep.subr.mxu0 0.0
        %3026 = vmatpush1.msra.mxu0 %v2903
        %3027 = vmatprep.subr.mxu0 0.0
        %3028 = vmatpush1.msra.mxu0 %v2904
        %3029 = vmatprep.subr.mxu0 0.0
        %3030 = vmatpush1.msra.mxu0 %v2905
        %3031 = vmatprep.subr.mxu0 0.0
        %3032 = vmatpush1.msra.mxu0 %v2906
        %3033 = vmatprep.subr.mxu0 0.0
        %3034 = vmatpush1.msra.mxu0 %v2907
        %3035 = vmatprep.subr.mxu0 0.0
        %3036 = vmatpush1.msra.mxu0 %v2908
        %3037 = vmatprep.subr.mxu0 0.0
        %3038 = vmatpush1.msra.mxu0 %v2909
        %3039 = vmatprep.subr.mxu0 0.0
        %3040 = vmatpush1.msra.mxu0 %v2910
        %3041 = vmatprep.subr.mxu0 0.0
        %3042 = vmatpush1.msra.mxu0 %v2911
        %3043 = vmatprep.subr.mxu0 0.0
        %3044 = vmatpush1.msra.mxu0 %v2912
        %3045 = vmatprep.subr.mxu0 0.0
        %3046 = vmatpush1.msra.mxu0 %v2913
        %3047 = vmatprep.subr.mxu0 0.0
        %3048 = vmatpush1.msra.mxu0 %v2914
        %3049 = vmatprep.subr.mxu0 0.0
        %3050 = vmatpush1.msra.mxu0 %v2915
        %3051 = vmatprep.subr.mxu0 0.0
        %3052 = vmatpush1.msra.mxu0 %v2916
        %3053 = vmatprep.subr.mxu0 0.0
        %3054 = vmatpush1.msra.mxu0 %v2917
        %3055 = vmatprep.subr.mxu0 0.0
        %3056 = vmatpush1.msra.mxu0 %v2918
        %3057 = vmatprep.subr.mxu0 0.0
        %3058 = vmatpush1.msra.mxu0 %v2919
        %3059 = vmatprep.subr.mxu0 0.0
        %3060 = vmatpush1.msra.mxu0 %v2920
        %3061 = vmatprep.subr.mxu0 0.0
        %3062 = vmatpush1.msra.mxu0 %v2921
        %3063 = vmatprep.subr.mxu0 0.0
        %3064 = vmatpush1.msra.mxu0 %v2922
        %3065 = vmatprep.subr.mxu0 0.0
        %3066 = vmatpush1.msra.mxu0 %v2923
        %3067 = vmatprep.subr.mxu0 0.0
        %3068 = vmatpush1.msra.mxu0 %v2924
        %3069 = vmatprep.subr.mxu0 0.0
        %3070 = vmatpush1.msra.mxu0 %v2925
        %3071 = vmatprep.subr.mxu0 0.0
        %3072 = vmatpush1.msra.mxu0 %v2926
        %3073 = vmatprep.subr.mxu0 0.0
        %3074 = vmatpush1.msra.mxu0 %v2927
        %3075 = vmatprep.subr.mxu0 0.0
        %3076 = vmatpush1.msra.mxu0 %v2928
        %3077 = vmatprep.subr.mxu0 0.0
        %3078 = vmatpush1.msra.mxu0 %v2929
        %3079 = vmatprep.subr.mxu0 0.0
        %3080 = vmatpush1.msra.mxu0 %v2930
        %3081 = vmatprep.subr.mxu0 0.0
        %3082 = vmatpush1.msra.mxu0 %v2931
        %3083 = vmatprep.subr.mxu0 0.0
        %3084 = vmatpush1.msra.mxu0 %v2932
        %3085 = vmatprep.mubr.f32.mxu0 %v2876
        %3086 = vmatmul.mubr.f32.gmra.mrb[0].mxu0 %v2872
        %v3087 = vpop.f32.mrb[0].mxu0
        %v3088 = vadd.f32 %v3019, %v3087
        %v3089 = vpop.f32.mrb[0].mxu0
        %3090 = vmatprep.mubr.f32.mxu0 %v2877
        %3091 = vmatmul.mubr.f32.gmra.mrb[0].mxu0 %v2873
        %v3092 = vpop.f32.mrb[0].mxu0
        %v3093 = vadd.f32 %v3019, %v3092
        %v3094 = vpop.f32.mrb[0].mxu0
        %3095 = vmatprep.mubr.f32.mxu0 %v2878
        %3096 = vmatmul.mubr.f32.gmra.mrb[0].mxu0 %v2874
        %v3097 = vpop.f32.mrb[0].mxu0
        %v3098 = vadd.f32 %v3019, %v3097
        %v3099 = vpop.f32.mrb[0].mxu0
        %3100 = vmatprep.mubr.f32.mxu0 %v2879
        %3101 = vmatmul.mubr.f32.gmra.mrb[0].mxu0 %v2875
        %v3102 = vpop.f32.mrb[0].mxu0
        %v3103 = vadd.f32 %v3019, %v3102
        %v3104 = vpop.f32.mrb[0].mxu0
        %3105 = vdwg.mxu0
        %3106 = vmatprep.subr.mxu0 0.0
        %3107 = vmatpush1.msra.mxu0 %v2933
        %3108 = vmatprep.subr.mxu0 0.0
        %3109 = vmatpush1.msra.mxu0 %v2934
        %3110 = vmatprep.subr.mxu0 0.0
        %3111 = vmatpush1.msra.mxu0 %v2935
        %3112 = vmatprep.subr.mxu0 0.0
        %3113 = vmatpush1.msra.mxu0 %v2936
        %3114 = vmatprep.subr.mxu0 0.0
        %3115 = vmatpush1.msra.mxu0 %v2937
        %3116 = vmatprep.subr.mxu0 0.0
        %3117 = vmatpush1.msra.mxu0 %v2938
        %3118 = vmatprep.subr.mxu0 0.0
        %3119 = vmatpush1.msra.mxu0 %v2939
        %3120 = vmatprep.subr.mxu0 0.0
        %3121 = vmatpush1.msra.mxu0 %v2940
        %3122 = vmatprep.subr.mxu0 0.0
        %3123 = vmatpush1.msra.mxu0 %v2941
        %3124 = vmatprep.subr.mxu0 0.0
        %3125 = vmatpush1.msra.mxu0 %v2942
        %3126 = vmatprep.subr.mxu0 0.0
        %3127 = vmatpush1.msra.mxu0 %v2943
        %3128 = vmatprep.subr.mxu0 0.0
        %3129 = vmatpush1.msra.mxu0 %v2944
        %3130 = vmatprep.subr.mxu0 0.0
        %3131 = vmatpush1.msra.mxu0 %v2945
        %3132 = vmatprep.subr.mxu0 0.0
        %3133 = vmatpush1.msra.mxu0 %v2946
        %3134 = vmatprep.subr.mxu0 0.0
        %3135 = vmatpush1.msra.mxu0 %v2947
        %3136 = vmatprep.subr.mxu0 0.0
        %3137 = vmatpush1.msra.mxu0 %v2948
        %3138 = vmatprep.subr.mxu0 0.0
        %3139 = vmatpush1.msra.mxu0 %v2949
        %3140 = vmatprep.subr.mxu0 0.0
        %3141 = vmatpush1.msra.mxu0 %v2950
        %3142 = vmatprep.subr.mxu0 0.0
        %3143 = vmatpush1.msra.mxu0 %v2951
        %3144 = vmatprep.subr.mxu0 0.0
        %3145 = vmatpush1.msra.mxu0 %v2952
        %3146 = vmatprep.subr.mxu0 0.0
        %3147 = vmatpush1.msra.mxu0 %v2953
        %3148 = vmatprep.subr.mxu0 0.0
        %3149 = vmatpush1.msra.mxu0 %v2954
        %3150 = vmatprep.subr.mxu0 0.0
        %3151 = vmatpush1.msra.mxu0 %v2955
        %3152 = vmatprep.subr.mxu0 0.0
        %3153 = vmatpush1.msra.mxu0 %v2956
        %3154 = vmatprep.subr.mxu0 0.0
        %3155 = vmatpush1.msra.mxu0 %v2957
        %3156 = vmatprep.subr.mxu0 0.0
        %3157 = vmatpush1.msra.mxu0 %v2958
        %3158 = vmatprep.subr.mxu0 0.0
        %3159 = vmatpush1.msra.mxu0 %v2959
        %3160 = vmatprep.subr.mxu0 0.0
        %3161 = vmatpush1.msra.mxu0 %v2960
        %3162 = vmatprep.subr.mxu0 0.0
        %3163 = vmatpush1.msra.mxu0 %v2961
        %3164 = vmatprep.subr.mxu0 0.0
        %3165 = vmatpush1.msra.mxu0 %v2962
        %3166 = vmatprep.subr.mxu0 0.0
        %3167 = vmatpush1.msra.mxu0 %v2963
        %3168 = vmatprep.subr.mxu0 0.0
        %3169 = vmatpush1.msra.mxu0 %v2964
        %3170 = vmatprep.mubr.f32.mxu0 %v2884
        %3171 = vmatmul.mubr.f32.gmra.mrb[0].mxu0 %v2880
        %v3172 = vpop.f32.mrb[0].mxu0
        %v3173 = vadd.f32 %v3088, %v3172
        %v3174 = vpop.f32.mrb[0].mxu0
        %3175 = vmatprep.mubr.f32.mxu0 %v2885
        %3176 = vmatmul.mubr.f32.gmra.mrb[0].mxu0 %v2881
        %v3177 = vpop.f32.mrb[0].mxu0
        %v3178 = vadd.f32 %v3093, %v3177
        %v3179 = vpop.f32.mrb[0].mxu0
        %3180 = vmatprep.mubr.f32.mxu0 %v2886
        %3181 = vmatmul.mubr.f32.gmra.mrb[0].mxu0 %v2882
        %v3182 = vpop.f32.mrb[0].mxu0
        %v3183 = vadd.f32 %v3098, %v3182
        %v3184 = vpop.f32.mrb[0].mxu0
        %3185 = vmatprep.mubr.f32.mxu0 %v2887
        %3186 = vmatmul.mubr.f32.gmra.mrb[0].mxu0 %v2883
        %v3187 = vpop.f32.mrb[0].mxu0
        %v3188 = vadd.f32 %v3103, %v3187
        %v3189 = vpop.f32.mrb[0].mxu0
        %3190 = vdwg.mxu0
        %3191 = vmatprep.subr.mxu0 0.0
        %3192 = vmatpush1.msra.mxu0 %v2965
        %3193 = vmatprep.subr.mxu0 0.0
        %3194 = vmatpush1.msra.mxu0 %v2966
        %3195 = vmatprep.subr.mxu0 0.0
        %3196 = vmatpush1.msra.mxu0 %v2967
        %3197 = vmatprep.subr.mxu0 0.0
        %3198 = vmatpush1.msra.mxu0 %v2968
        %3199 = vmatprep.subr.mxu0 0.0
        %3200 = vmatpush1.msra.mxu0 %v2969
        %3201 = vmatprep.subr.mxu0 0.0
        %3202 = vmatpush1.msra.mxu0 %v2970
        %3203 = vmatprep.subr.mxu0 0.0
        %3204 = vmatpush1.msra.mxu0 %v2971
        %3205 = vmatprep.subr.mxu0 0.0
        %3206 = vmatpush1.msra.mxu0 %v2972
        %3207 = vmatprep.subr.mxu0 0.0
        %3208 = vmatpush1.msra.mxu0 %v2973
        %3209 = vmatprep.subr.mxu0 0.0
        %3210 = vmatpush1.msra.mxu0 %v2974
        %3211 = vmatprep.subr.mxu0 0.0
        %3212 = vmatpush1.msra.mxu0 %v2975
        %3213 = vmatprep.subr.mxu0 0.0
        %3214 = vmatpush1.msra.mxu0 %v2976
        %3215 = vmatprep.subr.mxu0 0.0
        %3216 = vmatpush1.msra.mxu0 %v2977
        %3217 = vmatprep.subr.mxu0 0.0
        %3218 = vmatpush1.msra.mxu0 %v2978
        %3219 = vmatprep.subr.mxu0 0.0
        %3220 = vmatpush1.msra.mxu0 %v2979
        %3221 = vmatprep.subr.mxu0 0.0
        %3222 = vmatpush1.msra.mxu0 %v2980
        %3223 = vmatprep.subr.mxu0 0.0
        %3224 = vmatpush1.msra.mxu0 %v2981
        %3225 = vmatprep.subr.mxu0 0.0
        %3226 = vmatpush1.msra.mxu0 %v2982
        %3227 = vmatprep.subr.mxu0 0.0
        %3228 = vmatpush1.msra.mxu0 %v2983
        %3229 = vmatprep.subr.mxu0 0.0
        %3230 = vmatpush1.msra.mxu0 %v2984
        %3231 = vmatprep.subr.mxu0 0.0
        %3232 = vmatpush1.msra.mxu0 %v2985
        %3233 = vmatprep.subr.mxu0 0.0
        %3234 = vmatpush1.msra.mxu0 %v2986
        %3235 = vmatprep.subr.mxu0 0.0
        %3236 = vmatpush1.msra.mxu0 %v2987
        %3237 = vmatprep.subr.mxu0 0.0
        %3238 = vmatpush1.msra.mxu0 %v2988
        %3239 = vmatprep.subr.mxu0 0.0
        %3240 = vmatpush1.msra.mxu0 %v2989
        %3241 = vmatprep.subr.mxu0 0.0
        %3242 = vmatpush1.msra.mxu0 %v2990
        %3243 = vmatprep.subr.mxu0 0.0
        %3244 = vmatpush1.msra.mxu0 %v2991
        %3245 = vmatprep.subr.mxu0 0.0
        %3246 = vmatpush1.msra.mxu0 %v2992
        %3247 = vmatprep.subr.mxu0 0.0
        %3248 = vmatpush1.msra.mxu0 %v2993
        %3249 = vmatprep.subr.mxu0 0.0
        %3250 = vmatpush1.msra.mxu0 %v2994
        %3251 = vmatprep.subr.mxu0 0.0
        %3252 = vmatpush1.msra.mxu0 %v2995
        %3253 = vmatprep.subr.mxu0 0.0
        %3254 = vmatpush1.msra.mxu0 %v2996
        %3255 = vmatprep.mubr.f32.mxu0 %v2892
        %3256 = vmatmul.mubr.f32.gmra.mrb[0].mxu0 %v2888
        %v3257 = vpop.f32.mrb[0].mxu0
        %v3258 = vadd.f32 %v3173, %v3257
        %v3259 = vpop.f32.mrb[0].mxu0
        %3260 = vmatprep.mubr.f32.mxu0 %v2893
        %3261 = vmatmul.mubr.f32.gmra.mrb[0].mxu0 %v2889
        %v3262 = vpop.f32.mrb[0].mxu0
        %v3263 = vadd.f32 %v3178, %v3262
        %v3264 = vpop.f32.mrb[0].mxu0
        %3265 = vmatprep.mubr.f32.mxu0 %v2894
        %3266 = vmatmul.mubr.f32.gmra.mrb[0].mxu0 %v2890
        %v3267 = vpop.f32.mrb[0].mxu0
        %v3268 = vadd.f32 %v3183, %v3267
        %v3269 = vpop.f32.mrb[0].mxu0
        %3270 = vmatprep.mubr.f32.mxu0 %v2895
        %3271 = vmatmul.mubr.f32.gmra.mrb[0].mxu0 %v2891
        %v3272 = vpop.f32.mrb[0].mxu0
        %v3273 = vadd.f32 %v3188, %v3272
        %v3274 = vpop.f32.mrb[0].mxu0
        %3275 = vdwg.mxu0
        %3276 = vmatprep.subr.mxu0 0.0
        %3277 = vmatpush1.msra.mxu0 %v2997
        %3278 = vmatprep.subr.mxu0 0.0
        %3279 = vmatpush1.msra.mxu0 %v2998
        %3280 = vmatprep.subr.mxu0 0.0
        %3281 = vmatpush1.msra.mxu0 %v2999
        %3282 = vmatprep.subr.mxu0 0.0
        %3283 = vmatpush1.msra.mxu0 %v3000
        %3284 = vmatprep.subr.mxu0 0.0
        %3285 = vmatpush1.msra.mxu0 %v3001
        %3286 = vmatprep.subr.mxu0 0.0
        %3287 = vmatpush1.msra.mxu0 %v3002
        %3288 = vmatprep.subr.mxu0 0.0
        %3289 = vmatpush1.msra.mxu0 %v3003
        %3290 = vmatprep.subr.mxu0 0.0
        %3291 = vmatpush1.msra.mxu0 %v3004
        %3292 = vmatprep.subr.mxu0 0.0
        %3293 = vmatpush1.msra.mxu0 %v3005
        %3294 = vmatprep.subr.mxu0 0.0
        %3295 = vmatpush1.msra.mxu0 %v3006
        %3296 = vmatprep.subr.mxu0 0.0
        %3297 = vmatpush1.msra.mxu0 %v3007
        %3298 = vmatprep.subr.mxu0 0.0
        %3299 = vmatpush1.msra.mxu0 %v3008
        %3300 = vmatprep.subr.mxu0 0.0
        %3301 = vmatpush1.msra.mxu0 %v3009
        %3302 = vmatprep.subr.mxu0 0.0
        %3303 = vmatpush1.msra.mxu0 %v3010
        %3304 = vmatprep.subr.mxu0 0.0
        %3305 = vmatpush1.msra.mxu0 %v3011
        %3306 = vmatprep.subr.mxu0 0.0
        %3307 = vmatpush1.msra.mxu0 %v3012
        %3308 = vmatprep.subr.mxu0 0.0
        %3309 = vmatpush1.msra.mxu0 0.0
        %3310 = vmatprep.subr.mxu0 0.0
        %3311 = vmatpush1.msra.mxu0 0.0
        %3312 = vmatprep.subr.mxu0 0.0
        %3313 = vmatpush1.msra.mxu0 0.0
        %3314 = vmatprep.subr.mxu0 0.0
        %3315 = vmatpush1.msra.mxu0 0.0
        %3316 = vmatprep.subr.mxu0 0.0
        %3317 = vmatpush1.msra.mxu0 0.0
        %3318 = vmatprep.subr.mxu0 0.0
        %3319 = vmatpush1.msra.mxu0 0.0
        %3320 = vmatprep.subr.mxu0 0.0
        %3321 = vmatpush1.msra.mxu0 0.0
        %3322 = vmatprep.subr.mxu0 0.0
        %3323 = vmatpush1.msra.mxu0 0.0
        %3324 = vmatprep.subr.mxu0 0.0
        %3325 = vmatpush1.msra.mxu0 0.0
        %3326 = vmatprep.subr.mxu0 0.0
        %3327 = vmatpush1.msra.mxu0 0.0
        %3328 = vmatprep.subr.mxu0 0.0
        %3329 = vmatpush1.msra.mxu0 0.0
        %3330 = vmatprep.subr.mxu0 0.0
        %3331 = vmatpush1.msra.mxu0 0.0
        %3332 = vmatprep.subr.mxu0 0.0
        %3333 = vmatpush1.msra.mxu0 0.0
        %3334 = vmatprep.subr.mxu0 0.0
        %3335 = vmatpush1.msra.mxu0 0.0
        %3336 = vmatprep.subr.mxu0 0.0
        %3337 = vmatpush1.msra.mxu0 0.0
        %3338 = vmatprep.subr.mxu0 0.0
        %3339 = vmatpush1.msra.mxu0 0.0
        %3340 = vmatprep.mubr.f32.mxu0 0.0
        %3341 = vmatmul.mubr.f32.gmra.mrb[0].mxu0 %v2896
        %v3342 = vpop.f32.mrb[0].mxu0
        %v3343 = vadd.f32 %v3258, %v3342
        %v3344 = vpop.f32.mrb[0].mxu0
        %3345 = vmatprep.mubr.f32.mxu0 0.0
        %3346 = vmatmul.mubr.f32.gmra.mrb[0].mxu0 %v2897
        %v3347 = vpop.f32.mrb[0].mxu0
        %v3348 = vadd.f32 %v3263, %v3347
        %v3349 = vpop.f32.mrb[0].mxu0
        %3350 = vmatprep.mubr.f32.mxu0 0.0
        %3351 = vmatmul.mubr.f32.gmra.mrb[0].mxu0 %v2898
        %v3352 = vpop.f32.mrb[0].mxu0
        %v3353 = vadd.f32 %v3268, %v3352
        %v3354 = vpop.f32.mrb[0].mxu0
        %3355 = vmatprep.mubr.f32.mxu0 0.0
        %3356 = vmatmul.mubr.f32.gmra.mrb[0].mxu0 %v2899
        %v3357 = vpop.f32.mrb[0].mxu0
        %v3358 = vadd.f32 %v3273, %v3357
        %v3359 = vpop.f32.mrb[0].mxu0
        %3360 = vdwg.mxu0
        %s3361 = sld [smem:[#allocation4 + $0x8]]
        %vm3362 = vcmp.ge.f32.partialorder %v3343, 0.0
        %vm3363 = vcmp.ge.f32.partialorder %v3348, 0.0
        %vm3364 = vcmp.ge.f32.partialorder %v3353, 0.0
        %vm3365 = vcmp.ge.f32.partialorder %v3358, 0.0
        %v3366 = vstv %s3361
        %v3367 = vmul.f32 %v3366, %v3343
        %v3368 = vmul.f32 %v3366, %v3348
        %v3369 = vmul.f32 %v3366, %v3353
        %v3370 = vmul.f32 %v3366, %v3358
        %v3371 = vsel %vm3362, %v3343, %v3367
        %v3372 = vsel %vm3363, %v3348, %v3368
        %v3373 = vsel %vm3364, %v3353, %v3369
        %v3374 = vsel %vm3365, %v3358, %v3370
        %s3375 = scalar_lea.vmem %s4, 512
        %v3376 = vld [vmem:[%s3375] sm:$0xff]
        %v3377 = vld [vmem:[%s3375 + $0x8] sm:$0xff]
        %v3378 = vld [vmem:[%s3375 + $0x10] sm:$0xff]
        %v3379 = vld [vmem:[%s3375 + $0x18] sm:$0xff]
        %v3380 = vld [vmem:[%s3375 + $0x20] sm:$0xff]
        %v3381 = vld [vmem:[%s3375 + $0x28] sm:$0xff]
        %v3382 = vld [vmem:[%s3375 + $0x30] sm:$0xff]
        %v3383 = vld [vmem:[%s3375 + $0x38] sm:$0xff]
        %v3384 = vld [vmem:[%s3375 + $0x40] sm:$0xff]
        %v3385 = vld [vmem:[%s3375 + $0x48] sm:$0xff]
        %v3386 = vld [vmem:[%s3375 + $0x50] sm:$0xff]
        %v3387 = vld [vmem:[%s3375 + $0x58] sm:$0xff]
        %v3388 = vld [vmem:[%s3375 + $0x60] sm:$0xff]
        %v3389 = vld [vmem:[%s3375 + $0x68] sm:$0xff]
        %v3390 = vld [vmem:[%s3375 + $0x70] sm:$0xff]
        %v3391 = vld [vmem:[%s3375 + $0x78] sm:$0xff]
        %s3392 = scalar_lea.vmem %s5, 4
        %v3393 = vld [vmem:[%s3392] sm:$0x1]
        %v3395 = vlaneseq
        %v3396 = vshrl.u32 %v3395, 7
        %v3397 = vsub.s32 0, %v3396
        %v3398 = vrot.slane %v3393, %v3397
        %3400 = vmatprep.subr.mxu0 0.0
        %3401 = vmatpush1.msra.mxu0 %v3376
        %3402 = vmatprep.subr.mxu0 0.0
        %3403 = vmatpush1.msra.mxu0 %v3377
        %3404 = vmatprep.subr.mxu0 0.0
        %3405 = vmatpush1.msra.mxu0 %v3378
        %3406 = vmatprep.subr.mxu0 0.0
        %3407 = vmatpush1.msra.mxu0 %v3379
        %3408 = vmatprep.subr.mxu0 0.0
        %3409 = vmatpush1.msra.mxu0 %v3380
        %3410 = vmatprep.subr.mxu0 0.0
        %3411 = vmatpush1.msra.mxu0 %v3381
        %3412 = vmatprep.subr.mxu0 0.0
        %3413 = vmatpush1.msra.mxu0 %v3382
        %3414 = vmatprep.subr.mxu0 0.0
        %3415 = vmatpush1.msra.mxu0 %v3383
        %3416 = vmatprep.subr.mxu0 0.0
        %3417 = vmatpush1.msra.mxu0 %v3384
        %3418 = vmatprep.subr.mxu0 0.0
        %3419 = vmatpush1.msra.mxu0 %v3385
        %3420 = vmatprep.subr.mxu0 0.0
        %3421 = vmatpush1.msra.mxu0 %v3386
        %3422 = vmatprep.subr.mxu0 0.0
        %3423 = vmatpush1.msra.mxu0 %v3387
        %3424 = vmatprep.subr.mxu0 0.0
        %3425 = vmatpush1.msra.mxu0 %v3388
        %3426 = vmatprep.subr.mxu0 0.0
        %3427 = vmatpush1.msra.mxu0 %v3389
        %3428 = vmatprep.subr.mxu0 0.0
        %3429 = vmatpush1.msra.mxu0 %v3390
        %3430 = vmatprep.subr.mxu0 0.0
        %3431 = vmatpush1.msra.mxu0 %v3391
        %3432 = vmatprep.subr.mxu0 0.0
        %3433 = vmatpush1.msra.mxu0 0.0
        %3434 = vmatprep.subr.mxu0 0.0
        %3435 = vmatpush1.msra.mxu0 0.0
        %3436 = vmatprep.subr.mxu0 0.0
        %3437 = vmatpush1.msra.mxu0 0.0
        %3438 = vmatprep.subr.mxu0 0.0
        %3439 = vmatpush1.msra.mxu0 0.0
        %3440 = vmatprep.subr.mxu0 0.0
        %3441 = vmatpush1.msra.mxu0 0.0
        %3442 = vmatprep.subr.mxu0 0.0
        %3443 = vmatpush1.msra.mxu0 0.0
        %3444 = vmatprep.subr.mxu0 0.0
        %3445 = vmatpush1.msra.mxu0 0.0
        %3446 = vmatprep.subr.mxu0 0.0
        %3447 = vmatpush1.msra.mxu0 0.0
        %3448 = vmatprep.subr.mxu0 0.0
        %3449 = vmatpush1.msra.mxu0 0.0
        %3450 = vmatprep.subr.mxu0 0.0
        %3451 = vmatpush1.msra.mxu0 0.0
        %3452 = vmatprep.subr.mxu0 0.0
        %3453 = vmatpush1.msra.mxu0 0.0
        %3454 = vmatprep.subr.mxu0 0.0
        %3455 = vmatpush1.msra.mxu0 0.0
        %3456 = vmatprep.subr.mxu0 0.0
        %3457 = vmatpush1.msra.mxu0 0.0
        %3458 = vmatprep.subr.mxu0 0.0
        %3459 = vmatpush1.msra.mxu0 0.0
        %3460 = vmatprep.subr.mxu0 0.0
        %3461 = vmatpush1.msra.mxu0 0.0
        %3462 = vmatprep.subr.mxu0 0.0
        %3463 = vmatpush1.msra.mxu0 0.0
        %3464 = vmatprep.mubr.f32.mxu0 0.0
        %3465 = vmatmul.mubr.f32.gmra.mrb[0].mxu0 %v3371
        %v3466 = vpop.f32.mrb[0].mxu0
        %v3467 = vadd.f32 %v3398, %v3466
        %v3468 = vpop.f32.mrb[0].mxu0
        %3469 = vmatprep.mubr.f32.mxu0 0.0
        %3470 = vmatmul.mubr.f32.gmra.mrb[0].mxu0 %v3372
        %v3471 = vpop.f32.mrb[0].mxu0
        %v3472 = vadd.f32 %v3398, %v3471
        %v3473 = vpop.f32.mrb[0].mxu0
        %3474 = vmatprep.mubr.f32.mxu0 0.0
        %3475 = vmatmul.mubr.f32.gmra.mrb[0].mxu0 %v3373
        %v3476 = vpop.f32.mrb[0].mxu0
        %v3477 = vadd.f32 %v3398, %v3476
        %v3478 = vpop.f32.mrb[0].mxu0
        %3479 = vmatprep.mubr.f32.mxu0 0.0
        %3480 = vmatmul.mubr.f32.gmra.mrb[0].mxu0 %v3374
        %v3481 = vpop.f32.mrb[0].mxu0
        %v3482 = vadd.f32 %v3398, %v3481
        %v3483 = vpop.f32.mrb[0].mxu0
        %3484 = vdwg.mxu0
        %s3485 = sld [smem:[#allocation4 + $0x9]]
        %vm3486 = vcmp.ge.f32.partialorder %v3467, 0.0
        %vm3487 = vcmp.ge.f32.partialorder %v3472, 0.0
        %vm3488 = vcmp.ge.f32.partialorder %v3477, 0.0
        %vm3489 = vcmp.ge.f32.partialorder %v3482, 0.0
        %v3490 = vstv %s3485
        %v3491 = vmul.f32 %v3490, %v3467
        %v3492 = vmul.f32 %v3490, %v3472
        %v3493 = vmul.f32 %v3490, %v3477
        %v3494 = vmul.f32 %v3490, %v3482
        %v3495 = vsel %vm3486, %v3467, %v3491
        %v3496 = vsel %vm3487, %v3472, %v3492
        %v3497 = vsel %vm3488, %v3477, %v3493
        %v3498 = vsel %vm3489, %v3482, %v3494
        %v3499 = vadd.f32 %v3495, %v2884
        %v3500 = vadd.f32 %v3496, %v2885
        %v3501 = vadd.f32 %v3497, %v2886
        %v3502 = vadd.f32 %v3498, %v2887
        %3503 = vst [vmem:[#allocation2 + $0x20] sm:$0xff] %v3499
        %3504 = vst [vmem:[#allocation2 + $0x28] sm:$0xff] %v3500
        %3505 = vst [vmem:[#allocation2 + $0x30] sm:$0xff] %v3501
        %3506 = vst [vmem:[#allocation2 + $0x38] sm:$0xff] %v3502
        %s3507 = scalar_lea.vmem [#allocation2], 31
        %v3508 = vld [vmem:[%s3507] ss:$2 sm:$0xff]
        %s3509 = scalar_lea.vmem [#allocation2], 47
        %v3510 = vld [vmem:[%s3509] ss:$2 sm:$0xff]
        %s3511 = scalar_lea.vmem [#allocation2], 32
        %v3512 = vld [vmem:[%s3511] ss:$2 sm:$0xff]
        %s3513 = scalar_lea.vmem [#allocation2], 48
        %v3514 = vld [vmem:[%s3513] ss:$2 sm:$0xff]
        %s3515 = scalar_lea.vmem [#allocation2], 33
        %v3516 = vld [vmem:[%s3515] ss:$2 sm:$0xff]
        %s3517 = scalar_lea.vmem [#allocation2], 49
        %v3518 = vld [vmem:[%s3517] ss:$2 sm:$0xff]
        %s3519 = scalar_lea.vmem [#allocation2], 34
        %v3520 = vld [vmem:[%s3519] ss:$2 sm:$0xff]
        %s3521 = scalar_lea.vmem [#allocation2], 50
        %v3522 = vld [vmem:[%s3521] ss:$2 sm:$0xff]
        %v3523 = vld [vmem:[%s6] sm:$0xff]
        %v3524 = vld [vmem:[%s6 + $0x8] sm:$0xff]
        %v3525 = vld [vmem:[%s6 + $0x10] sm:$0xff]
        %v3526 = vld [vmem:[%s6 + $0x18] sm:$0xff]
        %v3527 = vld [vmem:[%s6 + $0x20] sm:$0xff]
        %v3528 = vld [vmem:[%s6 + $0x28] sm:$0xff]
        %v3529 = vld [vmem:[%s6 + $0x30] sm:$0xff]
        %v3530 = vld [vmem:[%s6 + $0x38] sm:$0xff]
        %v3531 = vld [vmem:[%s6 + $0x40] sm:$0xff]
        %v3532 = vld [vmem:[%s6 + $0x48] sm:$0xff]
        %v3533 = vld [vmem:[%s6 + $0x50] sm:$0xff]
        %v3534 = vld [vmem:[%s6 + $0x58] sm:$0xff]
        %v3535 = vld [vmem:[%s6 + $0x60] sm:$0xff]
        %v3536 = vld [vmem:[%s6 + $0x68] sm:$0xff]
        %v3537 = vld [vmem:[%s6 + $0x70] sm:$0xff]
        %v3538 = vld [vmem:[%s6 + $0x78] sm:$0xff]
        %v3539 = vld [vmem:[%s6 + $0x80] sm:$0xff]
        %v3540 = vld [vmem:[%s6 + $0x88] sm:$0xff]
        %v3541 = vld [vmem:[%s6 + $0x90] sm:$0xff]
        %v3542 = vld [vmem:[%s6 + $0x98] sm:$0xff]
        %v3543 = vld [vmem:[%s6 + $0xa0] sm:$0xff]
        %v3544 = vld [vmem:[%s6 + $0xa8] sm:$0xff]
        %v3545 = vld [vmem:[%s6 + $0xb0] sm:$0xff]
        %v3546 = vld [vmem:[%s6 + $0xb8] sm:$0xff]
        %v3547 = vld [vmem:[%s6 + $0xc0] sm:$0xff]
        %v3548 = vld [vmem:[%s6 + $0xc8] sm:$0xff]
        %v3549 = vld [vmem:[%s6 + $0xd0] sm:$0xff]
        %v3550 = vld [vmem:[%s6 + $0xd8] sm:$0xff]
        %v3551 = vld [vmem:[%s6 + $0xe0] sm:$0xff]
        %v3552 = vld [vmem:[%s6 + $0xe8] sm:$0xff]
        %v3553 = vld [vmem:[%s6 + $0xf0] sm:$0xff]
        %v3554 = vld [vmem:[%s6 + $0xf8] sm:$0xff]
        %v3555 = vld [vmem:[%s6 + $0x100] sm:$0xff]
        %v3556 = vld [vmem:[%s6 + $0x108] sm:$0xff]
        %v3557 = vld [vmem:[%s6 + $0x110] sm:$0xff]
        %v3558 = vld [vmem:[%s6 + $0x118] sm:$0xff]
        %v3559 = vld [vmem:[%s6 + $0x120] sm:$0xff]
        %v3560 = vld [vmem:[%s6 + $0x128] sm:$0xff]
        %v3561 = vld [vmem:[%s6 + $0x130] sm:$0xff]
        %v3562 = vld [vmem:[%s6 + $0x138] sm:$0xff]
        %v3563 = vld [vmem:[%s6 + $0x140] sm:$0xff]
        %v3564 = vld [vmem:[%s6 + $0x148] sm:$0xff]
        %v3565 = vld [vmem:[%s6 + $0x150] sm:$0xff]
        %v3566 = vld [vmem:[%s6 + $0x158] sm:$0xff]
        %v3567 = vld [vmem:[%s6 + $0x160] sm:$0xff]
        %v3568 = vld [vmem:[%s6 + $0x168] sm:$0xff]
        %v3569 = vld [vmem:[%s6 + $0x170] sm:$0xff]
        %v3570 = vld [vmem:[%s6 + $0x178] sm:$0xff]
        %v3571 = vld [vmem:[%s6 + $0x180] sm:$0xff]
        %v3572 = vld [vmem:[%s6 + $0x188] sm:$0xff]
        %v3573 = vld [vmem:[%s6 + $0x190] sm:$0xff]
        %v3574 = vld [vmem:[%s6 + $0x198] sm:$0xff]
        %v3575 = vld [vmem:[%s6 + $0x1a0] sm:$0xff]
        %v3576 = vld [vmem:[%s6 + $0x1a8] sm:$0xff]
        %v3577 = vld [vmem:[%s6 + $0x1b0] sm:$0xff]
        %v3578 = vld [vmem:[%s6 + $0x1b8] sm:$0xff]
        %v3579 = vld [vmem:[%s6 + $0x1c0] sm:$0xff]
        %v3580 = vld [vmem:[%s6 + $0x1c8] sm:$0xff]
        %v3581 = vld [vmem:[%s6 + $0x1d0] sm:$0xff]
        %v3582 = vld [vmem:[%s6 + $0x1d8] sm:$0xff]
        %v3583 = vld [vmem:[%s6 + $0x1e0] sm:$0xff]
        %v3584 = vld [vmem:[%s6 + $0x1e8] sm:$0xff]
        %v3585 = vld [vmem:[%s6 + $0x1f0] sm:$0xff]
        %v3586 = vld [vmem:[%s6 + $0x1f8] sm:$0xff]
        %v3587 = vld [vmem:[%s7] sm:$0x1]
        %v3589 = vlaneseq
        %v3590 = vshrl.u32 %v3589, 7
        %v3591 = vsub.s32 0, %v3590
        %v3592 = vrot.slane %v3587, %v3591
        %3594 = vmatprep.subr.mxu0 0.0
        %3595 = vmatpush1.msra.mxu0 %v3523
        %3596 = vmatprep.subr.mxu0 0.0
        %3597 = vmatpush1.msra.mxu0 %v3524
        %3598 = vmatprep.subr.mxu0 0.0
        %3599 = vmatpush1.msra.mxu0 %v3525
        %3600 = vmatprep.subr.mxu0 0.0
        %3601 = vmatpush1.msra.mxu0 %v3526
        %3602 = vmatprep.subr.mxu0 0.0
        %3603 = vmatpush1.msra.mxu0 %v3527
        %3604 = vmatprep.subr.mxu0 0.0
        %3605 = vmatpush1.msra.mxu0 %v3528
        %3606 = vmatprep.subr.mxu0 0.0
        %3607 = vmatpush1.msra.mxu0 %v3529
        %3608 = vmatprep.subr.mxu0 0.0
        %3609 = vmatpush1.msra.mxu0 %v3530
        %3610 = vmatprep.subr.mxu0 0.0
        %3611 = vmatpush1.msra.mxu0 %v3531
        %3612 = vmatprep.subr.mxu0 0.0
        %3613 = vmatpush1.msra.mxu0 %v3532
        %3614 = vmatprep.subr.mxu0 0.0
        %3615 = vmatpush1.msra.mxu0 %v3533
        %3616 = vmatprep.subr.mxu0 0.0
        %3617 = vmatpush1.msra.mxu0 %v3534
        %3618 = vmatprep.subr.mxu0 0.0
        %3619 = vmatpush1.msra.mxu0 %v3535
        %3620 = vmatprep.subr.mxu0 0.0
        %3621 = vmatpush1.msra.mxu0 %v3536
        %3622 = vmatprep.subr.mxu0 0.0
        %3623 = vmatpush1.msra.mxu0 %v3537
        %3624 = vmatprep.subr.mxu0 0.0
        %3625 = vmatpush1.msra.mxu0 %v3538
        %3626 = vmatprep.subr.mxu0 0.0
        %3627 = vmatpush1.msra.mxu0 %v3539
        %3628 = vmatprep.subr.mxu0 0.0
        %3629 = vmatpush1.msra.mxu0 %v3540
        %3630 = vmatprep.subr.mxu0 0.0
        %3631 = vmatpush1.msra.mxu0 %v3541
        %3632 = vmatprep.subr.mxu0 0.0
        %3633 = vmatpush1.msra.mxu0 %v3542
        %3634 = vmatprep.subr.mxu0 0.0
        %3635 = vmatpush1.msra.mxu0 %v3543
        %3636 = vmatprep.subr.mxu0 0.0
        %3637 = vmatpush1.msra.mxu0 %v3544
        %3638 = vmatprep.subr.mxu0 0.0
        %3639 = vmatpush1.msra.mxu0 %v3545
        %3640 = vmatprep.subr.mxu0 0.0
        %3641 = vmatpush1.msra.mxu0 %v3546
        %3642 = vmatprep.subr.mxu0 0.0
        %3643 = vmatpush1.msra.mxu0 %v3547
        %3644 = vmatprep.subr.mxu0 0.0
        %3645 = vmatpush1.msra.mxu0 %v3548
        %3646 = vmatprep.subr.mxu0 0.0
        %3647 = vmatpush1.msra.mxu0 %v3549
        %3648 = vmatprep.subr.mxu0 0.0
        %3649 = vmatpush1.msra.mxu0 %v3550
        %3650 = vmatprep.subr.mxu0 0.0
        %3651 = vmatpush1.msra.mxu0 %v3551
        %3652 = vmatprep.subr.mxu0 0.0
        %3653 = vmatpush1.msra.mxu0 %v3552
        %3654 = vmatprep.subr.mxu0 0.0
        %3655 = vmatpush1.msra.mxu0 %v3553
        %3656 = vmatprep.subr.mxu0 0.0
        %3657 = vmatpush1.msra.mxu0 %v3554
        %3658 = vmatprep.mubr.f32.mxu0 %v3512
        %3659 = vmatmul.mubr.f32.gmra.mrb[0].mxu0 %v3508
        %v3660 = vpop.f32.mrb[0].mxu0
        %v3661 = vadd.f32 %v3592, %v3660
        %v3662 = vpop.f32.mrb[0].mxu0
        %3663 = vmatprep.mubr.f32.mxu0 %v3514
        %3664 = vmatmul.mubr.f32.gmra.mrb[0].mxu0 %v3510
        %v3665 = vpop.f32.mrb[0].mxu0
        %v3666 = vadd.f32 %v3592, %v3665
        %v3667 = vpop.f32.mrb[0].mxu0
        %3668 = vdwg.mxu0
        %3669 = vmatprep.subr.mxu0 0.0
        %3670 = vmatpush1.msra.mxu0 %v3555
        %3671 = vmatprep.subr.mxu0 0.0
        %3672 = vmatpush1.msra.mxu0 %v3556
        %3673 = vmatprep.subr.mxu0 0.0
        %3674 = vmatpush1.msra.mxu0 %v3557
        %3675 = vmatprep.subr.mxu0 0.0
        %3676 = vmatpush1.msra.mxu0 %v3558
        %3677 = vmatprep.subr.mxu0 0.0
        %3678 = vmatpush1.msra.mxu0 %v3559
        %3679 = vmatprep.subr.mxu0 0.0
        %3680 = vmatpush1.msra.mxu0 %v3560
        %3681 = vmatprep.subr.mxu0 0.0
        %3682 = vmatpush1.msra.mxu0 %v3561
        %3683 = vmatprep.subr.mxu0 0.0
        %3684 = vmatpush1.msra.mxu0 %v3562
        %3685 = vmatprep.subr.mxu0 0.0
        %3686 = vmatpush1.msra.mxu0 %v3563
        %3687 = vmatprep.subr.mxu0 0.0
        %3688 = vmatpush1.msra.mxu0 %v3564
        %3689 = vmatprep.subr.mxu0 0.0
        %3690 = vmatpush1.msra.mxu0 %v3565
        %3691 = vmatprep.subr.mxu0 0.0
        %3692 = vmatpush1.msra.mxu0 %v3566
        %3693 = vmatprep.subr.mxu0 0.0
        %3694 = vmatpush1.msra.mxu0 %v3567
        %3695 = vmatprep.subr.mxu0 0.0
        %3696 = vmatpush1.msra.mxu0 %v3568
        %3697 = vmatprep.subr.mxu0 0.0
        %3698 = vmatpush1.msra.mxu0 %v3569
        %3699 = vmatprep.subr.mxu0 0.0
        %3700 = vmatpush1.msra.mxu0 %v3570
        %3701 = vmatprep.subr.mxu0 0.0
        %3702 = vmatpush1.msra.mxu0 %v3571
        %3703 = vmatprep.subr.mxu0 0.0
        %3704 = vmatpush1.msra.mxu0 %v3572
        %3705 = vmatprep.subr.mxu0 0.0
        %3706 = vmatpush1.msra.mxu0 %v3573
        %3707 = vmatprep.subr.mxu0 0.0
        %3708 = vmatpush1.msra.mxu0 %v3574
        %3709 = vmatprep.subr.mxu0 0.0
        %3710 = vmatpush1.msra.mxu0 %v3575
        %3711 = vmatprep.subr.mxu0 0.0
        %3712 = vmatpush1.msra.mxu0 %v3576
        %3713 = vmatprep.subr.mxu0 0.0
        %3714 = vmatpush1.msra.mxu0 %v3577
        %3715 = vmatprep.subr.mxu0 0.0
        %3716 = vmatpush1.msra.mxu0 %v3578
        %3717 = vmatprep.subr.mxu0 0.0
        %3718 = vmatpush1.msra.mxu0 %v3579
        %3719 = vmatprep.subr.mxu0 0.0
        %3720 = vmatpush1.msra.mxu0 %v3580
        %3721 = vmatprep.subr.mxu0 0.0
        %3722 = vmatpush1.msra.mxu0 %v3581
        %3723 = vmatprep.subr.mxu0 0.0
        %3724 = vmatpush1.msra.mxu0 %v3582
        %3725 = vmatprep.subr.mxu0 0.0
        %3726 = vmatpush1.msra.mxu0 %v3583
        %3727 = vmatprep.subr.mxu0 0.0
        %3728 = vmatpush1.msra.mxu0 %v3584
        %3729 = vmatprep.subr.mxu0 0.0
        %3730 = vmatpush1.msra.mxu0 %v3585
        %3731 = vmatprep.subr.mxu0 0.0
        %3732 = vmatpush1.msra.mxu0 %v3586
        %3733 = vmatprep.mubr.f32.mxu0 %v3520
        %3734 = vmatmul.mubr.f32.gmra.mrb[0].mxu0 %v3516
        %v3735 = vpop.f32.mrb[0].mxu0
        %v3736 = vadd.f32 %v3661, %v3735
        %v3737 = vpop.f32.mrb[0].mxu0
        %3738 = vmatprep.mubr.f32.mxu0 %v3522
        %3739 = vmatmul.mubr.f32.gmra.mrb[0].mxu0 %v3518
        %v3740 = vpop.f32.mrb[0].mxu0
        %v3741 = vadd.f32 %v3666, %v3740
        %v3742 = vpop.f32.mrb[0].mxu0
        %3743 = vdwg.mxu0
        %s3744 = sld [smem:[#allocation4 + $0xa]]
        %vm3745 = vcmp.ge.f32.partialorder %v3736, 0.0
        %vm3746 = vcmp.ge.f32.partialorder %v3741, 0.0
        %v3747 = vstv %s3744
        %v3748 = vmul.f32 %v3747, %v3736
        %v3749 = vmul.f32 %v3747, %v3741
        %v3750 = vsel %vm3745, %v3736, %v3748
        %v3751 = vsel %vm3746, %v3741, %v3749
        %3752 = vst [vmem:[%s273] sm:$0xff] %v3750
        %3753 = vst [vmem:[%s273 + $0x8] sm:$0xff] %v3751
        %p3754 = scmp.lt.s32.totalorder %s20, 1
        %s3755 = scalar_select %p3754, %s20, 1
        %s3756 = smul.addr %s3755, 2
        %s3757 = smul.addr %s3756, 8
        %s3758 = scalar_lea.vmem %s8, %s3757
        // Predicated region
        $region87: #{res_encoder_block.1} parent=47 // pred_check
          %p3759 = pneg %p185
        $region88: #{res_encoder_block.1} parent=47 // pred_check_branch
          %3761 = sbr.rel (%p3759) target = $region90
        $region89: #{res_encoder_block.1} parent=47 // pred_region
          _
        $region90: #{res_encoder_block.1} parent=47 // pred_fallthru
          _
      $region48: #{res_encoder_block.1} parent=5 // pred_fallthru
        _
      %p3762 = scmp.le.s32.totalorder 2, %s15
      // Predicated region
      $region91: #{res_encoder_block.1} parent=5 // pred_check
        %p3763 = pneg %p3762
      $region92: #{res_encoder_block.1} parent=5 // pred_check_branch
        %3765 = sbr.rel (%p3763) target = $region94
      $region93: #{res_encoder_block.1} parent=5 // pred_region
        %s3766 = ssub.s32 %s15, 2
        // Predicated region
        $region95: #{res_encoder_block.1} parent=93 // pred_check
          %p3767 = pneg %p191
        $region96: #{res_encoder_block.1} parent=93 // pred_check_branch
          %3769 = sbr.rel (%p3767) target = $region98
        $region97: #{res_encoder_block.1} parent=93 // pred_region
          %p3770 = scmp.lt.s32.totalorder %s21, 1
          %s3771 = scalar_select %p3770, %s21, 1
          %s3772 = smul.addr %s3771, 2
          %s3773 = smul.addr %s3772, 8
          %s3774 = scalar_lea.vmem %s8, %s3773
        $region98: #{res_encoder_block.1} parent=93 // pred_fallthru
          _
      $region94: #{res_encoder_block.1} parent=5 // pred_fallthru
        _
    $region6: #{res_encoder_block.1} parent=1 // loop_footer
      %s19 = sadd.s32 1, %s15
    $region7: #{res_encoder_block.1} parent=1 // loop_footer_branch
      %14 = sbr.rel target = $region3
    $region8: #{res_encoder_block.1} parent=1 // loop_exit
      _
    %3775 = vsyncpa [#allocation5], 1
    %s3776 = scalar_lea.sflag [#allocation5], 1
    %3777 = vsyncpa %s3776, 1
  %3778 = vsyncmov [#allocation3]
  %s3779 = vpop.sfrf %3778
  %p3780 = scmp.eq.s32.totalorder %s3779, 0
  %p3781 = pneg %p3780
  %3783 = shalt.err (%p3781)

</llo_original>
